<compile_context>
chip_gen: v6e
topology: v6e:2x2x1
jax: 0.10.0
libtpu: 0.0.40
codegen_flags: <defaults>
</compile_context>

<pallas_src>
from functools import partial

import jax
import jax.numpy as jnp
from jax.experimental import pallas as pl
from jax.experimental.pallas import tpu as pltpu


def _round_up(x, m):
    return ((x + m - 1) // m) * m


def gru_readout_kernel(x_ref, wih_ref, whh_ref, bi_ref, bhn_ref, wro_ref,
                       bro_ref, out_ref, h_ref, gi_ref, hbuf_ref, *,
                       only_last: bool):
    """One time-chunk of a PyTorch-style GRU + deferred linear readout.

    Batch-on-lanes layout (last dim = Bt, lane-dense):
      x_ref   : (T, F, Bt)    input chunk
      wih_ref : (3H, F)       fused input weights, gate order (r, z, n)
      whh_ref : (3H, H)       fused recurrent weights
      bi_ref  : (3H, 1)       [b_ir+b_hr, b_iz+b_hz, b_in]
      bhn_ref : (H, 1)        b_hn (stays inside r * (W_hn h + b_hn))
      wro_ref : (O, H)        readout weight
      bro_ref : (O, 1)        readout bias
      out_ref : (T, O, Bt)    chunk outputs (last chunk only if only_last)
      h_ref   : (H, Bt)       carried hidden state (per B tile)
      gi_ref  : (T, 3H, Bt)   hoisted input projection
      hbuf_ref: (T, H, Bt)    per-chunk hidden states for deferred readout

    Gate math matches nn.GRU:
      r = sigmoid(W_ir x + b_ir + W_hr h + b_hr)
      z = sigmoid(W_iz x + b_iz + W_hz h + b_hz)
      n = tanh   (W_in x + b_in + r * (W_hn h + b_hn))
      h = (1 - z) * n + z * h_prev
    """
    c = pl.program_id(1)
    n_chunks = pl.num_programs(1)

    @pl.when(c == 0)
    def _():
        h_ref[...] = jnp.zeros_like(h_ref)

    T = x_ref.shape[0]
    H = whh_ref.shape[1]
    Bt = x_ref.shape[2]

    wih = wih_ref[...]
    whh = whh_ref[...]
    w_dtype = whh.dtype
    bias_i = bi_ref[...]

    unroll = True if T <= 16 else 8

    # --- hoisted input projection (independent matmuls, off the serial
    # recurrence chain; biases for r/z (pre-summed) and n folded in) --------
    def proj(t, carry):
        x_t = x_ref[t].astype(w_dtype)                              # (F, Bt)
        gi_ref[t] = (jnp.dot(wih, x_t, preferred_element_type=jnp.float32)
                     + bias_i)                                      # (3H, Bt)
        return carry

    jax.lax.fori_loop(0, T, proj, 0, unroll=unroll)

    # Hoist the b_hn broadcast out of the (unrolled) serial loop.
    b_hn = jnp.broadcast_to(bhn_ref[...], (H, Bt))

    # --- serial GRU recurrence: only h @ W_hh on the critical path ---------
    def step(t, h):
        gi = gi_ref[t]                                              # (3H, Bt)
        gh = jnp.dot(whh, h.astype(w_dtype),
                     preferred_element_type=jnp.float32)            # (3H, Bt)
        rz = jax.nn.sigmoid(gi[:2 * H] + gh[:2 * H])
        r = rz[:H]
        z = rz[H:]
        ng = jnp.tanh(gi[2 * H:] + r * (gh[2 * H:] + b_hn))
        h_new = ng + z * (h - ng)                                   # (1-z)n + zh
        hbuf_ref[t] = h_new
        return h_new

    h_last = jax.lax.fori_loop(0, T, step, h_ref[...], unroll=unroll)
    h_ref[...] = h_last

    # --- deferred, batched readout + one coarse lane-dense store -----------
    def do_readout():
        wro = wro_ref[...]                                          # (O, H)
        hs = hbuf_ref[...].astype(wro.dtype)                        # (T, H, Bt)
        wro_b = jnp.broadcast_to(wro, (T,) + wro.shape)             # (T, O, H)
        outs = jnp.einsum('toh,thb->tob', wro_b, hs,
                          preferred_element_type=jnp.float32)       # (T, O, Bt)
        out_ref[...] = (outs + bro_ref[...]).astype(out_ref.dtype)

    if only_last:
        @pl.when(c == n_chunks - 1)
        def _():
            do_readout()
    else:
        do_readout()


def prepare_params(raw, compute_dtype=jnp.float32):
    """Convert PyTorch-layout GRU/readout params to the fused kernel layout."""
    W_ih, W_hh = raw["weight_ih"], raw["weight_hh"]      # (3H, F), (3H, H)
    b_ih, b_hh = raw["bias_ih"], raw["bias_hh"]          # (3H,), (3H,)
    H = W_hh.shape[1]
    bias_i = jnp.concatenate([b_ih[:2 * H] + b_hh[:2 * H], b_ih[2 * H:]])
    return {
        "wih": jnp.asarray(W_ih, compute_dtype),                        # (3H, F)
        "whh": jnp.asarray(W_hh, compute_dtype),                        # (3H, H)
        "bias_i": bias_i.reshape(3 * H, 1).astype(jnp.float32),         # (3H, 1)
        "b_hn": b_hh[2 * H:].reshape(H, 1).astype(jnp.float32),         # (H, 1)
        "wro": jnp.asarray(raw["readout_weight"], compute_dtype),       # (O, H)
        "bro": raw["readout_bias"].reshape(-1, 1).astype(jnp.float32),  # (O, 1)
    }


@partial(jax.jit,
         static_argnames=("return_only_last_state", "time_chunk", "b_tile"))
def rnn_forward(x, u, params, *, return_only_last_state=False,
                time_chunk=None, b_tile=None):
    """Forward pass of the RNN module (GRU, n_layers=1, with readout).

    x: [b, s, n, f], u: [b, s, n, e] or None.
    returns: [b, s, n, O] (or [b, n, O] if return_only_last_state).
    """
    if u is not None:
        x = jnp.concatenate([x, u], axis=-1)             # maybe_cat_exog
    b, s, n, f = x.shape
    B = b * n
    # 'b s n f -> s f (b n)': time-major, features on sublanes, batch on lanes
    x_arr = jnp.transpose(x, (1, 3, 0, 2)).reshape(s, f, B)

    wih, whh = params["wih"], params["whh"]
    bias_i, b_hn = params["bias_i"], params["b_hn"]
    wro, bro = params["wro"], params["bro"]
    F = wih.shape[1]
    H = whh.shape[1]
    O = wro.shape[0]
    assert f == F, (f, F)

    # --- tiling -------------------------------------------------------------
    max_t = time_chunk if time_chunk is not None else 32
    if s <= max_t:
        T = s                                      # no wasted padded steps
    else:
        T = max_t
        for cand in range(max_t, max_t // 2, -1):  # prefer a divisor of s
            if s % cand == 0:
                T = cand
                break
    s_pad = _round_up(s, T)
    n_chunks = s_pad // T

    B128 = _round_up(B, 128)                       # lane-dense batch tiles
    if b_tile is not None:
        Bt = _round_up(b_tile, 128)
    else:
        # aim for >=2 B tiles when B allows it (v7x has 2 TensorCores), cap 512
        Bt = min(512, max(128, _round_up((B128 + 1) // 2, 128)))
    B_pad = _round_up(B128, Bt)
    n_btiles = B_pad // Bt

    if s_pad != s or B_pad != B:
        x_arr = jnp.pad(x_arr, ((0, s_pad - s), (0, 0), (0, B_pad - B)))

    only_last = bool(return_only_last_state)
    if only_last:
        # Single resident output block per B tile: non-last chunks neither
        # compute the readout nor write anything back to HBM.
        out_shape = jax.ShapeDtypeStruct((T, O, B_pad), jnp.float32)
        out_spec = pl.BlockSpec((T, O, Bt), lambda bi, ci: (0, 0, bi))
    else:
        out_shape = jax.ShapeDtypeStruct((s_pad, O, B_pad), jnp.float32)
        out_spec = pl.BlockSpec((T, O, Bt), lambda bi, ci: (ci, 0, bi))

    kernel = partial(gru_readout_kernel, only_last=only_last)

    out_p = pl.pallas_call(
        kernel,
        out_shape=out_shape,
        grid_spec=pltpu.PrefetchScalarGridSpec(
            num_scalar_prefetch=0,
            grid=(n_btiles, n_chunks),
            in_specs=[
                pl.BlockSpec((T, F, Bt), lambda bi, ci: (ci, 0, bi)),   # x chunk
                pl.BlockSpec((3 * H, F), lambda bi, ci: (0, 0)),        # W_ih fused
                pl.BlockSpec((3 * H, H), lambda bi, ci: (0, 0)),        # W_hh fused
                pl.BlockSpec((3 * H, 1), lambda bi, ci: (0, 0)),        # fused in-bias
                pl.BlockSpec((H, 1), lambda bi, ci: (0, 0)),            # b_hn
                pl.BlockSpec((O, H), lambda bi, ci: (0, 0)),            # readout W
                pl.BlockSpec((O, 1), lambda bi, ci: (0, 0)),            # readout b
            ],
            out_specs=out_spec,
            scratch_shapes=[
                pltpu.VMEM((H, Bt), jnp.float32),          # carried hidden state
                pltpu.VMEM((T, 3 * H, Bt), jnp.float32),   # hoisted input proj
                pltpu.VMEM((T, H, Bt), jnp.float32),       # per-chunk h buffer
            ],
        ),
        compiler_params=pltpu.CompilerParams(
            dimension_semantics=("parallel", "arbitrary"),  # B tiles || , time seq
            vmem_limit_bytes=32 * 1024 * 1024,              # safe on v5e/v6e/v7x
        ),
    )(x_arr, wih, whh, bias_i, b_hn, wro, bro)

    if only_last:
        # timestep s-1 lives in the last chunk at this local row
        row = (s - 1) - (s_pad - T)
        out_last = out_p[row, :, :B]                        # (O, B)
        return out_last.reshape(O, b, n).transpose(1, 2, 0)  # (b, n, O)

    out_sm = out_p[:s, :, :B]                               # (s, O, B)
    # 's o (b n) -> b s n o'
    return out_sm.reshape(s, O, b, n).transpose(2, 0, 3, 1)


def rnn_reference(x, u, raw):
    """Pure-JAX reference (lax.scan, PyTorch weight layout) for correctness."""
    if u is not None:
        x = jnp.concatenate([x, u], axis=-1)
    b, s, n, f = x.shape
    x_sm = jnp.transpose(x, (1, 0, 2, 3)).reshape(s, b * n, f)
    W_ih, W_hh = raw["weight_ih"], raw["weight_hh"]
    b_ih, b_hh = raw["bias_ih"], raw["bias_hh"]
    W_ro, b_ro = raw["readout_weight"], raw["readout_bias"]
    H = W_hh.shape[1]
    h0 = jnp.zeros((b * n, H), jnp.float32)

    def step(h, x_t):
        gi = x_t @ W_ih.T + b_ih
        gh = h @ W_hh.T + b_hh
        r = jax.nn.sigmoid(gi[:, :H] + gh[:, :H])
        z = jax.nn.sigmoid(gi[:, H:2 * H] + gh[:, H:2 * H])
        n_ = jnp.tanh(gi[:, 2 * H:] + r * gh[:, 2 * H:])
        h_new = (1.0 - z) * n_ + z * h
        return h_new, h_new

    _, hs = jax.lax.scan(step, h0, x_sm)
    out_sm = hs @ W_ro.T + b_ro
    return out_sm.reshape(s, b, n, -1).transpose(1, 0, 2, 3)


if __name__ == "__main__":
    # Module config: input_size=4, exog_size=3, hidden_size=32, output_size=8,
    # n_layers=1, cell='gru', dropout=0.0 (no-op for 1 layer).
    b, s, n = 2, 8, 4
    input_size, exog_size, hidden_size, output_size = 4, 3, 32, 8
    F = input_size + exog_size
    H, O = hidden_size, output_size

    key = jax.random.PRNGKey(0)
    ks = jax.random.split(key, 8)
    scale = 1.0 / jnp.sqrt(hidden_size)
    # PyTorch nn.GRU / nn.Linear layout, gate order (r, z, n).
    raw = {
        "weight_ih": jax.random.uniform(ks[0], (3 * H, F), jnp.float32, -scale, scale),
        "weight_hh": jax.random.uniform(ks[1], (3 * H, H), jnp.float32, -scale, scale),
        "bias_ih": jax.random.uniform(ks[2], (3 * H,), jnp.float32, -scale, scale),
        "bias_hh": jax.random.uniform(ks[3], (3 * H,), jnp.float32, -scale, scale),
        "readout_weight": jax.random.uniform(ks[4], (O, H), jnp.float32, -scale, scale),
        "readout_bias": jax.random.uniform(ks[5], (O,), jnp.float32, -scale, scale),
    }
    x = jax.random.normal(ks[6], (b, s, n, input_size), jnp.float32)
    u = jax.random.normal(ks[7], (b, s, n, exog_size), jnp.float32)

    params = prepare_params(raw)

    out = jax.block_until_ready(rnn_forward(x, u, params))
    assert out.shape == (b, s, n, O), out.shape

    ref = jax.block_until_ready(rnn_reference(x, u, raw))
    max_err = float(jnp.abs(out - ref).max())
    assert jnp.allclose(out, ref, atol=1e-5, rtol=1e-5), max_err

    out_last = jax.block_until_ready(
        rnn_forward(x, u, params, return_only_last_state=True))
    assert out_last.shape == (b, n, O), out_last.shape
    assert jnp.allclose(out_last, ref[:, -1], atol=1e-5, rtol=1e-5)

    print("KERNEL_OK")
</pallas_src>

<mosaic_0001>
module attributes {stable_mosaic.version = 11 : i64} {
  func.func @gru_readout_kernel(%arg0: i32, %arg1: i32, %arg2: memref<8x7x128xf32, #tpu.memory_space<vmem>>, %arg3: memref<96x7xf32, #tpu.memory_space<vmem>>, %arg4: memref<96x32xf32, #tpu.memory_space<vmem>>, %arg5: memref<96x1xf32, #tpu.memory_space<vmem>>, %arg6: memref<32x1xf32, #tpu.memory_space<vmem>>, %arg7: memref<8x32xf32, #tpu.memory_space<vmem>>, %arg8: memref<8x1xf32, #tpu.memory_space<vmem>>, %arg9: memref<8x8x128xf32, #tpu.memory_space<vmem>>, %arg10: memref<32x128xf32, #tpu.memory_space<vmem>>, %arg11: memref<8x96x128xf32, #tpu.memory_space<vmem>>, %arg12: memref<8x32x128xf32, #tpu.memory_space<vmem>>) attributes {dimension_semantics = [#tpu.dimension_semantics<parallel>, #tpu.dimension_semantics<arbitrary>], iteration_bounds = array<i64: 1, 1>, scalar_prefetch = 0 : i64, scratch_operands = 3 : i64, tpu.core_type = #tpu.core_type<tc>, window_params = [{transform_indices = @transform_0, window_bounds = array<i64: 8, 7, 128>}, {pipeline_mode = #tpu.pipeline_mode<synchronous>, transform_indices = @transform_1, window_bounds = array<i64: 96, 7>}, {pipeline_mode = #tpu.pipeline_mode<synchronous>, transform_indices = @transform_2, window_bounds = array<i64: 96, 32>}, {pipeline_mode = #tpu.pipeline_mode<synchronous>, transform_indices = @transform_3, window_bounds = array<i64: 96, 1>}, {pipeline_mode = #tpu.pipeline_mode<synchronous>, transform_indices = @transform_4, window_bounds = array<i64: 32, 1>}, {pipeline_mode = #tpu.pipeline_mode<synchronous>, transform_indices = @transform_5, window_bounds = array<i64: 8, 32>}, {pipeline_mode = #tpu.pipeline_mode<synchronous>, transform_indices = @transform_6, window_bounds = array<i64: 8, 1>}, {transform_indices = @transform_7, window_bounds = array<i64: 8, 8, 128>}]} {
    %c0_i32 = arith.constant 0 : i32
    %0 = arith.cmpi eq, %arg1, %c0_i32 : i32
    %1 = arith.extui %0 : i1 to i32
    %c0_i32_0 = arith.constant 0 : i32
    %2 = arith.cmpi ne, %1, %c0_i32_0 : i32
    scf.if %2 {
      %cst_120 = arith.constant 0.000000e+00 : f32
      %317 = vector.broadcast %cst_120 : f32 to vector<32x128xf32>
      %c0_121 = arith.constant 0 : index
      %c0_122 = arith.constant 0 : index
      %318 = vector.load %arg10[%c0_121, %c0_122] : memref<32x128xf32, #tpu.memory_space<vmem>>, vector<32x128xf32>
      tpu.vector_store %arg10[%c0_121, %c0_122], %317 {strides = array<i32>} : memref<32x128xf32, #tpu.memory_space<vmem>>, vector<32x128xf32>,
    } else {
    }
    %c0 = arith.constant 0 : index
    %c0_1 = arith.constant 0 : index
    %3 = vector.load %arg3[%c0, %c0_1] : memref<96x7xf32, #tpu.memory_space<vmem>>, vector<96x7xf32>
    %c0_2 = arith.constant 0 : index
    %c0_3 = arith.constant 0 : index
    %4 = vector.load %arg4[%c0_2, %c0_3] : memref<96x32xf32, #tpu.memory_space<vmem>>, vector<96x32xf32>
    %c0_4 = arith.constant 0 : index
    %c0_5 = arith.constant 0 : index
    %5 = vector.load %arg5[%c0_4, %c0_5] : memref<96x1xf32, #tpu.memory_space<vmem>>, vector<96x1xf32>
    %c0_i32_6 = arith.constant 0 : i32
    %6 = arith.index_cast %c0_i32_6 : i32 to index
    %c0_7 = arith.constant 0 : index
    %c0_8 = arith.constant 0 : index
    %7 = vector.load %arg2[%6, %c0_7, %c0_8] : memref<8x7x128xf32, #tpu.memory_space<vmem>>, vector<1x7x128xf32>
    %8 = vector.shape_cast %7 : vector<1x7x128xf32> to vector<7x128xf32>
    %cst = arith.constant dense<0.000000e+00> : vector<96x128xf32>
    %9 = tpu.matmul %3, %8, %cst {dimension_numbers = #tpu.dot_dimension_numbers<[1], [0], [0], [1], [0, 0, 1, 1], [], []>} : vector<96x7xf32>, vector<7x128xf32>, vector<96x128xf32> -> vector<96x128xf32>
    %10 = vector.broadcast %5 : vector<96x1xf32> to vector<96x128xf32>
    %11 = arith.addf %9, %10 : vector<96x128xf32>
    %12 = arith.index_cast %c0_i32_6 : i32 to index
    %c0_9 = arith.constant 0 : index
    %c0_10 = arith.constant 0 : index
    %13 = vector.load %arg11[%12, %c0_9, %c0_10] : memref<8x96x128xf32, #tpu.memory_space<vmem>>, vector<1x96x128xf32>
    %14 = vector.shape_cast %13 : vector<1x96x128xf32> to vector<96x128xf32>
    %15 = vector.shape_cast %11 : vector<96x128xf32> to vector<1x96x128xf32>
    tpu.vector_store %arg11[%12, %c0_9, %c0_10], %15 {strides = array<i32>} : memref<8x96x128xf32, #tpu.memory_space<vmem>>, vector<1x96x128xf32>,
    %c1_i32 = arith.constant 1 : i32
    %16 = arith.index_cast %c1_i32 : i32 to index
    %c0_11 = arith.constant 0 : index
    %c0_12 = arith.constant 0 : index
    %17 = vector.load %arg2[%16, %c0_11, %c0_12] : memref<8x7x128xf32, #tpu.memory_space<vmem>>, vector<1x7x128xf32>
    %18 = vector.shape_cast %17 : vector<1x7x128xf32> to vector<7x128xf32>
    %cst_13 = arith.constant dense<0.000000e+00> : vector<96x128xf32>
    %19 = tpu.matmul %3, %18, %cst_13 {dimension_numbers = #tpu.dot_dimension_numbers<[1], [0], [0], [1], [0, 0, 1, 1], [], []>} : vector<96x7xf32>, vector<7x128xf32>, vector<96x128xf32> -> vector<96x128xf32>
    %20 = vector.broadcast %5 : vector<96x1xf32> to vector<96x128xf32>
    %21 = arith.addf %19, %20 : vector<96x128xf32>
    %22 = arith.index_cast %c1_i32 : i32 to index
    %c0_14 = arith.constant 0 : index
    %c0_15 = arith.constant 0 : index
    %23 = vector.load %arg11[%22, %c0_14, %c0_15] : memref<8x96x128xf32, #tpu.memory_space<vmem>>, vector<1x96x128xf32>
    %24 = vector.shape_cast %23 : vector<1x96x128xf32> to vector<96x128xf32>
    %25 = vector.shape_cast %21 : vector<96x128xf32> to vector<1x96x128xf32>
    tpu.vector_store %arg11[%22, %c0_14, %c0_15], %25 {strides = array<i32>} : memref<8x96x128xf32, #tpu.memory_space<vmem>>, vector<1x96x128xf32>,
    %c2_i32 = arith.constant 2 : i32
    %26 = arith.index_cast %c2_i32 : i32 to index
    %c0_16 = arith.constant 0 : index
    %c0_17 = arith.constant 0 : index
    %27 = vector.load %arg2[%26, %c0_16, %c0_17] : memref<8x7x128xf32, #tpu.memory_space<vmem>>, vector<1x7x128xf32>
    %28 = vector.shape_cast %27 : vector<1x7x128xf32> to vector<7x128xf32>
    %cst_18 = arith.constant dense<0.000000e+00> : vector<96x128xf32>
    %29 = tpu.matmul %3, %28, %cst_18 {dimension_numbers = #tpu.dot_dimension_numbers<[1], [0], [0], [1], [0, 0, 1, 1], [], []>} : vector<96x7xf32>, vector<7x128xf32>, vector<96x128xf32> -> vector<96x128xf32>
    %30 = vector.broadcast %5 : vector<96x1xf32> to vector<96x128xf32>
    %31 = arith.addf %29, %30 : vector<96x128xf32>
    %32 = arith.index_cast %c2_i32 : i32 to index
    %c0_19 = arith.constant 0 : index
    %c0_20 = arith.constant 0 : index
    %33 = vector.load %arg11[%32, %c0_19, %c0_20] : memref<8x96x128xf32, #tpu.memory_space<vmem>>, vector<1x96x128xf32>
    %34 = vector.shape_cast %33 : vector<1x96x128xf32> to vector<96x128xf32>
    %35 = vector.shape_cast %31 : vector<96x128xf32> to vector<1x96x128xf32>
    tpu.vector_store %arg11[%32, %c0_19, %c0_20], %35 {strides = array<i32>} : memref<8x96x128xf32, #tpu.memory_space<vmem>>, vector<1x96x128xf32>,
    %c3_i32 = arith.constant 3 : i32
    %36 = arith.index_cast %c3_i32 : i32 to index
    %c0_21 = arith.constant 0 : index
    %c0_22 = arith.constant 0 : index
    %37 = vector.load %arg2[%36, %c0_21, %c0_22] : memref<8x7x128xf32, #tpu.memory_space<vmem>>, vector<1x7x128xf32>
    %38 = vector.shape_cast %37 : vector<1x7x128xf32> to vector<7x128xf32>
    %cst_23 = arith.constant dense<0.000000e+00> : vector<96x128xf32>
    %39 = tpu.matmul %3, %38, %cst_23 {dimension_numbers = #tpu.dot_dimension_numbers<[1], [0], [0], [1], [0, 0, 1, 1], [], []>} : vector<96x7xf32>, vector<7x128xf32>, vector<96x128xf32> -> vector<96x128xf32>
    %40 = vector.broadcast %5 : vector<96x1xf32> to vector<96x128xf32>
    %41 = arith.addf %39, %40 : vector<96x128xf32>
    %42 = arith.index_cast %c3_i32 : i32 to index
    %c0_24 = arith.constant 0 : index
    %c0_25 = arith.constant 0 : index
    %43 = vector.load %arg11[%42, %c0_24, %c0_25] : memref<8x96x128xf32, #tpu.memory_space<vmem>>, vector<1x96x128xf32>
    %44 = vector.shape_cast %43 : vector<1x96x128xf32> to vector<96x128xf32>
    %45 = vector.shape_cast %41 : vector<96x128xf32> to vector<1x96x128xf32>
    tpu.vector_store %arg11[%42, %c0_24, %c0_25], %45 {strides = array<i32>} : memref<8x96x128xf32, #tpu.memory_space<vmem>>, vector<1x96x128xf32>,
    %c4_i32 = arith.constant 4 : i32
    %46 = arith.index_cast %c4_i32 : i32 to index
    %c0_26 = arith.constant 0 : index
    %c0_27 = arith.constant 0 : index
    %47 = vector.load %arg2[%46, %c0_26, %c0_27] : memref<8x7x128xf32, #tpu.memory_space<vmem>>, vector<1x7x128xf32>
    %48 = vector.shape_cast %47 : vector<1x7x128xf32> to vector<7x128xf32>
    %cst_28 = arith.constant dense<0.000000e+00> : vector<96x128xf32>
    %49 = tpu.matmul %3, %48, %cst_28 {dimension_numbers = #tpu.dot_dimension_numbers<[1], [0], [0], [1], [0, 0, 1, 1], [], []>} : vector<96x7xf32>, vector<7x128xf32>, vector<96x128xf32> -> vector<96x128xf32>
    %50 = vector.broadcast %5 : vector<96x1xf32> to vector<96x128xf32>
    %51 = arith.addf %49, %50 : vector<96x128xf32>
    %52 = arith.index_cast %c4_i32 : i32 to index
    %c0_29 = arith.constant 0 : index
    %c0_30 = arith.constant 0 : index
    %53 = vector.load %arg11[%52, %c0_29, %c0_30] : memref<8x96x128xf32, #tpu.memory_space<vmem>>, vector<1x96x128xf32>
    %54 = vector.shape_cast %53 : vector<1x96x128xf32> to vector<96x128xf32>
    %55 = vector.shape_cast %51 : vector<96x128xf32> to vector<1x96x128xf32>
    tpu.vector_store %arg11[%52, %c0_29, %c0_30], %55 {strides = array<i32>} : memref<8x96x128xf32, #tpu.memory_space<vmem>>, vector<1x96x128xf32>,
    %c5_i32 = arith.constant 5 : i32
    %56 = arith.index_cast %c5_i32 : i32 to index
    %c0_31 = arith.constant 0 : index
    %c0_32 = arith.constant 0 : index
    %57 = vector.load %arg2[%56, %c0_31, %c0_32] : memref<8x7x128xf32, #tpu.memory_space<vmem>>, vector<1x7x128xf32>
    %58 = vector.shape_cast %57 : vector<1x7x128xf32> to vector<7x128xf32>
    %cst_33 = arith.constant dense<0.000000e+00> : vector<96x128xf32>
    %59 = tpu.matmul %3, %58, %cst_33 {dimension_numbers = #tpu.dot_dimension_numbers<[1], [0], [0], [1], [0, 0, 1, 1], [], []>} : vector<96x7xf32>, vector<7x128xf32>, vector<96x128xf32> -> vector<96x128xf32>
    %60 = vector.broadcast %5 : vector<96x1xf32> to vector<96x128xf32>
    %61 = arith.addf %59, %60 : vector<96x128xf32>
    %62 = arith.index_cast %c5_i32 : i32 to index
    %c0_34 = arith.constant 0 : index
    %c0_35 = arith.constant 0 : index
    %63 = vector.load %arg11[%62, %c0_34, %c0_35] : memref<8x96x128xf32, #tpu.memory_space<vmem>>, vector<1x96x128xf32>
    %64 = vector.shape_cast %63 : vector<1x96x128xf32> to vector<96x128xf32>
    %65 = vector.shape_cast %61 : vector<96x128xf32> to vector<1x96x128xf32>
    tpu.vector_store %arg11[%62, %c0_34, %c0_35], %65 {strides = array<i32>} : memref<8x96x128xf32, #tpu.memory_space<vmem>>, vector<1x96x128xf32>,
    %c6_i32 = arith.constant 6 : i32
    %66 = arith.index_cast %c6_i32 : i32 to index
    %c0_36 = arith.constant 0 : index
    %c0_37 = arith.constant 0 : index
    %67 = vector.load %arg2[%66, %c0_36, %c0_37] : memref<8x7x128xf32, #tpu.memory_space<vmem>>, vector<1x7x128xf32>
    %68 = vector.shape_cast %67 : vector<1x7x128xf32> to vector<7x128xf32>
    %cst_38 = arith.constant dense<0.000000e+00> : vector<96x128xf32>
    %69 = tpu.matmul %3, %68, %cst_38 {dimension_numbers = #tpu.dot_dimension_numbers<[1], [0], [0], [1], [0, 0, 1, 1], [], []>} : vector<96x7xf32>, vector<7x128xf32>, vector<96x128xf32> -> vector<96x128xf32>
    %70 = vector.broadcast %5 : vector<96x1xf32> to vector<96x128xf32>
    %71 = arith.addf %69, %70 : vector<96x128xf32>
    %72 = arith.index_cast %c6_i32 : i32 to index
    %c0_39 = arith.constant 0 : index
    %c0_40 = arith.constant 0 : index
    %73 = vector.load %arg11[%72, %c0_39, %c0_40] : memref<8x96x128xf32, #tpu.memory_space<vmem>>, vector<1x96x128xf32>
    %74 = vector.shape_cast %73 : vector<1x96x128xf32> to vector<96x128xf32>
    %75 = vector.shape_cast %71 : vector<96x128xf32> to vector<1x96x128xf32>
    tpu.vector_store %arg11[%72, %c0_39, %c0_40], %75 {strides = array<i32>} : memref<8x96x128xf32, #tpu.memory_space<vmem>>, vector<1x96x128xf32>,
    %c7_i32 = arith.constant 7 : i32
    %76 = arith.index_cast %c7_i32 : i32 to index
    %c0_41 = arith.constant 0 : index
    %c0_42 = arith.constant 0 : index
    %77 = vector.load %arg2[%76, %c0_41, %c0_42] : memref<8x7x128xf32, #tpu.memory_space<vmem>>, vector<1x7x128xf32>
    %78 = vector.shape_cast %77 : vector<1x7x128xf32> to vector<7x128xf32>
    %cst_43 = arith.constant dense<0.000000e+00> : vector<96x128xf32>
    %79 = tpu.matmul %3, %78, %cst_43 {dimension_numbers = #tpu.dot_dimension_numbers<[1], [0], [0], [1], [0, 0, 1, 1], [], []>} : vector<96x7xf32>, vector<7x128xf32>, vector<96x128xf32> -> vector<96x128xf32>
    %80 = vector.broadcast %5 : vector<96x1xf32> to vector<96x128xf32>
    %81 = arith.addf %79, %80 : vector<96x128xf32>
    %82 = arith.index_cast %c7_i32 : i32 to index
    %c0_44 = arith.constant 0 : index
    %c0_45 = arith.constant 0 : index
    %83 = vector.load %arg11[%82, %c0_44, %c0_45] : memref<8x96x128xf32, #tpu.memory_space<vmem>>, vector<1x96x128xf32>
    %84 = vector.shape_cast %83 : vector<1x96x128xf32> to vector<96x128xf32>
    %85 = vector.shape_cast %81 : vector<96x128xf32> to vector<1x96x128xf32>
    tpu.vector_store %arg11[%82, %c0_44, %c0_45], %85 {strides = array<i32>} : memref<8x96x128xf32, #tpu.memory_space<vmem>>, vector<1x96x128xf32>,
    %c8_i32 = arith.constant 8 : i32
    %c0_46 = arith.constant 0 : index
    %c0_47 = arith.constant 0 : index
    %86 = vector.load %arg6[%c0_46, %c0_47] : memref<32x1xf32, #tpu.memory_space<vmem>>, vector<32x1xf32>
    %87 = vector.shape_cast %86 : vector<32x1xf32> to vector<32x1xf32>
    %88 = vector.broadcast %87 : vector<32x1xf32> to vector<32x128xf32>
    %c0_48 = arith.constant 0 : index
    %c0_49 = arith.constant 0 : index
    %89 = vector.load %arg10[%c0_48, %c0_49] : memref<32x128xf32, #tpu.memory_space<vmem>>, vector<32x128xf32>
    %c0_i32_50 = arith.constant 0 : i32
    %90 = arith.index_cast %c0_i32_50 : i32 to index
    %c0_51 = arith.constant 0 : index
    %c0_52 = arith.constant 0 : index
    %91 = vector.load %arg11[%90, %c0_51, %c0_52] : memref<8x96x128xf32, #tpu.memory_space<vmem>>, vector<1x96x128xf32>
    %92 = vector.shape_cast %91 : vector<1x96x128xf32> to vector<96x128xf32>
    %cst_53 = arith.constant dense<0.000000e+00> : vector<96x128xf32>
    %93 = tpu.matmul %4, %89, %cst_53 {dimension_numbers = #tpu.dot_dimension_numbers<[1], [0], [0], [1], [0, 0, 1, 1], [], []>} : vector<96x32xf32>, vector<32x128xf32>, vector<96x128xf32> -> vector<96x128xf32>
    %94 = vector.extract_strided_slice %92 {offsets = [0, 0], sizes = [64, 128], strides = [1, 1]} : vector<96x128xf32> to vector<64x128xf32>
    %95 = vector.extract_strided_slice %93 {offsets = [0, 0], sizes = [64, 128], strides = [1, 1]} : vector<96x128xf32> to vector<64x128xf32>
    %96 = arith.addf %94, %95 : vector<64x128xf32>
    %97 = arith.negf %96 : vector<64x128xf32>
    %98 = math.exp %97 : vector<64x128xf32>
    %cst_54 = arith.constant 1.000000e+00 : f32
    %99 = vector.broadcast %cst_54 : f32 to vector<64x128xf32>
    %100 = arith.addf %99, %98 : vector<64x128xf32>
    %101 = arith.divf %99, %100 : vector<64x128xf32>
    %102 = vector.extract_strided_slice %101 {offsets = [0, 0], sizes = [32, 128], strides = [1, 1]} : vector<64x128xf32> to vector<32x128xf32>
    %103 = vector.extract_strided_slice %101 {offsets = [32, 0], sizes = [32, 128], strides = [1, 1]} : vector<64x128xf32> to vector<32x128xf32>
    %104 = vector.extract_strided_slice %92 {offsets = [64, 0], sizes = [32, 128], strides = [1, 1]} : vector<96x128xf32> to vector<32x128xf32>
    %105 = vector.extract_strided_slice %93 {offsets = [64, 0], sizes = [32, 128], strides = [1, 1]} : vector<96x128xf32> to vector<32x128xf32>
    %106 = arith.addf %105, %88 : vector<32x128xf32>
    %107 = arith.mulf %102, %106 : vector<32x128xf32>
    %108 = arith.addf %104, %107 : vector<32x128xf32>
    %109 = math.tanh %108 : vector<32x128xf32>
    %110 = arith.subf %89, %109 : vector<32x128xf32>
    %111 = arith.mulf %103, %110 : vector<32x128xf32>
    %112 = arith.addf %109, %111 : vector<32x128xf32>
    %113 = arith.index_cast %c0_i32_50 : i32 to index
    %c0_55 = arith.constant 0 : index
    %c0_56 = arith.constant 0 : index
    %114 = vector.load %arg12[%113, %c0_55, %c0_56] : memref<8x32x128xf32, #tpu.memory_space<vmem>>, vector<1x32x128xf32>
    %115 = vector.shape_cast %114 : vector<1x32x128xf32> to vector<32x128xf32>
    %116 = vector.shape_cast %112 : vector<32x128xf32> to vector<1x32x128xf32>
    tpu.vector_store %arg12[%113, %c0_55, %c0_56], %116 {strides = array<i32>} : memref<8x32x128xf32, #tpu.memory_space<vmem>>, vector<1x32x128xf32>,
    %c1_i32_57 = arith.constant 1 : i32
    %117 = arith.index_cast %c1_i32_57 : i32 to index
    %c0_58 = arith.constant 0 : index
    %c0_59 = arith.constant 0 : index
    %118 = vector.load %arg11[%117, %c0_58, %c0_59] : memref<8x96x128xf32, #tpu.memory_space<vmem>>, vector<1x96x128xf32>
    %119 = vector.shape_cast %118 : vector<1x96x128xf32> to vector<96x128xf32>
    %cst_60 = arith.constant dense<0.000000e+00> : vector<96x128xf32>
    %120 = tpu.matmul %4, %112, %cst_60 {dimension_numbers = #tpu.dot_dimension_numbers<[1], [0], [0], [1], [0, 0, 1, 1], [], []>} : vector<96x32xf32>, vector<32x128xf32>, vector<96x128xf32> -> vector<96x128xf32>
    %121 = vector.extract_strided_slice %119 {offsets = [0, 0], sizes = [64, 128], strides = [1, 1]} : vector<96x128xf32> to vector<64x128xf32>
    %122 = vector.extract_strided_slice %120 {offsets = [0, 0], sizes = [64, 128], strides = [1, 1]} : vector<96x128xf32> to vector<64x128xf32>
    %123 = arith.addf %121, %122 : vector<64x128xf32>
    %124 = arith.negf %123 : vector<64x128xf32>
    %125 = math.exp %124 : vector<64x128xf32>
    %cst_61 = arith.constant 1.000000e+00 : f32
    %126 = vector.broadcast %cst_61 : f32 to vector<64x128xf32>
    %127 = arith.addf %126, %125 : vector<64x128xf32>
    %128 = arith.divf %126, %127 : vector<64x128xf32>
    %129 = vector.extract_strided_slice %128 {offsets = [0, 0], sizes = [32, 128], strides = [1, 1]} : vector<64x128xf32> to vector<32x128xf32>
    %130 = vector.extract_strided_slice %128 {offsets = [32, 0], sizes = [32, 128], strides = [1, 1]} : vector<64x128xf32> to vector<32x128xf32>
    %131 = vector.extract_strided_slice %119 {offsets = [64, 0], sizes = [32, 128], strides = [1, 1]} : vector<96x128xf32> to vector<32x128xf32>
    %132 = vector.extract_strided_slice %120 {offsets = [64, 0], sizes = [32, 128], strides = [1, 1]} : vector<96x128xf32> to vector<32x128xf32>
    %133 = arith.addf %132, %88 : vector<32x128xf32>
    %134 = arith.mulf %129, %133 : vector<32x128xf32>
    %135 = arith.addf %131, %134 : vector<32x128xf32>
    %136 = math.tanh %135 : vector<32x128xf32>
    %137 = arith.subf %112, %136 : vector<32x128xf32>
    %138 = arith.mulf %130, %137 : vector<32x128xf32>
    %139 = arith.addf %136, %138 : vector<32x128xf32>
    %140 = arith.index_cast %c1_i32_57 : i32 to index
    %c0_62 = arith.constant 0 : index
    %c0_63 = arith.constant 0 : index
    %141 = vector.load %arg12[%140, %c0_62, %c0_63] : memref<8x32x128xf32, #tpu.memory_space<vmem>>, vector<1x32x128xf32>
    %142 = vector.shape_cast %141 : vector<1x32x128xf32> to vector<32x128xf32>
    %143 = vector.shape_cast %139 : vector<32x128xf32> to vector<1x32x128xf32>
    tpu.vector_store %arg12[%140, %c0_62, %c0_63], %143 {strides = array<i32>} : memref<8x32x128xf32, #tpu.memory_space<vmem>>, vector<1x32x128xf32>,
    %c2_i32_64 = arith.constant 2 : i32
    %144 = arith.index_cast %c2_i32_64 : i32 to index
    %c0_65 = arith.constant 0 : index
    %c0_66 = arith.constant 0 : index
    %145 = vector.load %arg11[%144, %c0_65, %c0_66] : memref<8x96x128xf32, #tpu.memory_space<vmem>>, vector<1x96x128xf32>
    %146 = vector.shape_cast %145 : vector<1x96x128xf32> to vector<96x128xf32>
    %cst_67 = arith.constant dense<0.000000e+00> : vector<96x128xf32>
    %147 = tpu.matmul %4, %139, %cst_67 {dimension_numbers = #tpu.dot_dimension_numbers<[1], [0], [0], [1], [0, 0, 1, 1], [], []>} : vector<96x32xf32>, vector<32x128xf32>, vector<96x128xf32> -> vector<96x128xf32>
    %148 = vector.extract_strided_slice %146 {offsets = [0, 0], sizes = [64, 128], strides = [1, 1]} : vector<96x128xf32> to vector<64x128xf32>
    %149 = vector.extract_strided_slice %147 {offsets = [0, 0], sizes = [64, 128], strides = [1, 1]} : vector<96x128xf32> to vector<64x128xf32>
    %150 = arith.addf %148, %149 : vector<64x128xf32>
    %151 = arith.negf %150 : vector<64x128xf32>
    %152 = math.exp %151 : vector<64x128xf32>
    %cst_68 = arith.constant 1.000000e+00 : f32
    %153 = vector.broadcast %cst_68 : f32 to vector<64x128xf32>
    %154 = arith.addf %153, %152 : vector<64x128xf32>
    %155 = arith.divf %153, %154 : vector<64x128xf32>
    %156 = vector.extract_strided_slice %155 {offsets = [0, 0], sizes = [32, 128], strides = [1, 1]} : vector<64x128xf32> to vector<32x128xf32>
    %157 = vector.extract_strided_slice %155 {offsets = [32, 0], sizes = [32, 128], strides = [1, 1]} : vector<64x128xf32> to vector<32x128xf32>
    %158 = vector.extract_strided_slice %146 {offsets = [64, 0], sizes = [32, 128], strides = [1, 1]} : vector<96x128xf32> to vector<32x128xf32>
    %159 = vector.extract_strided_slice %147 {offsets = [64, 0], sizes = [32, 128], strides = [1, 1]} : vector<96x128xf32> to vector<32x128xf32>
    %160 = arith.addf %159, %88 : vector<32x128xf32>
    %161 = arith.mulf %156, %160 : vector<32x128xf32>
    %162 = arith.addf %158, %161 : vector<32x128xf32>
    %163 = math.tanh %162 : vector<32x128xf32>
    %164 = arith.subf %139, %163 : vector<32x128xf32>
    %165 = arith.mulf %157, %164 : vector<32x128xf32>
    %166 = arith.addf %163, %165 : vector<32x128xf32>
    %167 = arith.index_cast %c2_i32_64 : i32 to index
    %c0_69 = arith.constant 0 : index
    %c0_70 = arith.constant 0 : index
    %168 = vector.load %arg12[%167, %c0_69, %c0_70] : memref<8x32x128xf32, #tpu.memory_space<vmem>>, vector<1x32x128xf32>
    %169 = vector.shape_cast %168 : vector<1x32x128xf32> to vector<32x128xf32>
    %170 = vector.shape_cast %166 : vector<32x128xf32> to vector<1x32x128xf32>
    tpu.vector_store %arg12[%167, %c0_69, %c0_70], %170 {strides = array<i32>} : memref<8x32x128xf32, #tpu.memory_space<vmem>>, vector<1x32x128xf32>,
    %c3_i32_71 = arith.constant 3 : i32
    %171 = arith.index_cast %c3_i32_71 : i32 to index
    %c0_72 = arith.constant 0 : index
    %c0_73 = arith.constant 0 : index
    %172 = vector.load %arg11[%171, %c0_72, %c0_73] : memref<8x96x128xf32, #tpu.memory_space<vmem>>, vector<1x96x128xf32>
    %173 = vector.shape_cast %172 : vector<1x96x128xf32> to vector<96x128xf32>
    %cst_74 = arith.constant dense<0.000000e+00> : vector<96x128xf32>
    %174 = tpu.matmul %4, %166, %cst_74 {dimension_numbers = #tpu.dot_dimension_numbers<[1], [0], [0], [1], [0, 0, 1, 1], [], []>} : vector<96x32xf32>, vector<32x128xf32>, vector<96x128xf32> -> vector<96x128xf32>
    %175 = vector.extract_strided_slice %173 {offsets = [0, 0], sizes = [64, 128], strides = [1, 1]} : vector<96x128xf32> to vector<64x128xf32>
    %176 = vector.extract_strided_slice %174 {offsets = [0, 0], sizes = [64, 128], strides = [1, 1]} : vector<96x128xf32> to vector<64x128xf32>
    %177 = arith.addf %175, %176 : vector<64x128xf32>
    %178 = arith.negf %177 : vector<64x128xf32>
    %179 = math.exp %178 : vector<64x128xf32>
    %cst_75 = arith.constant 1.000000e+00 : f32
    %180 = vector.broadcast %cst_75 : f32 to vector<64x128xf32>
    %181 = arith.addf %180, %179 : vector<64x128xf32>
    %182 = arith.divf %180, %181 : vector<64x128xf32>
    %183 = vector.extract_strided_slice %182 {offsets = [0, 0], sizes = [32, 128], strides = [1, 1]} : vector<64x128xf32> to vector<32x128xf32>
    %184 = vector.extract_strided_slice %182 {offsets = [32, 0], sizes = [32, 128], strides = [1, 1]} : vector<64x128xf32> to vector<32x128xf32>
    %185 = vector.extract_strided_slice %173 {offsets = [64, 0], sizes = [32, 128], strides = [1, 1]} : vector<96x128xf32> to vector<32x128xf32>
    %186 = vector.extract_strided_slice %174 {offsets = [64, 0], sizes = [32, 128], strides = [1, 1]} : vector<96x128xf32> to vector<32x128xf32>
    %187 = arith.addf %186, %88 : vector<32x128xf32>
    %188 = arith.mulf %183, %187 : vector<32x128xf32>
    %189 = arith.addf %185, %188 : vector<32x128xf32>
    %190 = math.tanh %189 : vector<32x128xf32>
    %191 = arith.subf %166, %190 : vector<32x128xf32>
    %192 = arith.mulf %184, %191 : vector<32x128xf32>
    %193 = arith.addf %190, %192 : vector<32x128xf32>
    %194 = arith.index_cast %c3_i32_71 : i32 to index
    %c0_76 = arith.constant 0 : index
    %c0_77 = arith.constant 0 : index
    %195 = vector.load %arg12[%194, %c0_76, %c0_77] : memref<8x32x128xf32, #tpu.memory_space<vmem>>, vector<1x32x128xf32>
    %196 = vector.shape_cast %195 : vector<1x32x128xf32> to vector<32x128xf32>
    %197 = vector.shape_cast %193 : vector<32x128xf32> to vector<1x32x128xf32>
    tpu.vector_store %arg12[%194, %c0_76, %c0_77], %197 {strides = array<i32>} : memref<8x32x128xf32, #tpu.memory_space<vmem>>, vector<1x32x128xf32>,
    %c4_i32_78 = arith.constant 4 : i32
    %198 = arith.index_cast %c4_i32_78 : i32 to index
    %c0_79 = arith.constant 0 : index
    %c0_80 = arith.constant 0 : index
    %199 = vector.load %arg11[%198, %c0_79, %c0_80] : memref<8x96x128xf32, #tpu.memory_space<vmem>>, vector<1x96x128xf32>
    %200 = vector.shape_cast %199 : vector<1x96x128xf32> to vector<96x128xf32>
    %cst_81 = arith.constant dense<0.000000e+00> : vector<96x128xf32>
    %201 = tpu.matmul %4, %193, %cst_81 {dimension_numbers = #tpu.dot_dimension_numbers<[1], [0], [0], [1], [0, 0, 1, 1], [], []>} : vector<96x32xf32>, vector<32x128xf32>, vector<96x128xf32> -> vector<96x128xf32>
    %202 = vector.extract_strided_slice %200 {offsets = [0, 0], sizes = [64, 128], strides = [1, 1]} : vector<96x128xf32> to vector<64x128xf32>
    %203 = vector.extract_strided_slice %201 {offsets = [0, 0], sizes = [64, 128], strides = [1, 1]} : vector<96x128xf32> to vector<64x128xf32>
    %204 = arith.addf %202, %203 : vector<64x128xf32>
    %205 = arith.negf %204 : vector<64x128xf32>
    %206 = math.exp %205 : vector<64x128xf32>
    %cst_82 = arith.constant 1.000000e+00 : f32
    %207 = vector.broadcast %cst_82 : f32 to vector<64x128xf32>
    %208 = arith.addf %207, %206 : vector<64x128xf32>
    %209 = arith.divf %207, %208 : vector<64x128xf32>
    %210 = vector.extract_strided_slice %209 {offsets = [0, 0], sizes = [32, 128], strides = [1, 1]} : vector<64x128xf32> to vector<32x128xf32>
    %211 = vector.extract_strided_slice %209 {offsets = [32, 0], sizes = [32, 128], strides = [1, 1]} : vector<64x128xf32> to vector<32x128xf32>
    %212 = vector.extract_strided_slice %200 {offsets = [64, 0], sizes = [32, 128], strides = [1, 1]} : vector<96x128xf32> to vector<32x128xf32>
    %213 = vector.extract_strided_slice %201 {offsets = [64, 0], sizes = [32, 128], strides = [1, 1]} : vector<96x128xf32> to vector<32x128xf32>
    %214 = arith.addf %213, %88 : vector<32x128xf32>
    %215 = arith.mulf %210, %214 : vector<32x128xf32>
    %216 = arith.addf %212, %215 : vector<32x128xf32>
    %217 = math.tanh %216 : vector<32x128xf32>
    %218 = arith.subf %193, %217 : vector<32x128xf32>
    %219 = arith.mulf %211, %218 : vector<32x128xf32>
    %220 = arith.addf %217, %219 : vector<32x128xf32>
    %221 = arith.index_cast %c4_i32_78 : i32 to index
    %c0_83 = arith.constant 0 : index
    %c0_84 = arith.constant 0 : index
    %222 = vector.load %arg12[%221, %c0_83, %c0_84] : memref<8x32x128xf32, #tpu.memory_space<vmem>>, vector<1x32x128xf32>
    %223 = vector.shape_cast %222 : vector<1x32x128xf32> to vector<32x128xf32>
    %224 = vector.shape_cast %220 : vector<32x128xf32> to vector<1x32x128xf32>
    tpu.vector_store %arg12[%221, %c0_83, %c0_84], %224 {strides = array<i32>} : memref<8x32x128xf32, #tpu.memory_space<vmem>>, vector<1x32x128xf32>,
    %c5_i32_85 = arith.constant 5 : i32
    %225 = arith.index_cast %c5_i32_85 : i32 to index
    %c0_86 = arith.constant 0 : index
    %c0_87 = arith.constant 0 : index
    %226 = vector.load %arg11[%225, %c0_86, %c0_87] : memref<8x96x128xf32, #tpu.memory_space<vmem>>, vector<1x96x128xf32>
    %227 = vector.shape_cast %226 : vector<1x96x128xf32> to vector<96x128xf32>
    %cst_88 = arith.constant dense<0.000000e+00> : vector<96x128xf32>
    %228 = tpu.matmul %4, %220, %cst_88 {dimension_numbers = #tpu.dot_dimension_numbers<[1], [0], [0], [1], [0, 0, 1, 1], [], []>} : vector<96x32xf32>, vector<32x128xf32>, vector<96x128xf32> -> vector<96x128xf32>
    %229 = vector.extract_strided_slice %227 {offsets = [0, 0], sizes = [64, 128], strides = [1, 1]} : vector<96x128xf32> to vector<64x128xf32>
    %230 = vector.extract_strided_slice %228 {offsets = [0, 0], sizes = [64, 128], strides = [1, 1]} : vector<96x128xf32> to vector<64x128xf32>
    %231 = arith.addf %229, %230 : vector<64x128xf32>
    %232 = arith.negf %231 : vector<64x128xf32>
    %233 = math.exp %232 : vector<64x128xf32>
    %cst_89 = arith.constant 1.000000e+00 : f32
    %234 = vector.broadcast %cst_89 : f32 to vector<64x128xf32>
    %235 = arith.addf %234, %233 : vector<64x128xf32>
    %236 = arith.divf %234, %235 : vector<64x128xf32>
    %237 = vector.extract_strided_slice %236 {offsets = [0, 0], sizes = [32, 128], strides = [1, 1]} : vector<64x128xf32> to vector<32x128xf32>
    %238 = vector.extract_strided_slice %236 {offsets = [32, 0], sizes = [32, 128], strides = [1, 1]} : vector<64x128xf32> to vector<32x128xf32>
    %239 = vector.extract_strided_slice %227 {offsets = [64, 0], sizes = [32, 128], strides = [1, 1]} : vector<96x128xf32> to vector<32x128xf32>
    %240 = vector.extract_strided_slice %228 {offsets = [64, 0], sizes = [32, 128], strides = [1, 1]} : vector<96x128xf32> to vector<32x128xf32>
    %241 = arith.addf %240, %88 : vector<32x128xf32>
    %242 = arith.mulf %237, %241 : vector<32x128xf32>
    %243 = arith.addf %239, %242 : vector<32x128xf32>
    %244 = math.tanh %243 : vector<32x128xf32>
    %245 = arith.subf %220, %244 : vector<32x128xf32>
    %246 = arith.mulf %238, %245 : vector<32x128xf32>
    %247 = arith.addf %244, %246 : vector<32x128xf32>
    %248 = arith.index_cast %c5_i32_85 : i32 to index
    %c0_90 = arith.constant 0 : index
    %c0_91 = arith.constant 0 : index
    %249 = vector.load %arg12[%248, %c0_90, %c0_91] : memref<8x32x128xf32, #tpu.memory_space<vmem>>, vector<1x32x128xf32>
    %250 = vector.shape_cast %249 : vector<1x32x128xf32> to vector<32x128xf32>
    %251 = vector.shape_cast %247 : vector<32x128xf32> to vector<1x32x128xf32>
    tpu.vector_store %arg12[%248, %c0_90, %c0_91], %251 {strides = array<i32>} : memref<8x32x128xf32, #tpu.memory_space<vmem>>, vector<1x32x128xf32>,
    %c6_i32_92 = arith.constant 6 : i32
    %252 = arith.index_cast %c6_i32_92 : i32 to index
    %c0_93 = arith.constant 0 : index
    %c0_94 = arith.constant 0 : index
    %253 = vector.load %arg11[%252, %c0_93, %c0_94] : memref<8x96x128xf32, #tpu.memory_space<vmem>>, vector<1x96x128xf32>
    %254 = vector.shape_cast %253 : vector<1x96x128xf32> to vector<96x128xf32>
    %cst_95 = arith.constant dense<0.000000e+00> : vector<96x128xf32>
    %255 = tpu.matmul %4, %247, %cst_95 {dimension_numbers = #tpu.dot_dimension_numbers<[1], [0], [0], [1], [0, 0, 1, 1], [], []>} : vector<96x32xf32>, vector<32x128xf32>, vector<96x128xf32> -> vector<96x128xf32>
    %256 = vector.extract_strided_slice %254 {offsets = [0, 0], sizes = [64, 128], strides = [1, 1]} : vector<96x128xf32> to vector<64x128xf32>
    %257 = vector.extract_strided_slice %255 {offsets = [0, 0], sizes = [64, 128], strides = [1, 1]} : vector<96x128xf32> to vector<64x128xf32>
    %258 = arith.addf %256, %257 : vector<64x128xf32>
    %259 = arith.negf %258 : vector<64x128xf32>
    %260 = math.exp %259 : vector<64x128xf32>
    %cst_96 = arith.constant 1.000000e+00 : f32
    %261 = vector.broadcast %cst_96 : f32 to vector<64x128xf32>
    %262 = arith.addf %261, %260 : vector<64x128xf32>
    %263 = arith.divf %261, %262 : vector<64x128xf32>
    %264 = vector.extract_strided_slice %263 {offsets = [0, 0], sizes = [32, 128], strides = [1, 1]} : vector<64x128xf32> to vector<32x128xf32>
    %265 = vector.extract_strided_slice %263 {offsets = [32, 0], sizes = [32, 128], strides = [1, 1]} : vector<64x128xf32> to vector<32x128xf32>
    %266 = vector.extract_strided_slice %254 {offsets = [64, 0], sizes = [32, 128], strides = [1, 1]} : vector<96x128xf32> to vector<32x128xf32>
    %267 = vector.extract_strided_slice %255 {offsets = [64, 0], sizes = [32, 128], strides = [1, 1]} : vector<96x128xf32> to vector<32x128xf32>
    %268 = arith.addf %267, %88 : vector<32x128xf32>
    %269 = arith.mulf %264, %268 : vector<32x128xf32>
    %270 = arith.addf %266, %269 : vector<32x128xf32>
    %271 = math.tanh %270 : vector<32x128xf32>
    %272 = arith.subf %247, %271 : vector<32x128xf32>
    %273 = arith.mulf %265, %272 : vector<32x128xf32>
    %274 = arith.addf %271, %273 : vector<32x128xf32>
    %275 = arith.index_cast %c6_i32_92 : i32 to index
    %c0_97 = arith.constant 0 : index
    %c0_98 = arith.constant 0 : index
    %276 = vector.load %arg12[%275, %c0_97, %c0_98] : memref<8x32x128xf32, #tpu.memory_space<vmem>>, vector<1x32x128xf32>
    %277 = vector.shape_cast %276 : vector<1x32x128xf32> to vector<32x128xf32>
    %278 = vector.shape_cast %274 : vector<32x128xf32> to vector<1x32x128xf32>
    tpu.vector_store %arg12[%275, %c0_97, %c0_98], %278 {strides = array<i32>} : memref<8x32x128xf32, #tpu.memory_space<vmem>>, vector<1x32x128xf32>,
    %c7_i32_99 = arith.constant 7 : i32
    %279 = arith.index_cast %c7_i32_99 : i32 to index
    %c0_100 = arith.constant 0 : index
    %c0_101 = arith.constant 0 : index
    %280 = vector.load %arg11[%279, %c0_100, %c0_101] : memref<8x96x128xf32, #tpu.memory_space<vmem>>, vector<1x96x128xf32>
    %281 = vector.shape_cast %280 : vector<1x96x128xf32> to vector<96x128xf32>
    %cst_102 = arith.constant dense<0.000000e+00> : vector<96x128xf32>
    %282 = tpu.matmul %4, %274, %cst_102 {dimension_numbers = #tpu.dot_dimension_numbers<[1], [0], [0], [1], [0, 0, 1, 1], [], []>} : vector<96x32xf32>, vector<32x128xf32>, vector<96x128xf32> -> vector<96x128xf32>
    %283 = vector.extract_strided_slice %281 {offsets = [0, 0], sizes = [64, 128], strides = [1, 1]} : vector<96x128xf32> to vector<64x128xf32>
    %284 = vector.extract_strided_slice %282 {offsets = [0, 0], sizes = [64, 128], strides = [1, 1]} : vector<96x128xf32> to vector<64x128xf32>
    %285 = arith.addf %283, %284 : vector<64x128xf32>
    %286 = arith.negf %285 : vector<64x128xf32>
    %287 = math.exp %286 : vector<64x128xf32>
    %cst_103 = arith.constant 1.000000e+00 : f32
    %288 = vector.broadcast %cst_103 : f32 to vector<64x128xf32>
    %289 = arith.addf %288, %287 : vector<64x128xf32>
    %290 = arith.divf %288, %289 : vector<64x128xf32>
    %291 = vector.extract_strided_slice %290 {offsets = [0, 0], sizes = [32, 128], strides = [1, 1]} : vector<64x128xf32> to vector<32x128xf32>
    %292 = vector.extract_strided_slice %290 {offsets = [32, 0], sizes = [32, 128], strides = [1, 1]} : vector<64x128xf32> to vector<32x128xf32>
    %293 = vector.extract_strided_slice %281 {offsets = [64, 0], sizes = [32, 128], strides = [1, 1]} : vector<96x128xf32> to vector<32x128xf32>
    %294 = vector.extract_strided_slice %282 {offsets = [64, 0], sizes = [32, 128], strides = [1, 1]} : vector<96x128xf32> to vector<32x128xf32>
    %295 = arith.addf %294, %88 : vector<32x128xf32>
    %296 = arith.mulf %291, %295 : vector<32x128xf32>
    %297 = arith.addf %293, %296 : vector<32x128xf32>
    %298 = math.tanh %297 : vector<32x128xf32>
    %299 = arith.subf %274, %298 : vector<32x128xf32>
    %300 = arith.mulf %292, %299 : vector<32x128xf32>
    %301 = arith.addf %298, %300 : vector<32x128xf32>
    %302 = arith.index_cast %c7_i32_99 : i32 to index
    %c0_104 = arith.constant 0 : index
    %c0_105 = arith.constant 0 : index
    %303 = vector.load %arg12[%302, %c0_104, %c0_105] : memref<8x32x128xf32, #tpu.memory_space<vmem>>, vector<1x32x128xf32>
    %304 = vector.shape_cast %303 : vector<1x32x128xf32> to vector<32x128xf32>
    %305 = vector.shape_cast %301 : vector<32x128xf32> to vector<1x32x128xf32>
    tpu.vector_store %arg12[%302, %c0_104, %c0_105], %305 {strides = array<i32>} : memref<8x32x128xf32, #tpu.memory_space<vmem>>, vector<1x32x128xf32>,
    %c8_i32_106 = arith.constant 8 : i32
    %c0_107 = arith.constant 0 : index
    %c0_108 = arith.constant 0 : index
    %306 = vector.load %arg10[%c0_107, %c0_108] : memref<32x128xf32, #tpu.memory_space<vmem>>, vector<32x128xf32>
    tpu.vector_store %arg10[%c0_107, %c0_108], %301 {strides = array<i32>} : memref<32x128xf32, #tpu.memory_space<vmem>>, vector<32x128xf32>,
    %c0_109 = arith.constant 0 : index
    %c0_110 = arith.constant 0 : index
    %307 = vector.load %arg7[%c0_109, %c0_110] : memref<8x32xf32, #tpu.memory_space<vmem>>, vector<8x32xf32>
    %c0_111 = arith.constant 0 : index
    %c0_112 = arith.constant 0 : index
    %c0_113 = arith.constant 0 : index
    %308 = vector.load %arg12[%c0_111, %c0_112, %c0_113] : memref<8x32x128xf32, #tpu.memory_space<vmem>>, vector<8x32x128xf32>
    %309 = vector.shape_cast %307 : vector<8x32xf32> to vector<1x8x32xf32>
    %310 = vector.broadcast %309 : vector<1x8x32xf32> to vector<8x8x32xf32>
    "tpu.trace_start"() <{level = 10 : i32, message = "toh,thb->tob"}> : () -> ()
    %cst_114 = arith.constant dense<0.000000e+00> : vector<8x8x128xf32>
    %311 = tpu.matmul %310, %308, %cst_114 {dimension_numbers = #tpu.dot_dimension_numbers<[2], [1], [1], [2], [0, 0, 0, 1, 1, 2], [0], [0]>} : vector<8x8x32xf32>, vector<8x32x128xf32>, vector<8x8x128xf32> -> vector<8x8x128xf32>
    "tpu.trace_stop"() : () -> ()
    %c0_115 = arith.constant 0 : index
    %c0_116 = arith.constant 0 : index
    %312 = vector.load %arg8[%c0_115, %c0_116] : memref<8x1xf32, #tpu.memory_space<vmem>>, vector<8x1xf32>
    %313 = vector.shape_cast %312 : vector<8x1xf32> to vector<1x8x1xf32>
    %314 = vector.broadcast %313 : vector<1x8x1xf32> to vector<8x8x128xf32>
    %315 = arith.addf %311, %314 : vector<8x8x128xf32>
    %c0_117 = arith.constant 0 : index
    %c0_118 = arith.constant 0 : index
    %c0_119 = arith.constant 0 : index
    %316 = vector.load %arg9[%c0_117, %c0_118, %c0_119] : memref<8x8x128xf32, #tpu.memory_space<vmem>>, vector<8x8x128xf32>
    tpu.vector_store %arg9[%c0_117, %c0_118, %c0_119], %315 {strides = array<i32>} : memref<8x8x128xf32, #tpu.memory_space<vmem>>, vector<8x8x128xf32>,
    return
  }
  func.func @transform_0(%arg0: i32, %arg1: i32) -> (i32, i32, i32) {
    %c0_i32 = arith.constant 0 : i32
    %c0_i32_0 = arith.constant 0 : i32
    return %arg1, %c0_i32, %arg0 : i32, i32, i32
  }
  func.func @transform_1(%arg0: i32, %arg1: i32) -> (i32, i32) {
    %c0_i32 = arith.constant 0 : i32
    %c0_i32_0 = arith.constant 0 : i32
    %c0_i32_1 = arith.constant 0 : i32
    return %c0_i32, %c0_i32_0 : i32, i32
  }
  func.func @transform_2(%arg0: i32, %arg1: i32) -> (i32, i32) {
    %c0_i32 = arith.constant 0 : i32
    %c0_i32_0 = arith.constant 0 : i32
    %c0_i32_1 = arith.constant 0 : i32
    return %c0_i32, %c0_i32_0 : i32, i32
  }
  func.func @transform_3(%arg0: i32, %arg1: i32) -> (i32, i32) {
    %c0_i32 = arith.constant 0 : i32
    %c0_i32_0 = arith.constant 0 : i32
    %c0_i32_1 = arith.constant 0 : i32
    return %c0_i32, %c0_i32_0 : i32, i32
  }
  func.func @transform_4(%arg0: i32, %arg1: i32) -> (i32, i32) {
    %c0_i32 = arith.constant 0 : i32
    %c0_i32_0 = arith.constant 0 : i32
    %c0_i32_1 = arith.constant 0 : i32
    return %c0_i32, %c0_i32_0 : i32, i32
  }
  func.func @transform_5(%arg0: i32, %arg1: i32) -> (i32, i32) {
    %c0_i32 = arith.constant 0 : i32
    %c0_i32_0 = arith.constant 0 : i32
    %c0_i32_1 = arith.constant 0 : i32
    return %c0_i32, %c0_i32_0 : i32, i32
  }
  func.func @transform_6(%arg0: i32, %arg1: i32) -> (i32, i32) {
    %c0_i32 = arith.constant 0 : i32
    %c0_i32_0 = arith.constant 0 : i32
    %c0_i32_1 = arith.constant 0 : i32
    return %c0_i32, %c0_i32_0 : i32, i32
  }
  func.func @transform_7(%arg0: i32, %arg1: i32) -> (i32, i32, i32) {
    %c0_i32 = arith.constant 0 : i32
    %c0_i32_0 = arith.constant 0 : i32
    return %arg1, %c0_i32, %arg0 : i32, i32, i32
  }
}

</mosaic_0001>

<llo_original>
// kernel: rnn_forward.1
$region0: #{rnn_forward.1}
  #allocation0 [shape = 'u32[]', space=smem, size = 0x4, offset = 0x4, fixed_abs, tag = 'smem constant byte address 0x4 - core index']
  #allocation1 [shape = 'u32[144,128]{1,0:T(1,128)}', space=vmem, size = 0x12000, scoped, tag = 'internal scratch']
  #allocation2 [shape = 'f32[32,128]{1,0:T(8,128)}', space=vmem, size = 0x4000, scoped, tag = 'scratch operand']
  #allocation3 [shape = 'f32[8,96,128]{2,1,0:T(8,128)}', space=vmem, size = 0x60000, scoped, tag = 'scratch operand']
  #allocation4 [shape = 'f32[8,32,128]{2,1,0:T(8,128)}', space=vmem, size = 0x20000, scoped, tag = 'scratch operand']
  %s0 = inlined_call_operand.vmem [shape: f32[8,7,128], index: 0, kind: input, shape index: {}]
  %s1 = inlined_call_operand.vmem [shape: f32[96,7], index: 1, kind: input, shape index: {}]
  %s2 = inlined_call_operand.vmem [shape: f32[96,32], index: 2, kind: input, shape index: {}]
  %s3 = inlined_call_operand.vmem [shape: f32[96,1], index: 3, kind: input, shape index: {}]
  %s4 = inlined_call_operand.vmem [shape: f32[32,1], index: 4, kind: input, shape index: {}]
  %s5 = inlined_call_operand.vmem [shape: f32[8,32], index: 5, kind: input, shape index: {}]
  %s6 = inlined_call_operand.vmem [shape: f32[8,1], index: 6, kind: input, shape index: {}]
  %s7 = inlined_call_operand.vmem [shape: f32[8,8,128], index: 7, kind: output, shape index: {}]
  %s8 = sld [smem:[#allocation0]]
  $region42: #{rnn_forward.1} parent=0
    _
  %s10 = ssub.s32 1, %s8
  %s11 = scalar_select 0, %s10, %s8
  // Predicated region
  $region2: #{rnn_forward.1} parent=0 // pred_check
    _
  $region3: #{rnn_forward.1} parent=0 // pred_check_branch
    %13 = sbr.rel (0) target = $region5
  $region4: #{rnn_forward.1} parent=0 // pred_region
    _
  $region5: #{rnn_forward.1} parent=0 // pred_fallthru
    _
  // Predicated region
  $region6: #{rnn_forward.1} parent=0 // pred_check
    _
  $region7: #{rnn_forward.1} parent=0 // pred_check_branch
    %15 = sbr.rel (0) target = $region9
  $region8: #{rnn_forward.1} parent=0 // pred_region
    _
  $region9: #{rnn_forward.1} parent=0 // pred_fallthru
    _
  // Predicated region
  $region10: #{rnn_forward.1} parent=0 // pred_check
    _
  $region11: #{rnn_forward.1} parent=0 // pred_check_branch
    %17 = sbr.rel (0) target = $region13
  $region12: #{rnn_forward.1} parent=0 // pred_region
    _
  $region13: #{rnn_forward.1} parent=0 // pred_fallthru
    _
  // Predicated region
  $region14: #{rnn_forward.1} parent=0 // pred_check
    _
  $region15: #{rnn_forward.1} parent=0 // pred_check_branch
    %19 = sbr.rel (0) target = $region17
  $region16: #{rnn_forward.1} parent=0 // pred_region
    _
  $region17: #{rnn_forward.1} parent=0 // pred_fallthru
    _
  // Predicated region
  $region18: #{rnn_forward.1} parent=0 // pred_check
    _
  $region19: #{rnn_forward.1} parent=0 // pred_check_branch
    %21 = sbr.rel (0) target = $region21
  $region20: #{rnn_forward.1} parent=0 // pred_region
    _
  $region21: #{rnn_forward.1} parent=0 // pred_fallthru
    _
  // Predicated region
  $region22: #{rnn_forward.1} parent=0 // pred_check
    _
  $region23: #{rnn_forward.1} parent=0 // pred_check_branch
    %23 = sbr.rel (0) target = $region25
  $region24: #{rnn_forward.1} parent=0 // pred_region
    _
  $region25: #{rnn_forward.1} parent=0 // pred_fallthru
    _
  // Predicated region
  $region26: #{rnn_forward.1} parent=0 // pred_check
    _
  $region27: #{rnn_forward.1} parent=0 // pred_check_branch
    %25 = sbr.rel (0) target = $region29
  $region28: #{rnn_forward.1} parent=0 // pred_region
    _
  $region29: #{rnn_forward.1} parent=0 // pred_fallthru
    _
  %p26 = scmp.eq.s32.totalorder 0, 0
  // Predicated region
  $region30: #{rnn_forward.1} parent=0 // pred_check
    %p27 = pneg %p26
  $region31: #{rnn_forward.1} parent=0 // pred_check_branch
    %29 = sbr.rel (%p27) target = $region33
  $region32: #{rnn_forward.1} parent=0 // pred_region
    %30 = vst [vmem:[#allocation2] sm:$0xff] 0.0
    %31 = vst [vmem:[#allocation2 + $0x8] sm:$0xff] 0.0
    %32 = vst [vmem:[#allocation2 + $0x10] sm:$0xff] 0.0
    %33 = vst [vmem:[#allocation2 + $0x18] sm:$0xff] 0.0
  $region33: #{rnn_forward.1} parent=0 // pred_fallthru
    _
  %v34 = vld [vmem:[%s1] sm:$0xff]
  %v35 = vld [vmem:[%s1 + $0x8] sm:$0xff]
  %v36 = vld [vmem:[%s1 + $0x10] sm:$0xff]
  %v37 = vld [vmem:[%s1 + $0x18] sm:$0xff]
  %v38 = vld [vmem:[%s1 + $0x20] sm:$0xff]
  %v39 = vld [vmem:[%s1 + $0x28] sm:$0xff]
  %v40 = vld [vmem:[%s1 + $0x30] sm:$0xff]
  %v41 = vld [vmem:[%s1 + $0x38] sm:$0xff]
  %v42 = vld [vmem:[%s1 + $0x40] sm:$0xff]
  %v43 = vld [vmem:[%s1 + $0x48] sm:$0xff]
  %v44 = vld [vmem:[%s1 + $0x50] sm:$0xff]
  %v45 = vld [vmem:[%s1 + $0x58] sm:$0xff]
  %v46 = vld [vmem:[%s2] sm:$0xff]
  %v47 = vld [vmem:[%s2 + $0x8] sm:$0xff]
  %v48 = vld [vmem:[%s2 + $0x10] sm:$0xff]
  %v49 = vld [vmem:[%s2 + $0x18] sm:$0xff]
  %v50 = vld [vmem:[%s2 + $0x20] sm:$0xff]
  %v51 = vld [vmem:[%s2 + $0x28] sm:$0xff]
  %v52 = vld [vmem:[%s2 + $0x30] sm:$0xff]
  %v53 = vld [vmem:[%s2 + $0x38] sm:$0xff]
  %v54 = vld [vmem:[%s2 + $0x40] sm:$0xff]
  %v55 = vld [vmem:[%s2 + $0x48] sm:$0xff]
  %v56 = vld [vmem:[%s2 + $0x50] sm:$0xff]
  %v57 = vld [vmem:[%s2 + $0x58] sm:$0xff]
  %v58 = vld [vmem:[%s3] sm:$0xff]
  %v59 = vld [vmem:[%s3 + $0x8] sm:$0xff]
  %v60 = vld [vmem:[%s3 + $0x10] sm:$0xff]
  %v61 = vld [vmem:[%s3 + $0x18] sm:$0xff]
  %v62 = vld [vmem:[%s3 + $0x20] sm:$0xff]
  %v63 = vld [vmem:[%s3 + $0x28] sm:$0xff]
  %v64 = vld [vmem:[%s3 + $0x30] sm:$0xff]
  %v65 = vld [vmem:[%s3 + $0x38] sm:$0xff]
  %v66 = vld [vmem:[%s3 + $0x40] sm:$0xff]
  %v67 = vld [vmem:[%s3 + $0x48] sm:$0xff]
  %v68 = vld [vmem:[%s3 + $0x50] sm:$0xff]
  %v69 = vld [vmem:[%s3 + $0x58] sm:$0xff]
  %v70 = vld [vmem:[%s0] sm:$0x7f]
  %72 = vset.pattern.permute.xlu0 0
  %73 = vperm.xlu0 %72, %v58
  %v74 = vpop.permute.xlu0 %73
  %77 = vset.pattern.permute.xlu0 0
  %78 = vperm.xlu0 %77, %v59
  %v79 = vpop.permute.xlu0 %78
  %82 = vset.pattern.permute.xlu0 0
  %83 = vperm.xlu0 %82, %v60
  %v84 = vpop.permute.xlu0 %83
  %87 = vset.pattern.permute.xlu0 0
  %88 = vperm.xlu0 %87, %v61
  %v89 = vpop.permute.xlu0 %88
  %92 = vset.pattern.permute.xlu0 0
  %93 = vperm.xlu0 %92, %v62
  %v94 = vpop.permute.xlu0 %93
  %97 = vset.pattern.permute.xlu0 0
  %98 = vperm.xlu0 %97, %v63
  %v99 = vpop.permute.xlu0 %98
  %102 = vset.pattern.permute.xlu0 0
  %103 = vperm.xlu0 %102, %v64
  %v104 = vpop.permute.xlu0 %103
  %107 = vset.pattern.permute.xlu0 0
  %108 = vperm.xlu0 %107, %v65
  %v109 = vpop.permute.xlu0 %108
  %112 = vset.pattern.permute.xlu0 0
  %113 = vperm.xlu0 %112, %v66
  %v114 = vpop.permute.xlu0 %113
  %117 = vset.pattern.permute.xlu0 0
  %118 = vperm.xlu0 %117, %v67
  %v119 = vpop.permute.xlu0 %118
  %122 = vset.pattern.permute.xlu0 0
  %123 = vperm.xlu0 %122, %v68
  %v124 = vpop.permute.xlu0 %123
  %127 = vset.pattern.permute.xlu0 0
  %128 = vperm.xlu0 %127, %v69
  %v129 = vpop.permute.xlu0 %128
  %vm131 = vcmask 56320
  %v133 = vsel %vm131, %v34, 0
  %v136 = vsel %vm131, %v35, 0
  %v139 = vsel %vm131, %v36, 0
  %v142 = vsel %vm131, %v37, 0
  %v145 = vsel %vm131, %v38, 0
  %v148 = vsel %vm131, %v39, 0
  %v151 = vsel %vm131, %v40, 0
  %v154 = vsel %vm131, %v41, 0
  %v157 = vsel %vm131, %v42, 0
  %v160 = vsel %vm131, %v43, 0
  %v163 = vsel %vm131, %v44, 0
  %v166 = vsel %vm131, %v45, 0
  %vm168 = vcmask 1046528
  %v170 = vsel %vm168, %v70, 0
  %172 = vmatprep.subr.mxu0 0.0
  %173 = vmatpush1.msra.mxu0 0.0
  %174 = vmatprep.subr.mxu0 0.0
  %175 = vmatpush1.msra.mxu0 0.0
  %176 = vmatprep.subr.mxu0 0.0
  %177 = vmatpush1.msra.mxu0 0.0
  %178 = vmatprep.subr.mxu0 0.0
  %179 = vmatpush1.msra.mxu0 0.0
  %180 = vmatprep.subr.mxu0 0.0
  %181 = vmatpush1.msra.mxu0 0.0
  %182 = vmatprep.subr.mxu0 0.0
  %183 = vmatpush1.msra.mxu0 0.0
  %184 = vmatprep.subr.mxu0 0.0
  %185 = vmatpush1.msra.mxu0 0.0
  %186 = vmatprep.subr.mxu0 0.0
  %187 = vmatpush1.msra.mxu0 0.0
  %188 = vmatprep.subr.mxu0 0.0
  %189 = vmatpush1.msra.mxu0 0.0
  %190 = vmatprep.subr.mxu0 0.0
  %191 = vmatpush1.msra.mxu0 0.0
  %192 = vmatprep.subr.mxu0 0.0
  %193 = vmatpush1.msra.mxu0 0.0
  %194 = vmatprep.subr.mxu0 0.0
  %195 = vmatpush1.msra.mxu0 0.0
  %196 = vmatprep.subr.mxu0 0.0
  %197 = vmatpush1.msra.mxu0 0.0
  %198 = vmatprep.subr.mxu0 0.0
  %199 = vmatpush1.msra.mxu0 0.0
  %200 = vmatprep.subr.mxu0 0.0
  %201 = vmatpush1.msra.mxu0 0.0
  %202 = vmatprep.subr.mxu0 0.0
  %203 = vmatpush1.msra.mxu0 %v170
  %204 = vmatprep.subr.mxu0 0.0
  %205 = vmatpush2.msra.mxu0 0.0
  %206 = vmatprep.subr.mxu0 0.0
  %207 = vmatpush2.msra.mxu0 0.0
  %208 = vmatprep.subr.mxu0 0.0
  %209 = vmatpush2.msra.mxu0 0.0
  %210 = vmatprep.subr.mxu0 0.0
  %211 = vmatpush2.msra.mxu0 0.0
  %212 = vmatprep.subr.mxu0 0.0
  %213 = vmatpush2.msra.mxu0 0.0
  %214 = vmatprep.subr.mxu0 0.0
  %215 = vmatpush2.msra.mxu0 0.0
  %216 = vmatprep.subr.mxu0 0.0
  %217 = vmatpush2.msra.mxu0 0.0
  %218 = vmatprep.subr.mxu0 0.0
  %219 = vmatpush2.msra.mxu0 0.0
  %220 = vmatprep.subr.mxu0 0.0
  %221 = vmatpush2.msra.mxu0 0.0
  %222 = vmatprep.subr.mxu0 0.0
  %223 = vmatpush2.msra.mxu0 0.0
  %224 = vmatprep.subr.mxu0 0.0
  %225 = vmatpush2.msra.mxu0 0.0
  %226 = vmatprep.subr.mxu0 0.0
  %227 = vmatpush2.msra.mxu0 0.0
  %228 = vmatprep.subr.mxu0 0.0
  %229 = vmatpush2.msra.mxu0 0.0
  %230 = vmatprep.subr.mxu0 0.0
  %231 = vmatpush2.msra.mxu0 0.0
  %232 = vmatprep.subr.mxu0 0.0
  %233 = vmatpush2.msra.mxu0 0.0
  %234 = vmatprep.subr.mxu0 0.0
  %235 = vmatpush2.msra.mxu0 0.0
  %236 = vmatprep.mubr.f32.mxu0 0.0
  %237 = vmatmul.mubr.f32.gmra.mxu0 %v133
  %v238 = vpop.f32.mrf.mxu0
  %v239 = vadd.f32 %v74, %v238
  %v240 = vpop.f32.mrf.mxu0
  %241 = vmatprep.mubr.f32.mxu0 0.0
  %242 = vmatmul.mubr.f32.gmra.mxu0 %v136
  %v243 = vpop.f32.mrf.mxu0
  %v244 = vadd.f32 %v79, %v243
  %v245 = vpop.f32.mrf.mxu0
  %246 = vmatprep.mubr.f32.mxu0 0.0
  %247 = vmatmul.mubr.f32.gmra.mxu0 %v139
  %v248 = vpop.f32.mrf.mxu0
  %v249 = vadd.f32 %v84, %v248
  %v250 = vpop.f32.mrf.mxu0
  %251 = vmatprep.mubr.f32.mxu0 0.0
  %252 = vmatmul.mubr.f32.gmra.mxu0 %v142
  %v253 = vpop.f32.mrf.mxu0
  %v254 = vadd.f32 %v89, %v253
  %v255 = vpop.f32.mrf.mxu0
  %256 = vmatprep.mubr.f32.mxu0 0.0
  %257 = vmatmul.mubr.f32.gmra.mxu0 %v145
  %v258 = vpop.f32.mrf.mxu0
  %v259 = vadd.f32 %v94, %v258
  %v260 = vpop.f32.mrf.mxu0
  %261 = vmatprep.mubr.f32.mxu0 0.0
  %262 = vmatmul.mubr.f32.gmra.mxu0 %v148
  %v263 = vpop.f32.mrf.mxu0
  %v264 = vadd.f32 %v99, %v263
  %v265 = vpop.f32.mrf.mxu0
  %266 = vmatprep.mubr.f32.mxu0 0.0
  %267 = vmatmul.mubr.f32.gmra.mxu0 %v151
  %v268 = vpop.f32.mrf.mxu0
  %v269 = vadd.f32 %v104, %v268
  %v270 = vpop.f32.mrf.mxu0
  %271 = vmatprep.mubr.f32.mxu0 0.0
  %272 = vmatmul.mubr.f32.gmra.mxu0 %v154
  %v273 = vpop.f32.mrf.mxu0
  %v274 = vadd.f32 %v109, %v273
  %v275 = vpop.f32.mrf.mxu0
  %276 = vmatprep.mubr.f32.mxu0 0.0
  %277 = vmatmul.mubr.f32.gmra.mxu0 %v157
  %v278 = vpop.f32.mrf.mxu0
  %v279 = vadd.f32 %v114, %v278
  %v280 = vpop.f32.mrf.mxu0
  %281 = vmatprep.mubr.f32.mxu0 0.0
  %282 = vmatmul.mubr.f32.gmra.mxu0 %v160
  %v283 = vpop.f32.mrf.mxu0
  %v284 = vadd.f32 %v119, %v283
  %v285 = vpop.f32.mrf.mxu0
  %286 = vmatprep.mubr.f32.mxu0 0.0
  %287 = vmatmul.mubr.f32.gmra.mxu0 %v163
  %v288 = vpop.f32.mrf.mxu0
  %v289 = vadd.f32 %v124, %v288
  %v290 = vpop.f32.mrf.mxu0
  %291 = vmatprep.mubr.f32.mxu0 0.0
  %292 = vmatmul.mubr.f32.gmra.mxu0 %v166
  %v293 = vpop.f32.mrf.mxu0
  %v294 = vadd.f32 %v129, %v293
  %v295 = vpop.f32.mrf.mxu0
  %296 = vdwg.mxu0
  %297 = vst [vmem:[#allocation3] sm:$0xff] %v239
  %298 = vst [vmem:[#allocation3 + $0x8] sm:$0xff] %v244
  %299 = vst [vmem:[#allocation3 + $0x10] sm:$0xff] %v249
  %300 = vst [vmem:[#allocation3 + $0x18] sm:$0xff] %v254
  %301 = vst [vmem:[#allocation3 + $0x20] sm:$0xff] %v259
  %302 = vst [vmem:[#allocation3 + $0x28] sm:$0xff] %v264
  %303 = vst [vmem:[#allocation3 + $0x30] sm:$0xff] %v269
  %304 = vst [vmem:[#allocation3 + $0x38] sm:$0xff] %v274
  %305 = vst [vmem:[#allocation3 + $0x40] sm:$0xff] %v279
  %306 = vst [vmem:[#allocation3 + $0x48] sm:$0xff] %v284
  %307 = vst [vmem:[#allocation3 + $0x50] sm:$0xff] %v289
  %308 = vst [vmem:[#allocation3 + $0x58] sm:$0xff] %v294
  %s309 = scalar_lea.vmem %s0, 8
  %v310 = vld [vmem:[%s309] sm:$0x7f]
  %v312 = vsel %vm168, %v310, 0
  %314 = vmatprep.subr.mxu0 0.0
  %315 = vmatpush1.msra.mxu0 0.0
  %316 = vmatprep.subr.mxu0 0.0
  %317 = vmatpush1.msra.mxu0 0.0
  %318 = vmatprep.subr.mxu0 0.0
  %319 = vmatpush1.msra.mxu0 0.0
  %320 = vmatprep.subr.mxu0 0.0
  %321 = vmatpush1.msra.mxu0 0.0
  %322 = vmatprep.subr.mxu0 0.0
  %323 = vmatpush1.msra.mxu0 0.0
  %324 = vmatprep.subr.mxu0 0.0
  %325 = vmatpush1.msra.mxu0 0.0
  %326 = vmatprep.subr.mxu0 0.0
  %327 = vmatpush1.msra.mxu0 0.0
  %328 = vmatprep.subr.mxu0 0.0
  %329 = vmatpush1.msra.mxu0 0.0
  %330 = vmatprep.subr.mxu0 0.0
  %331 = vmatpush1.msra.mxu0 0.0
  %332 = vmatprep.subr.mxu0 0.0
  %333 = vmatpush1.msra.mxu0 0.0
  %334 = vmatprep.subr.mxu0 0.0
  %335 = vmatpush1.msra.mxu0 0.0
  %336 = vmatprep.subr.mxu0 0.0
  %337 = vmatpush1.msra.mxu0 0.0
  %338 = vmatprep.subr.mxu0 0.0
  %339 = vmatpush1.msra.mxu0 0.0
  %340 = vmatprep.subr.mxu0 0.0
  %341 = vmatpush1.msra.mxu0 0.0
  %342 = vmatprep.subr.mxu0 0.0
  %343 = vmatpush1.msra.mxu0 0.0
  %344 = vmatprep.subr.mxu0 0.0
  %345 = vmatpush1.msra.mxu0 %v312
  %346 = vmatprep.subr.mxu0 0.0
  %347 = vmatpush2.msra.mxu0 0.0
  %348 = vmatprep.subr.mxu0 0.0
  %349 = vmatpush2.msra.mxu0 0.0
  %350 = vmatprep.subr.mxu0 0.0
  %351 = vmatpush2.msra.mxu0 0.0
  %352 = vmatprep.subr.mxu0 0.0
  %353 = vmatpush2.msra.mxu0 0.0
  %354 = vmatprep.subr.mxu0 0.0
  %355 = vmatpush2.msra.mxu0 0.0
  %356 = vmatprep.subr.mxu0 0.0
  %357 = vmatpush2.msra.mxu0 0.0
  %358 = vmatprep.subr.mxu0 0.0
  %359 = vmatpush2.msra.mxu0 0.0
  %360 = vmatprep.subr.mxu0 0.0
  %361 = vmatpush2.msra.mxu0 0.0
  %362 = vmatprep.subr.mxu0 0.0
  %363 = vmatpush2.msra.mxu0 0.0
  %364 = vmatprep.subr.mxu0 0.0
  %365 = vmatpush2.msra.mxu0 0.0
  %366 = vmatprep.subr.mxu0 0.0
  %367 = vmatpush2.msra.mxu0 0.0
  %368 = vmatprep.subr.mxu0 0.0
  %369 = vmatpush2.msra.mxu0 0.0
  %370 = vmatprep.subr.mxu0 0.0
  %371 = vmatpush2.msra.mxu0 0.0
  %372 = vmatprep.subr.mxu0 0.0
  %373 = vmatpush2.msra.mxu0 0.0
  %374 = vmatprep.subr.mxu0 0.0
  %375 = vmatpush2.msra.mxu0 0.0
  %376 = vmatprep.subr.mxu0 0.0
  %377 = vmatpush2.msra.mxu0 0.0
  %378 = vmatprep.mubr.f32.mxu0 0.0
  %379 = vmatmul.mubr.f32.gmra.mxu0 %v133
  %v380 = vpop.f32.mrf.mxu0
  %v381 = vadd.f32 %v74, %v380
  %v382 = vpop.f32.mrf.mxu0
  %383 = vmatprep.mubr.f32.mxu0 0.0
  %384 = vmatmul.mubr.f32.gmra.mxu0 %v136
  %v385 = vpop.f32.mrf.mxu0
  %v386 = vadd.f32 %v79, %v385
  %v387 = vpop.f32.mrf.mxu0
  %388 = vmatprep.mubr.f32.mxu0 0.0
  %389 = vmatmul.mubr.f32.gmra.mxu0 %v139
  %v390 = vpop.f32.mrf.mxu0
  %v391 = vadd.f32 %v84, %v390
  %v392 = vpop.f32.mrf.mxu0
  %393 = vmatprep.mubr.f32.mxu0 0.0
  %394 = vmatmul.mubr.f32.gmra.mxu0 %v142
  %v395 = vpop.f32.mrf.mxu0
  %v396 = vadd.f32 %v89, %v395
  %v397 = vpop.f32.mrf.mxu0
  %398 = vmatprep.mubr.f32.mxu0 0.0
  %399 = vmatmul.mubr.f32.gmra.mxu0 %v145
  %v400 = vpop.f32.mrf.mxu0
  %v401 = vadd.f32 %v94, %v400
  %v402 = vpop.f32.mrf.mxu0
  %403 = vmatprep.mubr.f32.mxu0 0.0
  %404 = vmatmul.mubr.f32.gmra.mxu0 %v148
  %v405 = vpop.f32.mrf.mxu0
  %v406 = vadd.f32 %v99, %v405
  %v407 = vpop.f32.mrf.mxu0
  %408 = vmatprep.mubr.f32.mxu0 0.0
  %409 = vmatmul.mubr.f32.gmra.mxu0 %v151
  %v410 = vpop.f32.mrf.mxu0
  %v411 = vadd.f32 %v104, %v410
  %v412 = vpop.f32.mrf.mxu0
  %413 = vmatprep.mubr.f32.mxu0 0.0
  %414 = vmatmul.mubr.f32.gmra.mxu0 %v154
  %v415 = vpop.f32.mrf.mxu0
  %v416 = vadd.f32 %v109, %v415
  %v417 = vpop.f32.mrf.mxu0
  %418 = vmatprep.mubr.f32.mxu0 0.0
  %419 = vmatmul.mubr.f32.gmra.mxu0 %v157
  %v420 = vpop.f32.mrf.mxu0
  %v421 = vadd.f32 %v114, %v420
  %v422 = vpop.f32.mrf.mxu0
  %423 = vmatprep.mubr.f32.mxu0 0.0
  %424 = vmatmul.mubr.f32.gmra.mxu0 %v160
  %v425 = vpop.f32.mrf.mxu0
  %v426 = vadd.f32 %v119, %v425
  %v427 = vpop.f32.mrf.mxu0
  %428 = vmatprep.mubr.f32.mxu0 0.0
  %429 = vmatmul.mubr.f32.gmra.mxu0 %v163
  %v430 = vpop.f32.mrf.mxu0
  %v431 = vadd.f32 %v124, %v430
  %v432 = vpop.f32.mrf.mxu0
  %433 = vmatprep.mubr.f32.mxu0 0.0
  %434 = vmatmul.mubr.f32.gmra.mxu0 %v166
  %v435 = vpop.f32.mrf.mxu0
  %v436 = vadd.f32 %v129, %v435
  %v437 = vpop.f32.mrf.mxu0
  %438 = vdwg.mxu0
  %s439 = scalar_lea.vmem [#allocation3], 96
  %440 = vst [vmem:[%s439] sm:$0xff] %v381
  %441 = vst [vmem:[%s439 + $0x8] sm:$0xff] %v386
  %442 = vst [vmem:[%s439 + $0x10] sm:$0xff] %v391
  %443 = vst [vmem:[%s439 + $0x18] sm:$0xff] %v396
  %444 = vst [vmem:[%s439 + $0x20] sm:$0xff] %v401
  %445 = vst [vmem:[%s439 + $0x28] sm:$0xff] %v406
  %446 = vst [vmem:[%s439 + $0x30] sm:$0xff] %v411
  %447 = vst [vmem:[%s439 + $0x38] sm:$0xff] %v416
  %448 = vst [vmem:[%s439 + $0x40] sm:$0xff] %v421
  %449 = vst [vmem:[%s439 + $0x48] sm:$0xff] %v426
  %450 = vst [vmem:[%s439 + $0x50] sm:$0xff] %v431
  %451 = vst [vmem:[%s439 + $0x58] sm:$0xff] %v436
  %s452 = scalar_lea.vmem %s0, 16
  %v453 = vld [vmem:[%s452] sm:$0x7f]
  %v455 = vsel %vm168, %v453, 0
  %457 = vmatprep.subr.mxu0 0.0
  %458 = vmatpush1.msra.mxu0 0.0
  %459 = vmatprep.subr.mxu0 0.0
  %460 = vmatpush1.msra.mxu0 0.0
  %461 = vmatprep.subr.mxu0 0.0
  %462 = vmatpush1.msra.mxu0 0.0
  %463 = vmatprep.subr.mxu0 0.0
  %464 = vmatpush1.msra.mxu0 0.0
  %465 = vmatprep.subr.mxu0 0.0
  %466 = vmatpush1.msra.mxu0 0.0
  %467 = vmatprep.subr.mxu0 0.0
  %468 = vmatpush1.msra.mxu0 0.0
  %469 = vmatprep.subr.mxu0 0.0
  %470 = vmatpush1.msra.mxu0 0.0
  %471 = vmatprep.subr.mxu0 0.0
  %472 = vmatpush1.msra.mxu0 0.0
  %473 = vmatprep.subr.mxu0 0.0
  %474 = vmatpush1.msra.mxu0 0.0
  %475 = vmatprep.subr.mxu0 0.0
  %476 = vmatpush1.msra.mxu0 0.0
  %477 = vmatprep.subr.mxu0 0.0
  %478 = vmatpush1.msra.mxu0 0.0
  %479 = vmatprep.subr.mxu0 0.0
  %480 = vmatpush1.msra.mxu0 0.0
  %481 = vmatprep.subr.mxu0 0.0
  %482 = vmatpush1.msra.mxu0 0.0
  %483 = vmatprep.subr.mxu0 0.0
  %484 = vmatpush1.msra.mxu0 0.0
  %485 = vmatprep.subr.mxu0 0.0
  %486 = vmatpush1.msra.mxu0 0.0
  %487 = vmatprep.subr.mxu0 0.0
  %488 = vmatpush1.msra.mxu0 %v455
  %489 = vmatprep.subr.mxu0 0.0
  %490 = vmatpush2.msra.mxu0 0.0
  %491 = vmatprep.subr.mxu0 0.0
  %492 = vmatpush2.msra.mxu0 0.0
  %493 = vmatprep.subr.mxu0 0.0
  %494 = vmatpush2.msra.mxu0 0.0
  %495 = vmatprep.subr.mxu0 0.0
  %496 = vmatpush2.msra.mxu0 0.0
  %497 = vmatprep.subr.mxu0 0.0
  %498 = vmatpush2.msra.mxu0 0.0
  %499 = vmatprep.subr.mxu0 0.0
  %500 = vmatpush2.msra.mxu0 0.0
  %501 = vmatprep.subr.mxu0 0.0
  %502 = vmatpush2.msra.mxu0 0.0
  %503 = vmatprep.subr.mxu0 0.0
  %504 = vmatpush2.msra.mxu0 0.0
  %505 = vmatprep.subr.mxu0 0.0
  %506 = vmatpush2.msra.mxu0 0.0
  %507 = vmatprep.subr.mxu0 0.0
  %508 = vmatpush2.msra.mxu0 0.0
  %509 = vmatprep.subr.mxu0 0.0
  %510 = vmatpush2.msra.mxu0 0.0
  %511 = vmatprep.subr.mxu0 0.0
  %512 = vmatpush2.msra.mxu0 0.0
  %513 = vmatprep.subr.mxu0 0.0
  %514 = vmatpush2.msra.mxu0 0.0
  %515 = vmatprep.subr.mxu0 0.0
  %516 = vmatpush2.msra.mxu0 0.0
  %517 = vmatprep.subr.mxu0 0.0
  %518 = vmatpush2.msra.mxu0 0.0
  %519 = vmatprep.subr.mxu0 0.0
  %520 = vmatpush2.msra.mxu0 0.0
  %521 = vmatprep.mubr.f32.mxu0 0.0
  %522 = vmatmul.mubr.f32.gmra.mxu0 %v133
  %v523 = vpop.f32.mrf.mxu0
  %v524 = vadd.f32 %v74, %v523
  %v525 = vpop.f32.mrf.mxu0
  %526 = vmatprep.mubr.f32.mxu0 0.0
  %527 = vmatmul.mubr.f32.gmra.mxu0 %v136
  %v528 = vpop.f32.mrf.mxu0
  %v529 = vadd.f32 %v79, %v528
  %v530 = vpop.f32.mrf.mxu0
  %531 = vmatprep.mubr.f32.mxu0 0.0
  %532 = vmatmul.mubr.f32.gmra.mxu0 %v139
  %v533 = vpop.f32.mrf.mxu0
  %v534 = vadd.f32 %v84, %v533
  %v535 = vpop.f32.mrf.mxu0
  %536 = vmatprep.mubr.f32.mxu0 0.0
  %537 = vmatmul.mubr.f32.gmra.mxu0 %v142
  %v538 = vpop.f32.mrf.mxu0
  %v539 = vadd.f32 %v89, %v538
  %v540 = vpop.f32.mrf.mxu0
  %541 = vmatprep.mubr.f32.mxu0 0.0
  %542 = vmatmul.mubr.f32.gmra.mxu0 %v145
  %v543 = vpop.f32.mrf.mxu0
  %v544 = vadd.f32 %v94, %v543
  %v545 = vpop.f32.mrf.mxu0
  %546 = vmatprep.mubr.f32.mxu0 0.0
  %547 = vmatmul.mubr.f32.gmra.mxu0 %v148
  %v548 = vpop.f32.mrf.mxu0
  %v549 = vadd.f32 %v99, %v548
  %v550 = vpop.f32.mrf.mxu0
  %551 = vmatprep.mubr.f32.mxu0 0.0
  %552 = vmatmul.mubr.f32.gmra.mxu0 %v151
  %v553 = vpop.f32.mrf.mxu0
  %v554 = vadd.f32 %v104, %v553
  %v555 = vpop.f32.mrf.mxu0
  %556 = vmatprep.mubr.f32.mxu0 0.0
  %557 = vmatmul.mubr.f32.gmra.mxu0 %v154
  %v558 = vpop.f32.mrf.mxu0
  %v559 = vadd.f32 %v109, %v558
  %v560 = vpop.f32.mrf.mxu0
  %561 = vmatprep.mubr.f32.mxu0 0.0
  %562 = vmatmul.mubr.f32.gmra.mxu0 %v157
  %v563 = vpop.f32.mrf.mxu0
  %v564 = vadd.f32 %v114, %v563
  %v565 = vpop.f32.mrf.mxu0
  %566 = vmatprep.mubr.f32.mxu0 0.0
  %567 = vmatmul.mubr.f32.gmra.mxu0 %v160
  %v568 = vpop.f32.mrf.mxu0
  %v569 = vadd.f32 %v119, %v568
  %v570 = vpop.f32.mrf.mxu0
  %571 = vmatprep.mubr.f32.mxu0 0.0
  %572 = vmatmul.mubr.f32.gmra.mxu0 %v163
  %v573 = vpop.f32.mrf.mxu0
  %v574 = vadd.f32 %v124, %v573
  %v575 = vpop.f32.mrf.mxu0
  %576 = vmatprep.mubr.f32.mxu0 0.0
  %577 = vmatmul.mubr.f32.gmra.mxu0 %v166
  %v578 = vpop.f32.mrf.mxu0
  %v579 = vadd.f32 %v129, %v578
  %v580 = vpop.f32.mrf.mxu0
  %581 = vdwg.mxu0
  %s582 = scalar_lea.vmem [#allocation3], 192
  %583 = vst [vmem:[%s582] sm:$0xff] %v524
  %584 = vst [vmem:[%s582 + $0x8] sm:$0xff] %v529
  %585 = vst [vmem:[%s582 + $0x10] sm:$0xff] %v534
  %586 = vst [vmem:[%s582 + $0x18] sm:$0xff] %v539
  %587 = vst [vmem:[%s582 + $0x20] sm:$0xff] %v544
  %588 = vst [vmem:[%s582 + $0x28] sm:$0xff] %v549
  %589 = vst [vmem:[%s582 + $0x30] sm:$0xff] %v554
  %590 = vst [vmem:[%s582 + $0x38] sm:$0xff] %v559
  %591 = vst [vmem:[%s582 + $0x40] sm:$0xff] %v564
  %592 = vst [vmem:[%s582 + $0x48] sm:$0xff] %v569
  %593 = vst [vmem:[%s582 + $0x50] sm:$0xff] %v574
  %594 = vst [vmem:[%s582 + $0x58] sm:$0xff] %v579
  %s595 = scalar_lea.vmem %s0, 24
  %v596 = vld [vmem:[%s595] sm:$0x7f]
  %v598 = vsel %vm168, %v596, 0
  %600 = vmatprep.subr.mxu0 0.0
  %601 = vmatpush1.msra.mxu0 0.0
  %602 = vmatprep.subr.mxu0 0.0
  %603 = vmatpush1.msra.mxu0 0.0
  %604 = vmatprep.subr.mxu0 0.0
  %605 = vmatpush1.msra.mxu0 0.0
  %606 = vmatprep.subr.mxu0 0.0
  %607 = vmatpush1.msra.mxu0 0.0
  %608 = vmatprep.subr.mxu0 0.0
  %609 = vmatpush1.msra.mxu0 0.0
  %610 = vmatprep.subr.mxu0 0.0
  %611 = vmatpush1.msra.mxu0 0.0
  %612 = vmatprep.subr.mxu0 0.0
  %613 = vmatpush1.msra.mxu0 0.0
  %614 = vmatprep.subr.mxu0 0.0
  %615 = vmatpush1.msra.mxu0 0.0
  %616 = vmatprep.subr.mxu0 0.0
  %617 = vmatpush1.msra.mxu0 0.0
  %618 = vmatprep.subr.mxu0 0.0
  %619 = vmatpush1.msra.mxu0 0.0
  %620 = vmatprep.subr.mxu0 0.0
  %621 = vmatpush1.msra.mxu0 0.0
  %622 = vmatprep.subr.mxu0 0.0
  %623 = vmatpush1.msra.mxu0 0.0
  %624 = vmatprep.subr.mxu0 0.0
  %625 = vmatpush1.msra.mxu0 0.0
  %626 = vmatprep.subr.mxu0 0.0
  %627 = vmatpush1.msra.mxu0 0.0
  %628 = vmatprep.subr.mxu0 0.0
  %629 = vmatpush1.msra.mxu0 0.0
  %630 = vmatprep.subr.mxu0 0.0
  %631 = vmatpush1.msra.mxu0 %v598
  %632 = vmatprep.subr.mxu0 0.0
  %633 = vmatpush2.msra.mxu0 0.0
  %634 = vmatprep.subr.mxu0 0.0
  %635 = vmatpush2.msra.mxu0 0.0
  %636 = vmatprep.subr.mxu0 0.0
  %637 = vmatpush2.msra.mxu0 0.0
  %638 = vmatprep.subr.mxu0 0.0
  %639 = vmatpush2.msra.mxu0 0.0
  %640 = vmatprep.subr.mxu0 0.0
  %641 = vmatpush2.msra.mxu0 0.0
  %642 = vmatprep.subr.mxu0 0.0
  %643 = vmatpush2.msra.mxu0 0.0
  %644 = vmatprep.subr.mxu0 0.0
  %645 = vmatpush2.msra.mxu0 0.0
  %646 = vmatprep.subr.mxu0 0.0
  %647 = vmatpush2.msra.mxu0 0.0
  %648 = vmatprep.subr.mxu0 0.0
  %649 = vmatpush2.msra.mxu0 0.0
  %650 = vmatprep.subr.mxu0 0.0
  %651 = vmatpush2.msra.mxu0 0.0
  %652 = vmatprep.subr.mxu0 0.0
  %653 = vmatpush2.msra.mxu0 0.0
  %654 = vmatprep.subr.mxu0 0.0
  %655 = vmatpush2.msra.mxu0 0.0
  %656 = vmatprep.subr.mxu0 0.0
  %657 = vmatpush2.msra.mxu0 0.0
  %658 = vmatprep.subr.mxu0 0.0
  %659 = vmatpush2.msra.mxu0 0.0
  %660 = vmatprep.subr.mxu0 0.0
  %661 = vmatpush2.msra.mxu0 0.0
  %662 = vmatprep.subr.mxu0 0.0
  %663 = vmatpush2.msra.mxu0 0.0
  %664 = vmatprep.mubr.f32.mxu0 0.0
  %665 = vmatmul.mubr.f32.gmra.mxu0 %v133
  %v666 = vpop.f32.mrf.mxu0
  %v667 = vadd.f32 %v74, %v666
  %v668 = vpop.f32.mrf.mxu0
  %669 = vmatprep.mubr.f32.mxu0 0.0
  %670 = vmatmul.mubr.f32.gmra.mxu0 %v136
  %v671 = vpop.f32.mrf.mxu0
  %v672 = vadd.f32 %v79, %v671
  %v673 = vpop.f32.mrf.mxu0
  %674 = vmatprep.mubr.f32.mxu0 0.0
  %675 = vmatmul.mubr.f32.gmra.mxu0 %v139
  %v676 = vpop.f32.mrf.mxu0
  %v677 = vadd.f32 %v84, %v676
  %v678 = vpop.f32.mrf.mxu0
  %679 = vmatprep.mubr.f32.mxu0 0.0
  %680 = vmatmul.mubr.f32.gmra.mxu0 %v142
  %v681 = vpop.f32.mrf.mxu0
  %v682 = vadd.f32 %v89, %v681
  %v683 = vpop.f32.mrf.mxu0
  %684 = vmatprep.mubr.f32.mxu0 0.0
  %685 = vmatmul.mubr.f32.gmra.mxu0 %v145
  %v686 = vpop.f32.mrf.mxu0
  %v687 = vadd.f32 %v94, %v686
  %v688 = vpop.f32.mrf.mxu0
  %689 = vmatprep.mubr.f32.mxu0 0.0
  %690 = vmatmul.mubr.f32.gmra.mxu0 %v148
  %v691 = vpop.f32.mrf.mxu0
  %v692 = vadd.f32 %v99, %v691
  %v693 = vpop.f32.mrf.mxu0
  %694 = vmatprep.mubr.f32.mxu0 0.0
  %695 = vmatmul.mubr.f32.gmra.mxu0 %v151
  %v696 = vpop.f32.mrf.mxu0
  %v697 = vadd.f32 %v104, %v696
  %v698 = vpop.f32.mrf.mxu0
  %699 = vmatprep.mubr.f32.mxu0 0.0
  %700 = vmatmul.mubr.f32.gmra.mxu0 %v154
  %v701 = vpop.f32.mrf.mxu0
  %v702 = vadd.f32 %v109, %v701
  %v703 = vpop.f32.mrf.mxu0
  %704 = vmatprep.mubr.f32.mxu0 0.0
  %705 = vmatmul.mubr.f32.gmra.mxu0 %v157
  %v706 = vpop.f32.mrf.mxu0
  %v707 = vadd.f32 %v114, %v706
  %v708 = vpop.f32.mrf.mxu0
  %709 = vmatprep.mubr.f32.mxu0 0.0
  %710 = vmatmul.mubr.f32.gmra.mxu0 %v160
  %v711 = vpop.f32.mrf.mxu0
  %v712 = vadd.f32 %v119, %v711
  %v713 = vpop.f32.mrf.mxu0
  %714 = vmatprep.mubr.f32.mxu0 0.0
  %715 = vmatmul.mubr.f32.gmra.mxu0 %v163
  %v716 = vpop.f32.mrf.mxu0
  %v717 = vadd.f32 %v124, %v716
  %v718 = vpop.f32.mrf.mxu0
  %719 = vmatprep.mubr.f32.mxu0 0.0
  %720 = vmatmul.mubr.f32.gmra.mxu0 %v166
  %v721 = vpop.f32.mrf.mxu0
  %v722 = vadd.f32 %v129, %v721
  %v723 = vpop.f32.mrf.mxu0
  %724 = vdwg.mxu0
  %s725 = scalar_lea.vmem [#allocation3], 288
  %726 = vst [vmem:[%s725] sm:$0xff] %v667
  %727 = vst [vmem:[%s725 + $0x8] sm:$0xff] %v672
  %728 = vst [vmem:[%s725 + $0x10] sm:$0xff] %v677
  %729 = vst [vmem:[%s725 + $0x18] sm:$0xff] %v682
  %730 = vst [vmem:[%s725 + $0x20] sm:$0xff] %v687
  %731 = vst [vmem:[%s725 + $0x28] sm:$0xff] %v692
  %732 = vst [vmem:[%s725 + $0x30] sm:$0xff] %v697
  %733 = vst [vmem:[%s725 + $0x38] sm:$0xff] %v702
  %734 = vst [vmem:[%s725 + $0x40] sm:$0xff] %v707
  %735 = vst [vmem:[%s725 + $0x48] sm:$0xff] %v712
  %736 = vst [vmem:[%s725 + $0x50] sm:$0xff] %v717
  %737 = vst [vmem:[%s725 + $0x58] sm:$0xff] %v722
  %s738 = scalar_lea.vmem %s0, 32
  %v739 = vld [vmem:[%s738] sm:$0x7f]
  %v741 = vsel %vm168, %v739, 0
  %743 = vmatprep.subr.mxu0 0.0
  %744 = vmatpush1.msra.mxu0 0.0
  %745 = vmatprep.subr.mxu0 0.0
  %746 = vmatpush1.msra.mxu0 0.0
  %747 = vmatprep.subr.mxu0 0.0
  %748 = vmatpush1.msra.mxu0 0.0
  %749 = vmatprep.subr.mxu0 0.0
  %750 = vmatpush1.msra.mxu0 0.0
  %751 = vmatprep.subr.mxu0 0.0
  %752 = vmatpush1.msra.mxu0 0.0
  %753 = vmatprep.subr.mxu0 0.0
  %754 = vmatpush1.msra.mxu0 0.0
  %755 = vmatprep.subr.mxu0 0.0
  %756 = vmatpush1.msra.mxu0 0.0
  %757 = vmatprep.subr.mxu0 0.0
  %758 = vmatpush1.msra.mxu0 0.0
  %759 = vmatprep.subr.mxu0 0.0
  %760 = vmatpush1.msra.mxu0 0.0
  %761 = vmatprep.subr.mxu0 0.0
  %762 = vmatpush1.msra.mxu0 0.0
  %763 = vmatprep.subr.mxu0 0.0
  %764 = vmatpush1.msra.mxu0 0.0
  %765 = vmatprep.subr.mxu0 0.0
  %766 = vmatpush1.msra.mxu0 0.0
  %767 = vmatprep.subr.mxu0 0.0
  %768 = vmatpush1.msra.mxu0 0.0
  %769 = vmatprep.subr.mxu0 0.0
  %770 = vmatpush1.msra.mxu0 0.0
  %771 = vmatprep.subr.mxu0 0.0
  %772 = vmatpush1.msra.mxu0 0.0
  %773 = vmatprep.subr.mxu0 0.0
  %774 = vmatpush1.msra.mxu0 %v741
  %775 = vmatprep.subr.mxu0 0.0
  %776 = vmatpush2.msra.mxu0 0.0
  %777 = vmatprep.subr.mxu0 0.0
  %778 = vmatpush2.msra.mxu0 0.0
  %779 = vmatprep.subr.mxu0 0.0
  %780 = vmatpush2.msra.mxu0 0.0
  %781 = vmatprep.subr.mxu0 0.0
  %782 = vmatpush2.msra.mxu0 0.0
  %783 = vmatprep.subr.mxu0 0.0
  %784 = vmatpush2.msra.mxu0 0.0
  %785 = vmatprep.subr.mxu0 0.0
  %786 = vmatpush2.msra.mxu0 0.0
  %787 = vmatprep.subr.mxu0 0.0
  %788 = vmatpush2.msra.mxu0 0.0
  %789 = vmatprep.subr.mxu0 0.0
  %790 = vmatpush2.msra.mxu0 0.0
  %791 = vmatprep.subr.mxu0 0.0
  %792 = vmatpush2.msra.mxu0 0.0
  %793 = vmatprep.subr.mxu0 0.0
  %794 = vmatpush2.msra.mxu0 0.0
  %795 = vmatprep.subr.mxu0 0.0
  %796 = vmatpush2.msra.mxu0 0.0
  %797 = vmatprep.subr.mxu0 0.0
  %798 = vmatpush2.msra.mxu0 0.0
  %799 = vmatprep.subr.mxu0 0.0
  %800 = vmatpush2.msra.mxu0 0.0
  %801 = vmatprep.subr.mxu0 0.0
  %802 = vmatpush2.msra.mxu0 0.0
  %803 = vmatprep.subr.mxu0 0.0
  %804 = vmatpush2.msra.mxu0 0.0
  %805 = vmatprep.subr.mxu0 0.0
  %806 = vmatpush2.msra.mxu0 0.0
  %807 = vmatprep.mubr.f32.mxu0 0.0
  %808 = vmatmul.mubr.f32.gmra.mxu0 %v133
  %v809 = vpop.f32.mrf.mxu0
  %v810 = vadd.f32 %v74, %v809
  %v811 = vpop.f32.mrf.mxu0
  %812 = vmatprep.mubr.f32.mxu0 0.0
  %813 = vmatmul.mubr.f32.gmra.mxu0 %v136
  %v814 = vpop.f32.mrf.mxu0
  %v815 = vadd.f32 %v79, %v814
  %v816 = vpop.f32.mrf.mxu0
  %817 = vmatprep.mubr.f32.mxu0 0.0
  %818 = vmatmul.mubr.f32.gmra.mxu0 %v139
  %v819 = vpop.f32.mrf.mxu0
  %v820 = vadd.f32 %v84, %v819
  %v821 = vpop.f32.mrf.mxu0
  %822 = vmatprep.mubr.f32.mxu0 0.0
  %823 = vmatmul.mubr.f32.gmra.mxu0 %v142
  %v824 = vpop.f32.mrf.mxu0
  %v825 = vadd.f32 %v89, %v824
  %v826 = vpop.f32.mrf.mxu0
  %827 = vmatprep.mubr.f32.mxu0 0.0
  %828 = vmatmul.mubr.f32.gmra.mxu0 %v145
  %v829 = vpop.f32.mrf.mxu0
  %v830 = vadd.f32 %v94, %v829
  %v831 = vpop.f32.mrf.mxu0
  %832 = vmatprep.mubr.f32.mxu0 0.0
  %833 = vmatmul.mubr.f32.gmra.mxu0 %v148
  %v834 = vpop.f32.mrf.mxu0
  %v835 = vadd.f32 %v99, %v834
  %v836 = vpop.f32.mrf.mxu0
  %837 = vmatprep.mubr.f32.mxu0 0.0
  %838 = vmatmul.mubr.f32.gmra.mxu0 %v151
  %v839 = vpop.f32.mrf.mxu0
  %v840 = vadd.f32 %v104, %v839
  %v841 = vpop.f32.mrf.mxu0
  %842 = vmatprep.mubr.f32.mxu0 0.0
  %843 = vmatmul.mubr.f32.gmra.mxu0 %v154
  %v844 = vpop.f32.mrf.mxu0
  %v845 = vadd.f32 %v109, %v844
  %v846 = vpop.f32.mrf.mxu0
  %847 = vmatprep.mubr.f32.mxu0 0.0
  %848 = vmatmul.mubr.f32.gmra.mxu0 %v157
  %v849 = vpop.f32.mrf.mxu0
  %v850 = vadd.f32 %v114, %v849
  %v851 = vpop.f32.mrf.mxu0
  %852 = vmatprep.mubr.f32.mxu0 0.0
  %853 = vmatmul.mubr.f32.gmra.mxu0 %v160
  %v854 = vpop.f32.mrf.mxu0
  %v855 = vadd.f32 %v119, %v854
  %v856 = vpop.f32.mrf.mxu0
  %857 = vmatprep.mubr.f32.mxu0 0.0
  %858 = vmatmul.mubr.f32.gmra.mxu0 %v163
  %v859 = vpop.f32.mrf.mxu0
  %v860 = vadd.f32 %v124, %v859
  %v861 = vpop.f32.mrf.mxu0
  %862 = vmatprep.mubr.f32.mxu0 0.0
  %863 = vmatmul.mubr.f32.gmra.mxu0 %v166
  %v864 = vpop.f32.mrf.mxu0
  %v865 = vadd.f32 %v129, %v864
  %v866 = vpop.f32.mrf.mxu0
  %867 = vdwg.mxu0
  %s868 = scalar_lea.vmem [#allocation3], 384
  %869 = vst [vmem:[%s868] sm:$0xff] %v810
  %870 = vst [vmem:[%s868 + $0x8] sm:$0xff] %v815
  %871 = vst [vmem:[%s868 + $0x10] sm:$0xff] %v820
  %872 = vst [vmem:[%s868 + $0x18] sm:$0xff] %v825
  %873 = vst [vmem:[%s868 + $0x20] sm:$0xff] %v830
  %874 = vst [vmem:[%s868 + $0x28] sm:$0xff] %v835
  %875 = vst [vmem:[%s868 + $0x30] sm:$0xff] %v840
  %876 = vst [vmem:[%s868 + $0x38] sm:$0xff] %v845
  %877 = vst [vmem:[%s868 + $0x40] sm:$0xff] %v850
  %878 = vst [vmem:[%s868 + $0x48] sm:$0xff] %v855
  %879 = vst [vmem:[%s868 + $0x50] sm:$0xff] %v860
  %880 = vst [vmem:[%s868 + $0x58] sm:$0xff] %v865
  %s881 = scalar_lea.vmem %s0, 40
  %v882 = vld [vmem:[%s881] sm:$0x7f]
  %v884 = vsel %vm168, %v882, 0
  %886 = vmatprep.subr.mxu0 0.0
  %887 = vmatpush1.msra.mxu0 0.0
  %888 = vmatprep.subr.mxu0 0.0
  %889 = vmatpush1.msra.mxu0 0.0
  %890 = vmatprep.subr.mxu0 0.0
  %891 = vmatpush1.msra.mxu0 0.0
  %892 = vmatprep.subr.mxu0 0.0
  %893 = vmatpush1.msra.mxu0 0.0
  %894 = vmatprep.subr.mxu0 0.0
  %895 = vmatpush1.msra.mxu0 0.0
  %896 = vmatprep.subr.mxu0 0.0
  %897 = vmatpush1.msra.mxu0 0.0
  %898 = vmatprep.subr.mxu0 0.0
  %899 = vmatpush1.msra.mxu0 0.0
  %900 = vmatprep.subr.mxu0 0.0
  %901 = vmatpush1.msra.mxu0 0.0
  %902 = vmatprep.subr.mxu0 0.0
  %903 = vmatpush1.msra.mxu0 0.0
  %904 = vmatprep.subr.mxu0 0.0
  %905 = vmatpush1.msra.mxu0 0.0
  %906 = vmatprep.subr.mxu0 0.0
  %907 = vmatpush1.msra.mxu0 0.0
  %908 = vmatprep.subr.mxu0 0.0
  %909 = vmatpush1.msra.mxu0 0.0
  %910 = vmatprep.subr.mxu0 0.0
  %911 = vmatpush1.msra.mxu0 0.0
  %912 = vmatprep.subr.mxu0 0.0
  %913 = vmatpush1.msra.mxu0 0.0
  %914 = vmatprep.subr.mxu0 0.0
  %915 = vmatpush1.msra.mxu0 0.0
  %916 = vmatprep.subr.mxu0 0.0
  %917 = vmatpush1.msra.mxu0 %v884
  %918 = vmatprep.subr.mxu0 0.0
  %919 = vmatpush2.msra.mxu0 0.0
  %920 = vmatprep.subr.mxu0 0.0
  %921 = vmatpush2.msra.mxu0 0.0
  %922 = vmatprep.subr.mxu0 0.0
  %923 = vmatpush2.msra.mxu0 0.0
  %924 = vmatprep.subr.mxu0 0.0
  %925 = vmatpush2.msra.mxu0 0.0
  %926 = vmatprep.subr.mxu0 0.0
  %927 = vmatpush2.msra.mxu0 0.0
  %928 = vmatprep.subr.mxu0 0.0
  %929 = vmatpush2.msra.mxu0 0.0
  %930 = vmatprep.subr.mxu0 0.0
  %931 = vmatpush2.msra.mxu0 0.0
  %932 = vmatprep.subr.mxu0 0.0
  %933 = vmatpush2.msra.mxu0 0.0
  %934 = vmatprep.subr.mxu0 0.0
  %935 = vmatpush2.msra.mxu0 0.0
  %936 = vmatprep.subr.mxu0 0.0
  %937 = vmatpush2.msra.mxu0 0.0
  %938 = vmatprep.subr.mxu0 0.0
  %939 = vmatpush2.msra.mxu0 0.0
  %940 = vmatprep.subr.mxu0 0.0
  %941 = vmatpush2.msra.mxu0 0.0
  %942 = vmatprep.subr.mxu0 0.0
  %943 = vmatpush2.msra.mxu0 0.0
  %944 = vmatprep.subr.mxu0 0.0
  %945 = vmatpush2.msra.mxu0 0.0
  %946 = vmatprep.subr.mxu0 0.0
  %947 = vmatpush2.msra.mxu0 0.0
  %948 = vmatprep.subr.mxu0 0.0
  %949 = vmatpush2.msra.mxu0 0.0
  %950 = vmatprep.mubr.f32.mxu0 0.0
  %951 = vmatmul.mubr.f32.gmra.mxu0 %v133
  %v952 = vpop.f32.mrf.mxu0
  %v953 = vadd.f32 %v74, %v952
  %v954 = vpop.f32.mrf.mxu0
  %955 = vmatprep.mubr.f32.mxu0 0.0
  %956 = vmatmul.mubr.f32.gmra.mxu0 %v136
  %v957 = vpop.f32.mrf.mxu0
  %v958 = vadd.f32 %v79, %v957
  %v959 = vpop.f32.mrf.mxu0
  %960 = vmatprep.mubr.f32.mxu0 0.0
  %961 = vmatmul.mubr.f32.gmra.mxu0 %v139
  %v962 = vpop.f32.mrf.mxu0
  %v963 = vadd.f32 %v84, %v962
  %v964 = vpop.f32.mrf.mxu0
  %965 = vmatprep.mubr.f32.mxu0 0.0
  %966 = vmatmul.mubr.f32.gmra.mxu0 %v142
  %v967 = vpop.f32.mrf.mxu0
  %v968 = vadd.f32 %v89, %v967
  %v969 = vpop.f32.mrf.mxu0
  %970 = vmatprep.mubr.f32.mxu0 0.0
  %971 = vmatmul.mubr.f32.gmra.mxu0 %v145
  %v972 = vpop.f32.mrf.mxu0
  %v973 = vadd.f32 %v94, %v972
  %v974 = vpop.f32.mrf.mxu0
  %975 = vmatprep.mubr.f32.mxu0 0.0
  %976 = vmatmul.mubr.f32.gmra.mxu0 %v148
  %v977 = vpop.f32.mrf.mxu0
  %v978 = vadd.f32 %v99, %v977
  %v979 = vpop.f32.mrf.mxu0
  %980 = vmatprep.mubr.f32.mxu0 0.0
  %981 = vmatmul.mubr.f32.gmra.mxu0 %v151
  %v982 = vpop.f32.mrf.mxu0
  %v983 = vadd.f32 %v104, %v982
  %v984 = vpop.f32.mrf.mxu0
  %985 = vmatprep.mubr.f32.mxu0 0.0
  %986 = vmatmul.mubr.f32.gmra.mxu0 %v154
  %v987 = vpop.f32.mrf.mxu0
  %v988 = vadd.f32 %v109, %v987
  %v989 = vpop.f32.mrf.mxu0
  %990 = vmatprep.mubr.f32.mxu0 0.0
  %991 = vmatmul.mubr.f32.gmra.mxu0 %v157
  %v992 = vpop.f32.mrf.mxu0
  %v993 = vadd.f32 %v114, %v992
  %v994 = vpop.f32.mrf.mxu0
  %995 = vmatprep.mubr.f32.mxu0 0.0
  %996 = vmatmul.mubr.f32.gmra.mxu0 %v160
  %v997 = vpop.f32.mrf.mxu0
  %v998 = vadd.f32 %v119, %v997
  %v999 = vpop.f32.mrf.mxu0
  %1000 = vmatprep.mubr.f32.mxu0 0.0
  %1001 = vmatmul.mubr.f32.gmra.mxu0 %v163
  %v1002 = vpop.f32.mrf.mxu0
  %v1003 = vadd.f32 %v124, %v1002
  %v1004 = vpop.f32.mrf.mxu0
  %1005 = vmatprep.mubr.f32.mxu0 0.0
  %1006 = vmatmul.mubr.f32.gmra.mxu0 %v166
  %v1007 = vpop.f32.mrf.mxu0
  %v1008 = vadd.f32 %v129, %v1007
  %v1009 = vpop.f32.mrf.mxu0
  %1010 = vdwg.mxu0
  %s1011 = scalar_lea.vmem [#allocation3], 480
  %1012 = vst [vmem:[%s1011] sm:$0xff] %v953
  %1013 = vst [vmem:[%s1011 + $0x8] sm:$0xff] %v958
  %1014 = vst [vmem:[%s1011 + $0x10] sm:$0xff] %v963
  %1015 = vst [vmem:[%s1011 + $0x18] sm:$0xff] %v968
  %1016 = vst [vmem:[%s1011 + $0x20] sm:$0xff] %v973
  %1017 = vst [vmem:[%s1011 + $0x28] sm:$0xff] %v978
  %1018 = vst [vmem:[%s1011 + $0x30] sm:$0xff] %v983
  %1019 = vst [vmem:[%s1011 + $0x38] sm:$0xff] %v988
  %1020 = vst [vmem:[%s1011 + $0x40] sm:$0xff] %v993
  %1021 = vst [vmem:[%s1011 + $0x48] sm:$0xff] %v998
  %1022 = vst [vmem:[%s1011 + $0x50] sm:$0xff] %v1003
  %1023 = vst [vmem:[%s1011 + $0x58] sm:$0xff] %v1008
  %s1024 = scalar_lea.vmem %s0, 48
  %v1025 = vld [vmem:[%s1024] sm:$0x7f]
  %v1027 = vsel %vm168, %v1025, 0
  %1029 = vmatprep.subr.mxu0 0.0
  %1030 = vmatpush1.msra.mxu0 0.0
  %1031 = vmatprep.subr.mxu0 0.0
  %1032 = vmatpush1.msra.mxu0 0.0
  %1033 = vmatprep.subr.mxu0 0.0
  %1034 = vmatpush1.msra.mxu0 0.0
  %1035 = vmatprep.subr.mxu0 0.0
  %1036 = vmatpush1.msra.mxu0 0.0
  %1037 = vmatprep.subr.mxu0 0.0
  %1038 = vmatpush1.msra.mxu0 0.0
  %1039 = vmatprep.subr.mxu0 0.0
  %1040 = vmatpush1.msra.mxu0 0.0
  %1041 = vmatprep.subr.mxu0 0.0
  %1042 = vmatpush1.msra.mxu0 0.0
  %1043 = vmatprep.subr.mxu0 0.0
  %1044 = vmatpush1.msra.mxu0 0.0
  %1045 = vmatprep.subr.mxu0 0.0
  %1046 = vmatpush1.msra.mxu0 0.0
  %1047 = vmatprep.subr.mxu0 0.0
  %1048 = vmatpush1.msra.mxu0 0.0
  %1049 = vmatprep.subr.mxu0 0.0
  %1050 = vmatpush1.msra.mxu0 0.0
  %1051 = vmatprep.subr.mxu0 0.0
  %1052 = vmatpush1.msra.mxu0 0.0
  %1053 = vmatprep.subr.mxu0 0.0
  %1054 = vmatpush1.msra.mxu0 0.0
  %1055 = vmatprep.subr.mxu0 0.0
  %1056 = vmatpush1.msra.mxu0 0.0
  %1057 = vmatprep.subr.mxu0 0.0
  %1058 = vmatpush1.msra.mxu0 0.0
  %1059 = vmatprep.subr.mxu0 0.0
  %1060 = vmatpush1.msra.mxu0 %v1027
  %1061 = vmatprep.subr.mxu0 0.0
  %1062 = vmatpush2.msra.mxu0 0.0
  %1063 = vmatprep.subr.mxu0 0.0
  %1064 = vmatpush2.msra.mxu0 0.0
  %1065 = vmatprep.subr.mxu0 0.0
  %1066 = vmatpush2.msra.mxu0 0.0
  %1067 = vmatprep.subr.mxu0 0.0
  %1068 = vmatpush2.msra.mxu0 0.0
  %1069 = vmatprep.subr.mxu0 0.0
  %1070 = vmatpush2.msra.mxu0 0.0
  %1071 = vmatprep.subr.mxu0 0.0
  %1072 = vmatpush2.msra.mxu0 0.0
  %1073 = vmatprep.subr.mxu0 0.0
  %1074 = vmatpush2.msra.mxu0 0.0
  %1075 = vmatprep.subr.mxu0 0.0
  %1076 = vmatpush2.msra.mxu0 0.0
  %1077 = vmatprep.subr.mxu0 0.0
  %1078 = vmatpush2.msra.mxu0 0.0
  %1079 = vmatprep.subr.mxu0 0.0
  %1080 = vmatpush2.msra.mxu0 0.0
  %1081 = vmatprep.subr.mxu0 0.0
  %1082 = vmatpush2.msra.mxu0 0.0
  %1083 = vmatprep.subr.mxu0 0.0
  %1084 = vmatpush2.msra.mxu0 0.0
  %1085 = vmatprep.subr.mxu0 0.0
  %1086 = vmatpush2.msra.mxu0 0.0
  %1087 = vmatprep.subr.mxu0 0.0
  %1088 = vmatpush2.msra.mxu0 0.0
  %1089 = vmatprep.subr.mxu0 0.0
  %1090 = vmatpush2.msra.mxu0 0.0
  %1091 = vmatprep.subr.mxu0 0.0
  %1092 = vmatpush2.msra.mxu0 0.0
  %1093 = vmatprep.mubr.f32.mxu0 0.0
  %1094 = vmatmul.mubr.f32.gmra.mxu0 %v133
  %v1095 = vpop.f32.mrf.mxu0
  %v1096 = vadd.f32 %v74, %v1095
  %v1097 = vpop.f32.mrf.mxu0
  %1098 = vmatprep.mubr.f32.mxu0 0.0
  %1099 = vmatmul.mubr.f32.gmra.mxu0 %v136
  %v1100 = vpop.f32.mrf.mxu0
  %v1101 = vadd.f32 %v79, %v1100
  %v1102 = vpop.f32.mrf.mxu0
  %1103 = vmatprep.mubr.f32.mxu0 0.0
  %1104 = vmatmul.mubr.f32.gmra.mxu0 %v139
  %v1105 = vpop.f32.mrf.mxu0
  %v1106 = vadd.f32 %v84, %v1105
  %v1107 = vpop.f32.mrf.mxu0
  %1108 = vmatprep.mubr.f32.mxu0 0.0
  %1109 = vmatmul.mubr.f32.gmra.mxu0 %v142
  %v1110 = vpop.f32.mrf.mxu0
  %v1111 = vadd.f32 %v89, %v1110
  %v1112 = vpop.f32.mrf.mxu0
  %1113 = vmatprep.mubr.f32.mxu0 0.0
  %1114 = vmatmul.mubr.f32.gmra.mxu0 %v145
  %v1115 = vpop.f32.mrf.mxu0
  %v1116 = vadd.f32 %v94, %v1115
  %v1117 = vpop.f32.mrf.mxu0
  %1118 = vmatprep.mubr.f32.mxu0 0.0
  %1119 = vmatmul.mubr.f32.gmra.mxu0 %v148
  %v1120 = vpop.f32.mrf.mxu0
  %v1121 = vadd.f32 %v99, %v1120
  %v1122 = vpop.f32.mrf.mxu0
  %1123 = vmatprep.mubr.f32.mxu0 0.0
  %1124 = vmatmul.mubr.f32.gmra.mxu0 %v151
  %v1125 = vpop.f32.mrf.mxu0
  %v1126 = vadd.f32 %v104, %v1125
  %v1127 = vpop.f32.mrf.mxu0
  %1128 = vmatprep.mubr.f32.mxu0 0.0
  %1129 = vmatmul.mubr.f32.gmra.mxu0 %v154
  %v1130 = vpop.f32.mrf.mxu0
  %v1131 = vadd.f32 %v109, %v1130
  %v1132 = vpop.f32.mrf.mxu0
  %1133 = vmatprep.mubr.f32.mxu0 0.0
  %1134 = vmatmul.mubr.f32.gmra.mxu0 %v157
  %v1135 = vpop.f32.mrf.mxu0
  %v1136 = vadd.f32 %v114, %v1135
  %v1137 = vpop.f32.mrf.mxu0
  %1138 = vmatprep.mubr.f32.mxu0 0.0
  %1139 = vmatmul.mubr.f32.gmra.mxu0 %v160
  %v1140 = vpop.f32.mrf.mxu0
  %v1141 = vadd.f32 %v119, %v1140
  %v1142 = vpop.f32.mrf.mxu0
  %1143 = vmatprep.mubr.f32.mxu0 0.0
  %1144 = vmatmul.mubr.f32.gmra.mxu0 %v163
  %v1145 = vpop.f32.mrf.mxu0
  %v1146 = vadd.f32 %v124, %v1145
  %v1147 = vpop.f32.mrf.mxu0
  %1148 = vmatprep.mubr.f32.mxu0 0.0
  %1149 = vmatmul.mubr.f32.gmra.mxu0 %v166
  %v1150 = vpop.f32.mrf.mxu0
  %v1151 = vadd.f32 %v129, %v1150
  %v1152 = vpop.f32.mrf.mxu0
  %1153 = vdwg.mxu0
  %s1154 = scalar_lea.vmem [#allocation3], 576
  %1155 = vst [vmem:[%s1154] sm:$0xff] %v1096
  %1156 = vst [vmem:[%s1154 + $0x8] sm:$0xff] %v1101
  %1157 = vst [vmem:[%s1154 + $0x10] sm:$0xff] %v1106
  %1158 = vst [vmem:[%s1154 + $0x18] sm:$0xff] %v1111
  %1159 = vst [vmem:[%s1154 + $0x20] sm:$0xff] %v1116
  %1160 = vst [vmem:[%s1154 + $0x28] sm:$0xff] %v1121
  %1161 = vst [vmem:[%s1154 + $0x30] sm:$0xff] %v1126
  %1162 = vst [vmem:[%s1154 + $0x38] sm:$0xff] %v1131
  %1163 = vst [vmem:[%s1154 + $0x40] sm:$0xff] %v1136
  %1164 = vst [vmem:[%s1154 + $0x48] sm:$0xff] %v1141
  %1165 = vst [vmem:[%s1154 + $0x50] sm:$0xff] %v1146
  %1166 = vst [vmem:[%s1154 + $0x58] sm:$0xff] %v1151
  %s1167 = scalar_lea.vmem %s0, 56
  %v1168 = vld [vmem:[%s1167] sm:$0x7f]
  %v1170 = vsel %vm168, %v1168, 0
  %1172 = vmatprep.subr.mxu0 0.0
  %1173 = vmatpush1.msra.mxu0 0.0
  %1174 = vmatprep.subr.mxu0 0.0
  %1175 = vmatpush1.msra.mxu0 0.0
  %1176 = vmatprep.subr.mxu0 0.0
  %1177 = vmatpush1.msra.mxu0 0.0
  %1178 = vmatprep.subr.mxu0 0.0
  %1179 = vmatpush1.msra.mxu0 0.0
  %1180 = vmatprep.subr.mxu0 0.0
  %1181 = vmatpush1.msra.mxu0 0.0
  %1182 = vmatprep.subr.mxu0 0.0
  %1183 = vmatpush1.msra.mxu0 0.0
  %1184 = vmatprep.subr.mxu0 0.0
  %1185 = vmatpush1.msra.mxu0 0.0
  %1186 = vmatprep.subr.mxu0 0.0
  %1187 = vmatpush1.msra.mxu0 0.0
  %1188 = vmatprep.subr.mxu0 0.0
  %1189 = vmatpush1.msra.mxu0 0.0
  %1190 = vmatprep.subr.mxu0 0.0
  %1191 = vmatpush1.msra.mxu0 0.0
  %1192 = vmatprep.subr.mxu0 0.0
  %1193 = vmatpush1.msra.mxu0 0.0
  %1194 = vmatprep.subr.mxu0 0.0
  %1195 = vmatpush1.msra.mxu0 0.0
  %1196 = vmatprep.subr.mxu0 0.0
  %1197 = vmatpush1.msra.mxu0 0.0
  %1198 = vmatprep.subr.mxu0 0.0
  %1199 = vmatpush1.msra.mxu0 0.0
  %1200 = vmatprep.subr.mxu0 0.0
  %1201 = vmatpush1.msra.mxu0 0.0
  %1202 = vmatprep.subr.mxu0 0.0
  %1203 = vmatpush1.msra.mxu0 %v1170
  %1204 = vmatprep.subr.mxu0 0.0
  %1205 = vmatpush2.msra.mxu0 0.0
  %1206 = vmatprep.subr.mxu0 0.0
  %1207 = vmatpush2.msra.mxu0 0.0
  %1208 = vmatprep.subr.mxu0 0.0
  %1209 = vmatpush2.msra.mxu0 0.0
  %1210 = vmatprep.subr.mxu0 0.0
  %1211 = vmatpush2.msra.mxu0 0.0
  %1212 = vmatprep.subr.mxu0 0.0
  %1213 = vmatpush2.msra.mxu0 0.0
  %1214 = vmatprep.subr.mxu0 0.0
  %1215 = vmatpush2.msra.mxu0 0.0
  %1216 = vmatprep.subr.mxu0 0.0
  %1217 = vmatpush2.msra.mxu0 0.0
  %1218 = vmatprep.subr.mxu0 0.0
  %1219 = vmatpush2.msra.mxu0 0.0
  %1220 = vmatprep.subr.mxu0 0.0
  %1221 = vmatpush2.msra.mxu0 0.0
  %1222 = vmatprep.subr.mxu0 0.0
  %1223 = vmatpush2.msra.mxu0 0.0
  %1224 = vmatprep.subr.mxu0 0.0
  %1225 = vmatpush2.msra.mxu0 0.0
  %1226 = vmatprep.subr.mxu0 0.0
  %1227 = vmatpush2.msra.mxu0 0.0
  %1228 = vmatprep.subr.mxu0 0.0
  %1229 = vmatpush2.msra.mxu0 0.0
  %1230 = vmatprep.subr.mxu0 0.0
  %1231 = vmatpush2.msra.mxu0 0.0
  %1232 = vmatprep.subr.mxu0 0.0
  %1233 = vmatpush2.msra.mxu0 0.0
  %1234 = vmatprep.subr.mxu0 0.0
  %1235 = vmatpush2.msra.mxu0 0.0
  %1236 = vmatprep.mubr.f32.mxu0 0.0
  %1237 = vmatmul.mubr.f32.gmra.mxu0 %v133
  %v1238 = vpop.f32.mrf.mxu0
  %v1239 = vadd.f32 %v74, %v1238
  %v1240 = vpop.f32.mrf.mxu0
  %1241 = vmatprep.mubr.f32.mxu0 0.0
  %1242 = vmatmul.mubr.f32.gmra.mxu0 %v136
  %v1243 = vpop.f32.mrf.mxu0
  %v1244 = vadd.f32 %v79, %v1243
  %v1245 = vpop.f32.mrf.mxu0
  %1246 = vmatprep.mubr.f32.mxu0 0.0
  %1247 = vmatmul.mubr.f32.gmra.mxu0 %v139
  %v1248 = vpop.f32.mrf.mxu0
  %v1249 = vadd.f32 %v84, %v1248
  %v1250 = vpop.f32.mrf.mxu0
  %1251 = vmatprep.mubr.f32.mxu0 0.0
  %1252 = vmatmul.mubr.f32.gmra.mxu0 %v142
  %v1253 = vpop.f32.mrf.mxu0
  %v1254 = vadd.f32 %v89, %v1253
  %v1255 = vpop.f32.mrf.mxu0
  %1256 = vmatprep.mubr.f32.mxu0 0.0
  %1257 = vmatmul.mubr.f32.gmra.mxu0 %v145
  %v1258 = vpop.f32.mrf.mxu0
  %v1259 = vadd.f32 %v94, %v1258
  %v1260 = vpop.f32.mrf.mxu0
  %1261 = vmatprep.mubr.f32.mxu0 0.0
  %1262 = vmatmul.mubr.f32.gmra.mxu0 %v148
  %v1263 = vpop.f32.mrf.mxu0
  %v1264 = vadd.f32 %v99, %v1263
  %v1265 = vpop.f32.mrf.mxu0
  %1266 = vmatprep.mubr.f32.mxu0 0.0
  %1267 = vmatmul.mubr.f32.gmra.mxu0 %v151
  %v1268 = vpop.f32.mrf.mxu0
  %v1269 = vadd.f32 %v104, %v1268
  %v1270 = vpop.f32.mrf.mxu0
  %1271 = vmatprep.mubr.f32.mxu0 0.0
  %1272 = vmatmul.mubr.f32.gmra.mxu0 %v154
  %v1273 = vpop.f32.mrf.mxu0
  %v1274 = vadd.f32 %v109, %v1273
  %v1275 = vpop.f32.mrf.mxu0
  %1276 = vmatprep.mubr.f32.mxu0 0.0
  %1277 = vmatmul.mubr.f32.gmra.mxu0 %v157
  %v1278 = vpop.f32.mrf.mxu0
  %v1279 = vadd.f32 %v114, %v1278
  %v1280 = vpop.f32.mrf.mxu0
  %1281 = vmatprep.mubr.f32.mxu0 0.0
  %1282 = vmatmul.mubr.f32.gmra.mxu0 %v160
  %v1283 = vpop.f32.mrf.mxu0
  %v1284 = vadd.f32 %v119, %v1283
  %v1285 = vpop.f32.mrf.mxu0
  %1286 = vmatprep.mubr.f32.mxu0 0.0
  %1287 = vmatmul.mubr.f32.gmra.mxu0 %v163
  %v1288 = vpop.f32.mrf.mxu0
  %v1289 = vadd.f32 %v124, %v1288
  %v1290 = vpop.f32.mrf.mxu0
  %1291 = vmatprep.mubr.f32.mxu0 0.0
  %1292 = vmatmul.mubr.f32.gmra.mxu0 %v166
  %v1293 = vpop.f32.mrf.mxu0
  %v1294 = vadd.f32 %v129, %v1293
  %v1295 = vpop.f32.mrf.mxu0
  %1296 = vdwg.mxu0
  %s1297 = scalar_lea.vmem [#allocation3], 672
  %1298 = vst [vmem:[%s1297] sm:$0xff] %v1239
  %1299 = vst [vmem:[%s1297 + $0x8] sm:$0xff] %v1244
  %1300 = vst [vmem:[%s1297 + $0x10] sm:$0xff] %v1249
  %1301 = vst [vmem:[%s1297 + $0x18] sm:$0xff] %v1254
  %1302 = vst [vmem:[%s1297 + $0x20] sm:$0xff] %v1259
  %1303 = vst [vmem:[%s1297 + $0x28] sm:$0xff] %v1264
  %1304 = vst [vmem:[%s1297 + $0x30] sm:$0xff] %v1269
  %1305 = vst [vmem:[%s1297 + $0x38] sm:$0xff] %v1274
  %1306 = vst [vmem:[%s1297 + $0x40] sm:$0xff] %v1279
  %1307 = vst [vmem:[%s1297 + $0x48] sm:$0xff] %v1284
  %1308 = vst [vmem:[%s1297 + $0x50] sm:$0xff] %v1289
  %1309 = vst [vmem:[%s1297 + $0x58] sm:$0xff] %v1294
  %v1310 = vld [vmem:[%s4] sm:$0xff]
  %v1311 = vld [vmem:[%s4 + $0x8] sm:$0xff]
  %v1312 = vld [vmem:[%s4 + $0x10] sm:$0xff]
  %v1313 = vld [vmem:[%s4 + $0x18] sm:$0xff]
  %1315 = vset.pattern.permute.xlu0 0
  %1316 = vperm.xlu0 %1315, %v1310
  %v1317 = vpop.permute.xlu0 %1316
  %1320 = vset.pattern.permute.xlu0 0
  %1321 = vperm.xlu0 %1320, %v1311
  %v1322 = vpop.permute.xlu0 %1321
  %1325 = vset.pattern.permute.xlu0 0
  %1326 = vperm.xlu0 %1325, %v1312
  %v1327 = vpop.permute.xlu0 %1326
  %1330 = vset.pattern.permute.xlu0 0
  %1331 = vperm.xlu0 %1330, %v1313
  %v1332 = vpop.permute.xlu0 %1331
  %v1334 = vld [vmem:[#allocation2] sm:$0xff]
  %v1335 = vld [vmem:[#allocation2 + $0x8] sm:$0xff]
  %v1336 = vld [vmem:[#allocation2 + $0x10] sm:$0xff]
  %v1337 = vld [vmem:[#allocation2 + $0x18] sm:$0xff]
  %v1338 = vld [vmem:[#allocation3] sm:$0xff]
  %v1339 = vld [vmem:[#allocation3 + $0x8] sm:$0xff]
  %v1340 = vld [vmem:[#allocation3 + $0x10] sm:$0xff]
  %v1341 = vld [vmem:[#allocation3 + $0x18] sm:$0xff]
  %v1342 = vld [vmem:[#allocation3 + $0x20] sm:$0xff]
  %v1343 = vld [vmem:[#allocation3 + $0x28] sm:$0xff]
  %v1344 = vld [vmem:[#allocation3 + $0x30] sm:$0xff]
  %v1345 = vld [vmem:[#allocation3 + $0x38] sm:$0xff]
  %v1346 = vld [vmem:[#allocation3 + $0x40] sm:$0xff]
  %v1347 = vld [vmem:[#allocation3 + $0x48] sm:$0xff]
  %v1348 = vld [vmem:[#allocation3 + $0x50] sm:$0xff]
  %v1349 = vld [vmem:[#allocation3 + $0x58] sm:$0xff]
  %vm1350 = vcmask 261120
  %v1352 = vsel %vm1350, %v46, 0
  %v1355 = vsel %vm1350, %v47, 0
  %v1358 = vsel %vm1350, %v48, 0
  %v1361 = vsel %vm1350, %v49, 0
  %v1364 = vsel %vm1350, %v50, 0
  %v1367 = vsel %vm1350, %v51, 0
  %v1370 = vsel %vm1350, %v52, 0
  %v1373 = vsel %vm1350, %v53, 0
  %v1376 = vsel %vm1350, %v54, 0
  %v1379 = vsel %vm1350, %v55, 0
  %v1382 = vsel %vm1350, %v56, 0
  %v1385 = vsel %vm1350, %v57, 0
  %1387 = vmatprep.subr.mxu0 0.0
  %1388 = vmatpush1.msra.mxu0 0.0
  %1389 = vmatprep.subr.mxu0 0.0
  %1390 = vmatpush1.msra.mxu0 0.0
  %1391 = vmatprep.subr.mxu0 0.0
  %1392 = vmatpush1.msra.mxu0 0.0
  %1393 = vmatprep.subr.mxu0 0.0
  %1394 = vmatpush1.msra.mxu0 0.0
  %1395 = vmatprep.subr.mxu0 0.0
  %1396 = vmatpush1.msra.mxu0 0.0
  %1397 = vmatprep.subr.mxu0 0.0
  %1398 = vmatpush1.msra.mxu0 0.0
  %1399 = vmatprep.subr.mxu0 0.0
  %1400 = vmatpush1.msra.mxu0 0.0
  %1401 = vmatprep.subr.mxu0 0.0
  %1402 = vmatpush1.msra.mxu0 0.0
  %1403 = vmatprep.subr.mxu0 0.0
  %1404 = vmatpush1.msra.mxu0 0.0
  %1405 = vmatprep.subr.mxu0 0.0
  %1406 = vmatpush1.msra.mxu0 0.0
  %1407 = vmatprep.subr.mxu0 0.0
  %1408 = vmatpush1.msra.mxu0 0.0
  %1409 = vmatprep.subr.mxu0 0.0
  %1410 = vmatpush1.msra.mxu0 0.0
  %1411 = vmatprep.subr.mxu0 0.0
  %1412 = vmatpush1.msra.mxu0 %v1337
  %1413 = vmatprep.subr.mxu0 0.0
  %1414 = vmatpush1.msra.mxu0 %v1336
  %1415 = vmatprep.subr.mxu0 0.0
  %1416 = vmatpush1.msra.mxu0 %v1335
  %1417 = vmatprep.subr.mxu0 0.0
  %1418 = vmatpush1.msra.mxu0 %v1334
  %1419 = vmatprep.subr.mxu0 0.0
  %1420 = vmatpush2.msra.mxu0 0.0
  %1421 = vmatprep.subr.mxu0 0.0
  %1422 = vmatpush2.msra.mxu0 0.0
  %1423 = vmatprep.subr.mxu0 0.0
  %1424 = vmatpush2.msra.mxu0 0.0
  %1425 = vmatprep.subr.mxu0 0.0
  %1426 = vmatpush2.msra.mxu0 0.0
  %1427 = vmatprep.subr.mxu0 0.0
  %1428 = vmatpush2.msra.mxu0 0.0
  %1429 = vmatprep.subr.mxu0 0.0
  %1430 = vmatpush2.msra.mxu0 0.0
  %1431 = vmatprep.subr.mxu0 0.0
  %1432 = vmatpush2.msra.mxu0 0.0
  %1433 = vmatprep.subr.mxu0 0.0
  %1434 = vmatpush2.msra.mxu0 0.0
  %1435 = vmatprep.subr.mxu0 0.0
  %1436 = vmatpush2.msra.mxu0 0.0
  %1437 = vmatprep.subr.mxu0 0.0
  %1438 = vmatpush2.msra.mxu0 0.0
  %1439 = vmatprep.subr.mxu0 0.0
  %1440 = vmatpush2.msra.mxu0 0.0
  %1441 = vmatprep.subr.mxu0 0.0
  %1442 = vmatpush2.msra.mxu0 0.0
  %1443 = vmatprep.subr.mxu0 0.0
  %1444 = vmatpush2.msra.mxu0 0.0
  %1445 = vmatprep.subr.mxu0 0.0
  %1446 = vmatpush2.msra.mxu0 0.0
  %1447 = vmatprep.subr.mxu0 0.0
  %1448 = vmatpush2.msra.mxu0 0.0
  %1449 = vmatprep.subr.mxu0 0.0
  %1450 = vmatpush2.msra.mxu0 0.0
  %1451 = vmatprep.mubr.f32.mxu0 0.0
  %1452 = vmatmul.mubr.f32.gmra.mxu0 %v1352
  %v1453 = vpop.f32.mrf.mxu0
  %v1454 = vadd.f32 0.0, %v1453
  %v1455 = vpop.f32.mrf.mxu0
  %1456 = vmatprep.mubr.f32.mxu0 0.0
  %1457 = vmatmul.mubr.f32.gmra.mxu0 %v1355
  %v1458 = vpop.f32.mrf.mxu0
  %v1459 = vadd.f32 0.0, %v1458
  %v1460 = vpop.f32.mrf.mxu0
  %1461 = vmatprep.mubr.f32.mxu0 0.0
  %1462 = vmatmul.mubr.f32.gmra.mxu0 %v1358
  %v1463 = vpop.f32.mrf.mxu0
  %v1464 = vadd.f32 0.0, %v1463
  %v1465 = vpop.f32.mrf.mxu0
  %1466 = vmatprep.mubr.f32.mxu0 0.0
  %1467 = vmatmul.mubr.f32.gmra.mxu0 %v1361
  %v1468 = vpop.f32.mrf.mxu0
  %v1469 = vadd.f32 0.0, %v1468
  %v1470 = vpop.f32.mrf.mxu0
  %1471 = vmatprep.mubr.f32.mxu0 0.0
  %1472 = vmatmul.mubr.f32.gmra.mxu0 %v1364
  %v1473 = vpop.f32.mrf.mxu0
  %v1474 = vadd.f32 0.0, %v1473
  %v1475 = vpop.f32.mrf.mxu0
  %1476 = vmatprep.mubr.f32.mxu0 0.0
  %1477 = vmatmul.mubr.f32.gmra.mxu0 %v1367
  %v1478 = vpop.f32.mrf.mxu0
  %v1479 = vadd.f32 0.0, %v1478
  %v1480 = vpop.f32.mrf.mxu0
  %1481 = vmatprep.mubr.f32.mxu0 0.0
  %1482 = vmatmul.mubr.f32.gmra.mxu0 %v1370
  %v1483 = vpop.f32.mrf.mxu0
  %v1484 = vadd.f32 0.0, %v1483
  %v1485 = vpop.f32.mrf.mxu0
  %1486 = vmatprep.mubr.f32.mxu0 0.0
  %1487 = vmatmul.mubr.f32.gmra.mxu0 %v1373
  %v1488 = vpop.f32.mrf.mxu0
  %v1489 = vadd.f32 0.0, %v1488
  %v1490 = vpop.f32.mrf.mxu0
  %1491 = vmatprep.mubr.f32.mxu0 0.0
  %1492 = vmatmul.mubr.f32.gmra.mxu0 %v1376
  %v1493 = vpop.f32.mrf.mxu0
  %v1494 = vadd.f32 0.0, %v1493
  %v1495 = vpop.f32.mrf.mxu0
  %1496 = vmatprep.mubr.f32.mxu0 0.0
  %1497 = vmatmul.mubr.f32.gmra.mxu0 %v1379
  %v1498 = vpop.f32.mrf.mxu0
  %v1499 = vadd.f32 0.0, %v1498
  %v1500 = vpop.f32.mrf.mxu0
  %1501 = vmatprep.mubr.f32.mxu0 0.0
  %1502 = vmatmul.mubr.f32.gmra.mxu0 %v1382
  %v1503 = vpop.f32.mrf.mxu0
  %v1504 = vadd.f32 0.0, %v1503
  %v1505 = vpop.f32.mrf.mxu0
  %1506 = vmatprep.mubr.f32.mxu0 0.0
  %1507 = vmatmul.mubr.f32.gmra.mxu0 %v1385
  %v1508 = vpop.f32.mrf.mxu0
  %v1509 = vadd.f32 0.0, %v1508
  %v1510 = vpop.f32.mrf.mxu0
  %1511 = vdwg.mxu0
  %v1512 = vadd.f32 %v1338, %v1454
  %v1513 = vadd.f32 %v1339, %v1459
  %v1514 = vadd.f32 %v1340, %v1464
  %v1515 = vadd.f32 %v1341, %v1469
  %v1516 = vadd.f32 %v1342, %v1474
  %v1517 = vadd.f32 %v1343, %v1479
  %v1518 = vadd.f32 %v1344, %v1484
  %v1519 = vadd.f32 %v1345, %v1489
  %v1520 = vxor.u32 %v1512, 2147483648
  %v1521 = vxor.u32 %v1513, 2147483648
  %v1522 = vxor.u32 %v1514, 2147483648
  %v1523 = vxor.u32 %v1515, 2147483648
  %v1524 = vxor.u32 %v1516, 2147483648
  %v1525 = vxor.u32 %v1517, 2147483648
  %v1526 = vxor.u32 %v1518, 2147483648
  %v1527 = vxor.u32 %v1519, 2147483648
  %v1528 = vmul.f32 %v1520, 1.442695
  %v1529 = vpow.pop %v1528
  %v1530 = vmul.f32 %v1521, 1.442695
  %v1531 = vpow.pop %v1530
  %v1532 = vmul.f32 %v1522, 1.442695
  %v1533 = vpow.pop %v1532
  %v1534 = vmul.f32 %v1523, 1.442695
  %v1535 = vpow.pop %v1534
  %v1536 = vmul.f32 %v1524, 1.442695
  %v1537 = vpow.pop %v1536
  %v1538 = vmul.f32 %v1525, 1.442695
  %v1539 = vpow.pop %v1538
  %v1540 = vmul.f32 %v1526, 1.442695
  %v1541 = vpow.pop %v1540
  %v1542 = vmul.f32 %v1527, 1.442695
  %v1543 = vpow.pop %v1542
  %v1544 = vadd.f32 %v1529, 1.0
  %v1545 = vadd.f32 %v1531, 1.0
  %v1546 = vadd.f32 %v1533, 1.0
  %v1547 = vadd.f32 %v1535, 1.0
  %v1548 = vadd.f32 %v1537, 1.0
  %v1549 = vadd.f32 %v1539, 1.0
  %v1550 = vadd.f32 %v1541, 1.0
  %v1551 = vadd.f32 %v1543, 1.0
  %v1552 = vrcp.pop %v1544
  %v1553 = vmul.f32 1.0, %v1552
  %v1554 = vrcp.pop %v1545
  %v1555 = vmul.f32 1.0, %v1554
  %v1556 = vrcp.pop %v1546
  %v1557 = vmul.f32 1.0, %v1556
  %v1558 = vrcp.pop %v1547
  %v1559 = vmul.f32 1.0, %v1558
  %v1560 = vrcp.pop %v1548
  %v1561 = vmul.f32 1.0, %v1560
  %v1562 = vrcp.pop %v1549
  %v1563 = vmul.f32 1.0, %v1562
  %v1564 = vrcp.pop %v1550
  %v1565 = vmul.f32 1.0, %v1564
  %v1566 = vrcp.pop %v1551
  %v1567 = vmul.f32 1.0, %v1566
  %v1568 = vadd.f32 %v1494, %v1317
  %v1569 = vadd.f32 %v1499, %v1322
  %v1570 = vadd.f32 %v1504, %v1327
  %v1571 = vadd.f32 %v1509, %v1332
  %v1572 = vmul.f32 %v1553, %v1568
  %v1573 = vmul.f32 %v1555, %v1569
  %v1574 = vmul.f32 %v1557, %v1570
  %v1575 = vmul.f32 %v1559, %v1571
  %v1576 = vadd.f32 %v1346, %v1572
  %v1577 = vadd.f32 %v1347, %v1573
  %v1578 = vadd.f32 %v1348, %v1574
  %v1579 = vadd.f32 %v1349, %v1575
  %v1580 = vtanh.pop %v1576
  %v1581 = vtanh.pop %v1577
  %v1582 = vtanh.pop %v1578
  %v1583 = vtanh.pop %v1579
  %v1584 = vsub.f32 %v1334, %v1580
  %v1585 = vsub.f32 %v1335, %v1581
  %v1586 = vsub.f32 %v1336, %v1582
  %v1587 = vsub.f32 %v1337, %v1583
  %v1588 = vmul.f32 %v1561, %v1584
  %v1589 = vmul.f32 %v1563, %v1585
  %v1590 = vmul.f32 %v1565, %v1586
  %v1591 = vmul.f32 %v1567, %v1587
  %v1592 = vadd.f32 %v1580, %v1588
  %v1593 = vadd.f32 %v1581, %v1589
  %v1594 = vadd.f32 %v1582, %v1590
  %v1595 = vadd.f32 %v1583, %v1591
  %1596 = vst [vmem:[#allocation4] sm:$0xff] %v1592
  %1597 = vst [vmem:[#allocation4 + $0x8] sm:$0xff] %v1593
  %1598 = vst [vmem:[#allocation4 + $0x10] sm:$0xff] %v1594
  %1599 = vst [vmem:[#allocation4 + $0x18] sm:$0xff] %v1595
  %v1600 = vld [vmem:[%s439] sm:$0xff]
  %v1601 = vld [vmem:[%s439 + $0x8] sm:$0xff]
  %v1602 = vld [vmem:[%s439 + $0x10] sm:$0xff]
  %v1603 = vld [vmem:[%s439 + $0x18] sm:$0xff]
  %v1604 = vld [vmem:[%s439 + $0x20] sm:$0xff]
  %v1605 = vld [vmem:[%s439 + $0x28] sm:$0xff]
  %v1606 = vld [vmem:[%s439 + $0x30] sm:$0xff]
  %v1607 = vld [vmem:[%s439 + $0x38] sm:$0xff]
  %v1608 = vld [vmem:[%s439 + $0x40] sm:$0xff]
  %v1609 = vld [vmem:[%s439 + $0x48] sm:$0xff]
  %v1610 = vld [vmem:[%s439 + $0x50] sm:$0xff]
  %v1611 = vld [vmem:[%s439 + $0x58] sm:$0xff]
  %1612 = vmatprep.subr.mxu0 0.0
  %1613 = vmatpush1.msra.mxu0 0.0
  %1614 = vmatprep.subr.mxu0 0.0
  %1615 = vmatpush1.msra.mxu0 0.0
  %1616 = vmatprep.subr.mxu0 0.0
  %1617 = vmatpush1.msra.mxu0 0.0
  %1618 = vmatprep.subr.mxu0 0.0
  %1619 = vmatpush1.msra.mxu0 0.0
  %1620 = vmatprep.subr.mxu0 0.0
  %1621 = vmatpush1.msra.mxu0 0.0
  %1622 = vmatprep.subr.mxu0 0.0
  %1623 = vmatpush1.msra.mxu0 0.0
  %1624 = vmatprep.subr.mxu0 0.0
  %1625 = vmatpush1.msra.mxu0 0.0
  %1626 = vmatprep.subr.mxu0 0.0
  %1627 = vmatpush1.msra.mxu0 0.0
  %1628 = vmatprep.subr.mxu0 0.0
  %1629 = vmatpush1.msra.mxu0 0.0
  %1630 = vmatprep.subr.mxu0 0.0
  %1631 = vmatpush1.msra.mxu0 0.0
  %1632 = vmatprep.subr.mxu0 0.0
  %1633 = vmatpush1.msra.mxu0 0.0
  %1634 = vmatprep.subr.mxu0 0.0
  %1635 = vmatpush1.msra.mxu0 0.0
  %1636 = vmatprep.subr.mxu0 0.0
  %1637 = vmatpush1.msra.mxu0 %v1595
  %1638 = vmatprep.subr.mxu0 0.0
  %1639 = vmatpush1.msra.mxu0 %v1594
  %1640 = vmatprep.subr.mxu0 0.0
  %1641 = vmatpush1.msra.mxu0 %v1593
  %1642 = vmatprep.subr.mxu0 0.0
  %1643 = vmatpush1.msra.mxu0 %v1592
  %1644 = vmatprep.subr.mxu0 0.0
  %1645 = vmatpush2.msra.mxu0 0.0
  %1646 = vmatprep.subr.mxu0 0.0
  %1647 = vmatpush2.msra.mxu0 0.0
  %1648 = vmatprep.subr.mxu0 0.0
  %1649 = vmatpush2.msra.mxu0 0.0
  %1650 = vmatprep.subr.mxu0 0.0
  %1651 = vmatpush2.msra.mxu0 0.0
  %1652 = vmatprep.subr.mxu0 0.0
  %1653 = vmatpush2.msra.mxu0 0.0
  %1654 = vmatprep.subr.mxu0 0.0
  %1655 = vmatpush2.msra.mxu0 0.0
  %1656 = vmatprep.subr.mxu0 0.0
  %1657 = vmatpush2.msra.mxu0 0.0
  %1658 = vmatprep.subr.mxu0 0.0
  %1659 = vmatpush2.msra.mxu0 0.0
  %1660 = vmatprep.subr.mxu0 0.0
  %1661 = vmatpush2.msra.mxu0 0.0
  %1662 = vmatprep.subr.mxu0 0.0
  %1663 = vmatpush2.msra.mxu0 0.0
  %1664 = vmatprep.subr.mxu0 0.0
  %1665 = vmatpush2.msra.mxu0 0.0
  %1666 = vmatprep.subr.mxu0 0.0
  %1667 = vmatpush2.msra.mxu0 0.0
  %1668 = vmatprep.subr.mxu0 0.0
  %1669 = vmatpush2.msra.mxu0 0.0
  %1670 = vmatprep.subr.mxu0 0.0
  %1671 = vmatpush2.msra.mxu0 0.0
  %1672 = vmatprep.subr.mxu0 0.0
  %1673 = vmatpush2.msra.mxu0 0.0
  %1674 = vmatprep.subr.mxu0 0.0
  %1675 = vmatpush2.msra.mxu0 0.0
  %1676 = vmatprep.mubr.f32.mxu0 0.0
  %1677 = vmatmul.mubr.f32.gmra.mxu0 %v1352
  %v1678 = vpop.f32.mrf.mxu0
  %v1679 = vadd.f32 0.0, %v1678
  %v1680 = vpop.f32.mrf.mxu0
  %1681 = vmatprep.mubr.f32.mxu0 0.0
  %1682 = vmatmul.mubr.f32.gmra.mxu0 %v1355
  %v1683 = vpop.f32.mrf.mxu0
  %v1684 = vadd.f32 0.0, %v1683
  %v1685 = vpop.f32.mrf.mxu0
  %1686 = vmatprep.mubr.f32.mxu0 0.0
  %1687 = vmatmul.mubr.f32.gmra.mxu0 %v1358
  %v1688 = vpop.f32.mrf.mxu0
  %v1689 = vadd.f32 0.0, %v1688
  %v1690 = vpop.f32.mrf.mxu0
  %1691 = vmatprep.mubr.f32.mxu0 0.0
  %1692 = vmatmul.mubr.f32.gmra.mxu0 %v1361
  %v1693 = vpop.f32.mrf.mxu0
  %v1694 = vadd.f32 0.0, %v1693
  %v1695 = vpop.f32.mrf.mxu0
  %1696 = vmatprep.mubr.f32.mxu0 0.0
  %1697 = vmatmul.mubr.f32.gmra.mxu0 %v1364
  %v1698 = vpop.f32.mrf.mxu0
  %v1699 = vadd.f32 0.0, %v1698
  %v1700 = vpop.f32.mrf.mxu0
  %1701 = vmatprep.mubr.f32.mxu0 0.0
  %1702 = vmatmul.mubr.f32.gmra.mxu0 %v1367
  %v1703 = vpop.f32.mrf.mxu0
  %v1704 = vadd.f32 0.0, %v1703
  %v1705 = vpop.f32.mrf.mxu0
  %1706 = vmatprep.mubr.f32.mxu0 0.0
  %1707 = vmatmul.mubr.f32.gmra.mxu0 %v1370
  %v1708 = vpop.f32.mrf.mxu0
  %v1709 = vadd.f32 0.0, %v1708
  %v1710 = vpop.f32.mrf.mxu0
  %1711 = vmatprep.mubr.f32.mxu0 0.0
  %1712 = vmatmul.mubr.f32.gmra.mxu0 %v1373
  %v1713 = vpop.f32.mrf.mxu0
  %v1714 = vadd.f32 0.0, %v1713
  %v1715 = vpop.f32.mrf.mxu0
  %1716 = vmatprep.mubr.f32.mxu0 0.0
  %1717 = vmatmul.mubr.f32.gmra.mxu0 %v1376
  %v1718 = vpop.f32.mrf.mxu0
  %v1719 = vadd.f32 0.0, %v1718
  %v1720 = vpop.f32.mrf.mxu0
  %1721 = vmatprep.mubr.f32.mxu0 0.0
  %1722 = vmatmul.mubr.f32.gmra.mxu0 %v1379
  %v1723 = vpop.f32.mrf.mxu0
  %v1724 = vadd.f32 0.0, %v1723
  %v1725 = vpop.f32.mrf.mxu0
  %1726 = vmatprep.mubr.f32.mxu0 0.0
  %1727 = vmatmul.mubr.f32.gmra.mxu0 %v1382
  %v1728 = vpop.f32.mrf.mxu0
  %v1729 = vadd.f32 0.0, %v1728
  %v1730 = vpop.f32.mrf.mxu0
  %1731 = vmatprep.mubr.f32.mxu0 0.0
  %1732 = vmatmul.mubr.f32.gmra.mxu0 %v1385
  %v1733 = vpop.f32.mrf.mxu0
  %v1734 = vadd.f32 0.0, %v1733
  %v1735 = vpop.f32.mrf.mxu0
  %1736 = vdwg.mxu0
  %v1737 = vadd.f32 %v1600, %v1679
  %v1738 = vadd.f32 %v1601, %v1684
  %v1739 = vadd.f32 %v1602, %v1689
  %v1740 = vadd.f32 %v1603, %v1694
  %v1741 = vadd.f32 %v1604, %v1699
  %v1742 = vadd.f32 %v1605, %v1704
  %v1743 = vadd.f32 %v1606, %v1709
  %v1744 = vadd.f32 %v1607, %v1714
  %v1745 = vxor.u32 %v1737, 2147483648
  %v1746 = vxor.u32 %v1738, 2147483648
  %v1747 = vxor.u32 %v1739, 2147483648
  %v1748 = vxor.u32 %v1740, 2147483648
  %v1749 = vxor.u32 %v1741, 2147483648
  %v1750 = vxor.u32 %v1742, 2147483648
  %v1751 = vxor.u32 %v1743, 2147483648
  %v1752 = vxor.u32 %v1744, 2147483648
  %v1753 = vmul.f32 %v1745, 1.442695
  %v1754 = vpow.pop %v1753
  %v1755 = vmul.f32 %v1746, 1.442695
  %v1756 = vpow.pop %v1755
  %v1757 = vmul.f32 %v1747, 1.442695
  %v1758 = vpow.pop %v1757
  %v1759 = vmul.f32 %v1748, 1.442695
  %v1760 = vpow.pop %v1759
  %v1761 = vmul.f32 %v1749, 1.442695
  %v1762 = vpow.pop %v1761
  %v1763 = vmul.f32 %v1750, 1.442695
  %v1764 = vpow.pop %v1763
  %v1765 = vmul.f32 %v1751, 1.442695
  %v1766 = vpow.pop %v1765
  %v1767 = vmul.f32 %v1752, 1.442695
  %v1768 = vpow.pop %v1767
  %v1769 = vadd.f32 %v1754, 1.0
  %v1770 = vadd.f32 %v1756, 1.0
  %v1771 = vadd.f32 %v1758, 1.0
  %v1772 = vadd.f32 %v1760, 1.0
  %v1773 = vadd.f32 %v1762, 1.0
  %v1774 = vadd.f32 %v1764, 1.0
  %v1775 = vadd.f32 %v1766, 1.0
  %v1776 = vadd.f32 %v1768, 1.0
  %v1777 = vrcp.pop %v1769
  %v1778 = vmul.f32 1.0, %v1777
  %v1779 = vrcp.pop %v1770
  %v1780 = vmul.f32 1.0, %v1779
  %v1781 = vrcp.pop %v1771
  %v1782 = vmul.f32 1.0, %v1781
  %v1783 = vrcp.pop %v1772
  %v1784 = vmul.f32 1.0, %v1783
  %v1785 = vrcp.pop %v1773
  %v1786 = vmul.f32 1.0, %v1785
  %v1787 = vrcp.pop %v1774
  %v1788 = vmul.f32 1.0, %v1787
  %v1789 = vrcp.pop %v1775
  %v1790 = vmul.f32 1.0, %v1789
  %v1791 = vrcp.pop %v1776
  %v1792 = vmul.f32 1.0, %v1791
  %v1793 = vadd.f32 %v1719, %v1317
  %v1794 = vadd.f32 %v1724, %v1322
  %v1795 = vadd.f32 %v1729, %v1327
  %v1796 = vadd.f32 %v1734, %v1332
  %v1797 = vmul.f32 %v1778, %v1793
  %v1798 = vmul.f32 %v1780, %v1794
  %v1799 = vmul.f32 %v1782, %v1795
  %v1800 = vmul.f32 %v1784, %v1796
  %v1801 = vadd.f32 %v1608, %v1797
  %v1802 = vadd.f32 %v1609, %v1798
  %v1803 = vadd.f32 %v1610, %v1799
  %v1804 = vadd.f32 %v1611, %v1800
  %v1805 = vtanh.pop %v1801
  %v1806 = vtanh.pop %v1802
  %v1807 = vtanh.pop %v1803
  %v1808 = vtanh.pop %v1804
  %v1809 = vsub.f32 %v1592, %v1805
  %v1810 = vsub.f32 %v1593, %v1806
  %v1811 = vsub.f32 %v1594, %v1807
  %v1812 = vsub.f32 %v1595, %v1808
  %v1813 = vmul.f32 %v1786, %v1809
  %v1814 = vmul.f32 %v1788, %v1810
  %v1815 = vmul.f32 %v1790, %v1811
  %v1816 = vmul.f32 %v1792, %v1812
  %v1817 = vadd.f32 %v1805, %v1813
  %v1818 = vadd.f32 %v1806, %v1814
  %v1819 = vadd.f32 %v1807, %v1815
  %v1820 = vadd.f32 %v1808, %v1816
  %s1821 = scalar_lea.vmem [#allocation4], 32
  %1822 = vst [vmem:[%s1821] sm:$0xff] %v1817
  %1823 = vst [vmem:[%s1821 + $0x8] sm:$0xff] %v1818
  %1824 = vst [vmem:[%s1821 + $0x10] sm:$0xff] %v1819
  %1825 = vst [vmem:[%s1821 + $0x18] sm:$0xff] %v1820
  %v1826 = vld [vmem:[%s582] sm:$0xff]
  %v1827 = vld [vmem:[%s582 + $0x8] sm:$0xff]
  %v1828 = vld [vmem:[%s582 + $0x10] sm:$0xff]
  %v1829 = vld [vmem:[%s582 + $0x18] sm:$0xff]
  %v1830 = vld [vmem:[%s582 + $0x20] sm:$0xff]
  %v1831 = vld [vmem:[%s582 + $0x28] sm:$0xff]
  %v1832 = vld [vmem:[%s582 + $0x30] sm:$0xff]
  %v1833 = vld [vmem:[%s582 + $0x38] sm:$0xff]
  %v1834 = vld [vmem:[%s582 + $0x40] sm:$0xff]
  %v1835 = vld [vmem:[%s582 + $0x48] sm:$0xff]
  %v1836 = vld [vmem:[%s582 + $0x50] sm:$0xff]
  %v1837 = vld [vmem:[%s582 + $0x58] sm:$0xff]
  %1838 = vmatprep.subr.mxu0 0.0
  %1839 = vmatpush1.msra.mxu0 0.0
  %1840 = vmatprep.subr.mxu0 0.0
  %1841 = vmatpush1.msra.mxu0 0.0
  %1842 = vmatprep.subr.mxu0 0.0
  %1843 = vmatpush1.msra.mxu0 0.0
  %1844 = vmatprep.subr.mxu0 0.0
  %1845 = vmatpush1.msra.mxu0 0.0
  %1846 = vmatprep.subr.mxu0 0.0
  %1847 = vmatpush1.msra.mxu0 0.0
  %1848 = vmatprep.subr.mxu0 0.0
  %1849 = vmatpush1.msra.mxu0 0.0
  %1850 = vmatprep.subr.mxu0 0.0
  %1851 = vmatpush1.msra.mxu0 0.0
  %1852 = vmatprep.subr.mxu0 0.0
  %1853 = vmatpush1.msra.mxu0 0.0
  %1854 = vmatprep.subr.mxu0 0.0
  %1855 = vmatpush1.msra.mxu0 0.0
  %1856 = vmatprep.subr.mxu0 0.0
  %1857 = vmatpush1.msra.mxu0 0.0
  %1858 = vmatprep.subr.mxu0 0.0
  %1859 = vmatpush1.msra.mxu0 0.0
  %1860 = vmatprep.subr.mxu0 0.0
  %1861 = vmatpush1.msra.mxu0 0.0
  %1862 = vmatprep.subr.mxu0 0.0
  %1863 = vmatpush1.msra.mxu0 %v1820
  %1864 = vmatprep.subr.mxu0 0.0
  %1865 = vmatpush1.msra.mxu0 %v1819
  %1866 = vmatprep.subr.mxu0 0.0
  %1867 = vmatpush1.msra.mxu0 %v1818
  %1868 = vmatprep.subr.mxu0 0.0
  %1869 = vmatpush1.msra.mxu0 %v1817
  %1870 = vmatprep.subr.mxu0 0.0
  %1871 = vmatpush2.msra.mxu0 0.0
  %1872 = vmatprep.subr.mxu0 0.0
  %1873 = vmatpush2.msra.mxu0 0.0
  %1874 = vmatprep.subr.mxu0 0.0
  %1875 = vmatpush2.msra.mxu0 0.0
  %1876 = vmatprep.subr.mxu0 0.0
  %1877 = vmatpush2.msra.mxu0 0.0
  %1878 = vmatprep.subr.mxu0 0.0
  %1879 = vmatpush2.msra.mxu0 0.0
  %1880 = vmatprep.subr.mxu0 0.0
  %1881 = vmatpush2.msra.mxu0 0.0
  %1882 = vmatprep.subr.mxu0 0.0
  %1883 = vmatpush2.msra.mxu0 0.0
  %1884 = vmatprep.subr.mxu0 0.0
  %1885 = vmatpush2.msra.mxu0 0.0
  %1886 = vmatprep.subr.mxu0 0.0
  %1887 = vmatpush2.msra.mxu0 0.0
  %1888 = vmatprep.subr.mxu0 0.0
  %1889 = vmatpush2.msra.mxu0 0.0
  %1890 = vmatprep.subr.mxu0 0.0
  %1891 = vmatpush2.msra.mxu0 0.0
  %1892 = vmatprep.subr.mxu0 0.0
  %1893 = vmatpush2.msra.mxu0 0.0
  %1894 = vmatprep.subr.mxu0 0.0
  %1895 = vmatpush2.msra.mxu0 0.0
  %1896 = vmatprep.subr.mxu0 0.0
  %1897 = vmatpush2.msra.mxu0 0.0
  %1898 = vmatprep.subr.mxu0 0.0
  %1899 = vmatpush2.msra.mxu0 0.0
  %1900 = vmatprep.subr.mxu0 0.0
  %1901 = vmatpush2.msra.mxu0 0.0
  %1902 = vmatprep.mubr.f32.mxu0 0.0
  %1903 = vmatmul.mubr.f32.gmra.mxu0 %v1352
  %v1904 = vpop.f32.mrf.mxu0
  %v1905 = vadd.f32 0.0, %v1904
  %v1906 = vpop.f32.mrf.mxu0
  %1907 = vmatprep.mubr.f32.mxu0 0.0
  %1908 = vmatmul.mubr.f32.gmra.mxu0 %v1355
  %v1909 = vpop.f32.mrf.mxu0
  %v1910 = vadd.f32 0.0, %v1909
  %v1911 = vpop.f32.mrf.mxu0
  %1912 = vmatprep.mubr.f32.mxu0 0.0
  %1913 = vmatmul.mubr.f32.gmra.mxu0 %v1358
  %v1914 = vpop.f32.mrf.mxu0
  %v1915 = vadd.f32 0.0, %v1914
  %v1916 = vpop.f32.mrf.mxu0
  %1917 = vmatprep.mubr.f32.mxu0 0.0
  %1918 = vmatmul.mubr.f32.gmra.mxu0 %v1361
  %v1919 = vpop.f32.mrf.mxu0
  %v1920 = vadd.f32 0.0, %v1919
  %v1921 = vpop.f32.mrf.mxu0
  %1922 = vmatprep.mubr.f32.mxu0 0.0
  %1923 = vmatmul.mubr.f32.gmra.mxu0 %v1364
  %v1924 = vpop.f32.mrf.mxu0
  %v1925 = vadd.f32 0.0, %v1924
  %v1926 = vpop.f32.mrf.mxu0
  %1927 = vmatprep.mubr.f32.mxu0 0.0
  %1928 = vmatmul.mubr.f32.gmra.mxu0 %v1367
  %v1929 = vpop.f32.mrf.mxu0
  %v1930 = vadd.f32 0.0, %v1929
  %v1931 = vpop.f32.mrf.mxu0
  %1932 = vmatprep.mubr.f32.mxu0 0.0
  %1933 = vmatmul.mubr.f32.gmra.mxu0 %v1370
  %v1934 = vpop.f32.mrf.mxu0
  %v1935 = vadd.f32 0.0, %v1934
  %v1936 = vpop.f32.mrf.mxu0
  %1937 = vmatprep.mubr.f32.mxu0 0.0
  %1938 = vmatmul.mubr.f32.gmra.mxu0 %v1373
  %v1939 = vpop.f32.mrf.mxu0
  %v1940 = vadd.f32 0.0, %v1939
  %v1941 = vpop.f32.mrf.mxu0
  %1942 = vmatprep.mubr.f32.mxu0 0.0
  %1943 = vmatmul.mubr.f32.gmra.mxu0 %v1376
  %v1944 = vpop.f32.mrf.mxu0
  %v1945 = vadd.f32 0.0, %v1944
  %v1946 = vpop.f32.mrf.mxu0
  %1947 = vmatprep.mubr.f32.mxu0 0.0
  %1948 = vmatmul.mubr.f32.gmra.mxu0 %v1379
  %v1949 = vpop.f32.mrf.mxu0
  %v1950 = vadd.f32 0.0, %v1949
  %v1951 = vpop.f32.mrf.mxu0
  %1952 = vmatprep.mubr.f32.mxu0 0.0
  %1953 = vmatmul.mubr.f32.gmra.mxu0 %v1382
  %v1954 = vpop.f32.mrf.mxu0
  %v1955 = vadd.f32 0.0, %v1954
  %v1956 = vpop.f32.mrf.mxu0
  %1957 = vmatprep.mubr.f32.mxu0 0.0
  %1958 = vmatmul.mubr.f32.gmra.mxu0 %v1385
  %v1959 = vpop.f32.mrf.mxu0
  %v1960 = vadd.f32 0.0, %v1959
  %v1961 = vpop.f32.mrf.mxu0
  %1962 = vdwg.mxu0
  %v1963 = vadd.f32 %v1826, %v1905
  %v1964 = vadd.f32 %v1827, %v1910
  %v1965 = vadd.f32 %v1828, %v1915
  %v1966 = vadd.f32 %v1829, %v1920
  %v1967 = vadd.f32 %v1830, %v1925
  %v1968 = vadd.f32 %v1831, %v1930
  %v1969 = vadd.f32 %v1832, %v1935
  %v1970 = vadd.f32 %v1833, %v1940
  %v1971 = vxor.u32 %v1963, 2147483648
  %v1972 = vxor.u32 %v1964, 2147483648
  %v1973 = vxor.u32 %v1965, 2147483648
  %v1974 = vxor.u32 %v1966, 2147483648
  %v1975 = vxor.u32 %v1967, 2147483648
  %v1976 = vxor.u32 %v1968, 2147483648
  %v1977 = vxor.u32 %v1969, 2147483648
  %v1978 = vxor.u32 %v1970, 2147483648
  %v1979 = vmul.f32 %v1971, 1.442695
  %v1980 = vpow.pop %v1979
  %v1981 = vmul.f32 %v1972, 1.442695
  %v1982 = vpow.pop %v1981
  %v1983 = vmul.f32 %v1973, 1.442695
  %v1984 = vpow.pop %v1983
  %v1985 = vmul.f32 %v1974, 1.442695
  %v1986 = vpow.pop %v1985
  %v1987 = vmul.f32 %v1975, 1.442695
  %v1988 = vpow.pop %v1987
  %v1989 = vmul.f32 %v1976, 1.442695
  %v1990 = vpow.pop %v1989
  %v1991 = vmul.f32 %v1977, 1.442695
  %v1992 = vpow.pop %v1991
  %v1993 = vmul.f32 %v1978, 1.442695
  %v1994 = vpow.pop %v1993
  %v1995 = vadd.f32 %v1980, 1.0
  %v1996 = vadd.f32 %v1982, 1.0
  %v1997 = vadd.f32 %v1984, 1.0
  %v1998 = vadd.f32 %v1986, 1.0
  %v1999 = vadd.f32 %v1988, 1.0
  %v2000 = vadd.f32 %v1990, 1.0
  %v2001 = vadd.f32 %v1992, 1.0
  %v2002 = vadd.f32 %v1994, 1.0
  %v2003 = vrcp.pop %v1995
  %v2004 = vmul.f32 1.0, %v2003
  %v2005 = vrcp.pop %v1996
  %v2006 = vmul.f32 1.0, %v2005
  %v2007 = vrcp.pop %v1997
  %v2008 = vmul.f32 1.0, %v2007
  %v2009 = vrcp.pop %v1998
  %v2010 = vmul.f32 1.0, %v2009
  %v2011 = vrcp.pop %v1999
  %v2012 = vmul.f32 1.0, %v2011
  %v2013 = vrcp.pop %v2000
  %v2014 = vmul.f32 1.0, %v2013
  %v2015 = vrcp.pop %v2001
  %v2016 = vmul.f32 1.0, %v2015
  %v2017 = vrcp.pop %v2002
  %v2018 = vmul.f32 1.0, %v2017
  %v2019 = vadd.f32 %v1945, %v1317
  %v2020 = vadd.f32 %v1950, %v1322
  %v2021 = vadd.f32 %v1955, %v1327
  %v2022 = vadd.f32 %v1960, %v1332
  %v2023 = vmul.f32 %v2004, %v2019
  %v2024 = vmul.f32 %v2006, %v2020
  %v2025 = vmul.f32 %v2008, %v2021
  %v2026 = vmul.f32 %v2010, %v2022
  %v2027 = vadd.f32 %v1834, %v2023
  %v2028 = vadd.f32 %v1835, %v2024
  %v2029 = vadd.f32 %v1836, %v2025
  %v2030 = vadd.f32 %v1837, %v2026
  %v2031 = vtanh.pop %v2027
  %v2032 = vtanh.pop %v2028
  %v2033 = vtanh.pop %v2029
  %v2034 = vtanh.pop %v2030
  %v2035 = vsub.f32 %v1817, %v2031
  %v2036 = vsub.f32 %v1818, %v2032
  %v2037 = vsub.f32 %v1819, %v2033
  %v2038 = vsub.f32 %v1820, %v2034
  %v2039 = vmul.f32 %v2012, %v2035
  %v2040 = vmul.f32 %v2014, %v2036
  %v2041 = vmul.f32 %v2016, %v2037
  %v2042 = vmul.f32 %v2018, %v2038
  %v2043 = vadd.f32 %v2031, %v2039
  %v2044 = vadd.f32 %v2032, %v2040
  %v2045 = vadd.f32 %v2033, %v2041
  %v2046 = vadd.f32 %v2034, %v2042
  %s2047 = scalar_lea.vmem [#allocation4], 64
  %2048 = vst [vmem:[%s2047] sm:$0xff] %v2043
  %2049 = vst [vmem:[%s2047 + $0x8] sm:$0xff] %v2044
  %2050 = vst [vmem:[%s2047 + $0x10] sm:$0xff] %v2045
  %2051 = vst [vmem:[%s2047 + $0x18] sm:$0xff] %v2046
  %v2052 = vld [vmem:[%s725] sm:$0xff]
  %v2053 = vld [vmem:[%s725 + $0x8] sm:$0xff]
  %v2054 = vld [vmem:[%s725 + $0x10] sm:$0xff]
  %v2055 = vld [vmem:[%s725 + $0x18] sm:$0xff]
  %v2056 = vld [vmem:[%s725 + $0x20] sm:$0xff]
  %v2057 = vld [vmem:[%s725 + $0x28] sm:$0xff]
  %v2058 = vld [vmem:[%s725 + $0x30] sm:$0xff]
  %v2059 = vld [vmem:[%s725 + $0x38] sm:$0xff]
  %v2060 = vld [vmem:[%s725 + $0x40] sm:$0xff]
  %v2061 = vld [vmem:[%s725 + $0x48] sm:$0xff]
  %v2062 = vld [vmem:[%s725 + $0x50] sm:$0xff]
  %v2063 = vld [vmem:[%s725 + $0x58] sm:$0xff]
  %2064 = vmatprep.subr.mxu0 0.0
  %2065 = vmatpush1.msra.mxu0 0.0
  %2066 = vmatprep.subr.mxu0 0.0
  %2067 = vmatpush1.msra.mxu0 0.0
  %2068 = vmatprep.subr.mxu0 0.0
  %2069 = vmatpush1.msra.mxu0 0.0
  %2070 = vmatprep.subr.mxu0 0.0
  %2071 = vmatpush1.msra.mxu0 0.0
  %2072 = vmatprep.subr.mxu0 0.0
  %2073 = vmatpush1.msra.mxu0 0.0
  %2074 = vmatprep.subr.mxu0 0.0
  %2075 = vmatpush1.msra.mxu0 0.0
  %2076 = vmatprep.subr.mxu0 0.0
  %2077 = vmatpush1.msra.mxu0 0.0
  %2078 = vmatprep.subr.mxu0 0.0
  %2079 = vmatpush1.msra.mxu0 0.0
  %2080 = vmatprep.subr.mxu0 0.0
  %2081 = vmatpush1.msra.mxu0 0.0
  %2082 = vmatprep.subr.mxu0 0.0
  %2083 = vmatpush1.msra.mxu0 0.0
  %2084 = vmatprep.subr.mxu0 0.0
  %2085 = vmatpush1.msra.mxu0 0.0
  %2086 = vmatprep.subr.mxu0 0.0
  %2087 = vmatpush1.msra.mxu0 0.0
  %2088 = vmatprep.subr.mxu0 0.0
  %2089 = vmatpush1.msra.mxu0 %v2046
  %2090 = vmatprep.subr.mxu0 0.0
  %2091 = vmatpush1.msra.mxu0 %v2045
  %2092 = vmatprep.subr.mxu0 0.0
  %2093 = vmatpush1.msra.mxu0 %v2044
  %2094 = vmatprep.subr.mxu0 0.0
  %2095 = vmatpush1.msra.mxu0 %v2043
  %2096 = vmatprep.subr.mxu0 0.0
  %2097 = vmatpush2.msra.mxu0 0.0
  %2098 = vmatprep.subr.mxu0 0.0
  %2099 = vmatpush2.msra.mxu0 0.0
  %2100 = vmatprep.subr.mxu0 0.0
  %2101 = vmatpush2.msra.mxu0 0.0
  %2102 = vmatprep.subr.mxu0 0.0
  %2103 = vmatpush2.msra.mxu0 0.0
  %2104 = vmatprep.subr.mxu0 0.0
  %2105 = vmatpush2.msra.mxu0 0.0
  %2106 = vmatprep.subr.mxu0 0.0
  %2107 = vmatpush2.msra.mxu0 0.0
  %2108 = vmatprep.subr.mxu0 0.0
  %2109 = vmatpush2.msra.mxu0 0.0
  %2110 = vmatprep.subr.mxu0 0.0
  %2111 = vmatpush2.msra.mxu0 0.0
  %2112 = vmatprep.subr.mxu0 0.0
  %2113 = vmatpush2.msra.mxu0 0.0
  %2114 = vmatprep.subr.mxu0 0.0
  %2115 = vmatpush2.msra.mxu0 0.0
  %2116 = vmatprep.subr.mxu0 0.0
  %2117 = vmatpush2.msra.mxu0 0.0
  %2118 = vmatprep.subr.mxu0 0.0
  %2119 = vmatpush2.msra.mxu0 0.0
  %2120 = vmatprep.subr.mxu0 0.0
  %2121 = vmatpush2.msra.mxu0 0.0
  %2122 = vmatprep.subr.mxu0 0.0
  %2123 = vmatpush2.msra.mxu0 0.0
  %2124 = vmatprep.subr.mxu0 0.0
  %2125 = vmatpush2.msra.mxu0 0.0
  %2126 = vmatprep.subr.mxu0 0.0
  %2127 = vmatpush2.msra.mxu0 0.0
  %2128 = vmatprep.mubr.f32.mxu0 0.0
  %2129 = vmatmul.mubr.f32.gmra.mxu0 %v1352
  %v2130 = vpop.f32.mrf.mxu0
  %v2131 = vadd.f32 0.0, %v2130
  %v2132 = vpop.f32.mrf.mxu0
  %2133 = vmatprep.mubr.f32.mxu0 0.0
  %2134 = vmatmul.mubr.f32.gmra.mxu0 %v1355
  %v2135 = vpop.f32.mrf.mxu0
  %v2136 = vadd.f32 0.0, %v2135
  %v2137 = vpop.f32.mrf.mxu0
  %2138 = vmatprep.mubr.f32.mxu0 0.0
  %2139 = vmatmul.mubr.f32.gmra.mxu0 %v1358
  %v2140 = vpop.f32.mrf.mxu0
  %v2141 = vadd.f32 0.0, %v2140
  %v2142 = vpop.f32.mrf.mxu0
  %2143 = vmatprep.mubr.f32.mxu0 0.0
  %2144 = vmatmul.mubr.f32.gmra.mxu0 %v1361
  %v2145 = vpop.f32.mrf.mxu0
  %v2146 = vadd.f32 0.0, %v2145
  %v2147 = vpop.f32.mrf.mxu0
  %2148 = vmatprep.mubr.f32.mxu0 0.0
  %2149 = vmatmul.mubr.f32.gmra.mxu0 %v1364
  %v2150 = vpop.f32.mrf.mxu0
  %v2151 = vadd.f32 0.0, %v2150
  %v2152 = vpop.f32.mrf.mxu0
  %2153 = vmatprep.mubr.f32.mxu0 0.0
  %2154 = vmatmul.mubr.f32.gmra.mxu0 %v1367
  %v2155 = vpop.f32.mrf.mxu0
  %v2156 = vadd.f32 0.0, %v2155
  %v2157 = vpop.f32.mrf.mxu0
  %2158 = vmatprep.mubr.f32.mxu0 0.0
  %2159 = vmatmul.mubr.f32.gmra.mxu0 %v1370
  %v2160 = vpop.f32.mrf.mxu0
  %v2161 = vadd.f32 0.0, %v2160
  %v2162 = vpop.f32.mrf.mxu0
  %2163 = vmatprep.mubr.f32.mxu0 0.0
  %2164 = vmatmul.mubr.f32.gmra.mxu0 %v1373
  %v2165 = vpop.f32.mrf.mxu0
  %v2166 = vadd.f32 0.0, %v2165
  %v2167 = vpop.f32.mrf.mxu0
  %2168 = vmatprep.mubr.f32.mxu0 0.0
  %2169 = vmatmul.mubr.f32.gmra.mxu0 %v1376
  %v2170 = vpop.f32.mrf.mxu0
  %v2171 = vadd.f32 0.0, %v2170
  %v2172 = vpop.f32.mrf.mxu0
  %2173 = vmatprep.mubr.f32.mxu0 0.0
  %2174 = vmatmul.mubr.f32.gmra.mxu0 %v1379
  %v2175 = vpop.f32.mrf.mxu0
  %v2176 = vadd.f32 0.0, %v2175
  %v2177 = vpop.f32.mrf.mxu0
  %2178 = vmatprep.mubr.f32.mxu0 0.0
  %2179 = vmatmul.mubr.f32.gmra.mxu0 %v1382
  %v2180 = vpop.f32.mrf.mxu0
  %v2181 = vadd.f32 0.0, %v2180
  %v2182 = vpop.f32.mrf.mxu0
  %2183 = vmatprep.mubr.f32.mxu0 0.0
  %2184 = vmatmul.mubr.f32.gmra.mxu0 %v1385
  %v2185 = vpop.f32.mrf.mxu0
  %v2186 = vadd.f32 0.0, %v2185
  %v2187 = vpop.f32.mrf.mxu0
  %2188 = vdwg.mxu0
  %v2189 = vadd.f32 %v2052, %v2131
  %v2190 = vadd.f32 %v2053, %v2136
  %v2191 = vadd.f32 %v2054, %v2141
  %v2192 = vadd.f32 %v2055, %v2146
  %v2193 = vadd.f32 %v2056, %v2151
  %v2194 = vadd.f32 %v2057, %v2156
  %v2195 = vadd.f32 %v2058, %v2161
  %v2196 = vadd.f32 %v2059, %v2166
  %v2197 = vxor.u32 %v2189, 2147483648
  %v2198 = vxor.u32 %v2190, 2147483648
  %v2199 = vxor.u32 %v2191, 2147483648
  %v2200 = vxor.u32 %v2192, 2147483648
  %v2201 = vxor.u32 %v2193, 2147483648
  %v2202 = vxor.u32 %v2194, 2147483648
  %v2203 = vxor.u32 %v2195, 2147483648
  %v2204 = vxor.u32 %v2196, 2147483648
  %v2205 = vmul.f32 %v2197, 1.442695
  %v2206 = vpow.pop %v2205
  %v2207 = vmul.f32 %v2198, 1.442695
  %v2208 = vpow.pop %v2207
  %v2209 = vmul.f32 %v2199, 1.442695
  %v2210 = vpow.pop %v2209
  %v2211 = vmul.f32 %v2200, 1.442695
  %v2212 = vpow.pop %v2211
  %v2213 = vmul.f32 %v2201, 1.442695
  %v2214 = vpow.pop %v2213
  %v2215 = vmul.f32 %v2202, 1.442695
  %v2216 = vpow.pop %v2215
  %v2217 = vmul.f32 %v2203, 1.442695
  %v2218 = vpow.pop %v2217
  %v2219 = vmul.f32 %v2204, 1.442695
  %v2220 = vpow.pop %v2219
  %v2221 = vadd.f32 %v2206, 1.0
  %v2222 = vadd.f32 %v2208, 1.0
  %v2223 = vadd.f32 %v2210, 1.0
  %v2224 = vadd.f32 %v2212, 1.0
  %v2225 = vadd.f32 %v2214, 1.0
  %v2226 = vadd.f32 %v2216, 1.0
  %v2227 = vadd.f32 %v2218, 1.0
  %v2228 = vadd.f32 %v2220, 1.0
  %v2229 = vrcp.pop %v2221
  %v2230 = vmul.f32 1.0, %v2229
  %v2231 = vrcp.pop %v2222
  %v2232 = vmul.f32 1.0, %v2231
  %v2233 = vrcp.pop %v2223
  %v2234 = vmul.f32 1.0, %v2233
  %v2235 = vrcp.pop %v2224
  %v2236 = vmul.f32 1.0, %v2235
  %v2237 = vrcp.pop %v2225
  %v2238 = vmul.f32 1.0, %v2237
  %v2239 = vrcp.pop %v2226
  %v2240 = vmul.f32 1.0, %v2239
  %v2241 = vrcp.pop %v2227
  %v2242 = vmul.f32 1.0, %v2241
  %v2243 = vrcp.pop %v2228
  %v2244 = vmul.f32 1.0, %v2243
  %v2245 = vadd.f32 %v2171, %v1317
  %v2246 = vadd.f32 %v2176, %v1322
  %v2247 = vadd.f32 %v2181, %v1327
  %v2248 = vadd.f32 %v2186, %v1332
  %v2249 = vmul.f32 %v2230, %v2245
  %v2250 = vmul.f32 %v2232, %v2246
  %v2251 = vmul.f32 %v2234, %v2247
  %v2252 = vmul.f32 %v2236, %v2248
  %v2253 = vadd.f32 %v2060, %v2249
  %v2254 = vadd.f32 %v2061, %v2250
  %v2255 = vadd.f32 %v2062, %v2251
  %v2256 = vadd.f32 %v2063, %v2252
  %v2257 = vtanh.pop %v2253
  %v2258 = vtanh.pop %v2254
  %v2259 = vtanh.pop %v2255
  %v2260 = vtanh.pop %v2256
  %v2261 = vsub.f32 %v2043, %v2257
  %v2262 = vsub.f32 %v2044, %v2258
  %v2263 = vsub.f32 %v2045, %v2259
  %v2264 = vsub.f32 %v2046, %v2260
  %v2265 = vmul.f32 %v2238, %v2261
  %v2266 = vmul.f32 %v2240, %v2262
  %v2267 = vmul.f32 %v2242, %v2263
  %v2268 = vmul.f32 %v2244, %v2264
  %v2269 = vadd.f32 %v2257, %v2265
  %v2270 = vadd.f32 %v2258, %v2266
  %v2271 = vadd.f32 %v2259, %v2267
  %v2272 = vadd.f32 %v2260, %v2268
  %s2273 = scalar_lea.vmem [#allocation4], 96
  %2274 = vst [vmem:[%s2273] sm:$0xff] %v2269
  %2275 = vst [vmem:[%s2273 + $0x8] sm:$0xff] %v2270
  %2276 = vst [vmem:[%s2273 + $0x10] sm:$0xff] %v2271
  %2277 = vst [vmem:[%s2273 + $0x18] sm:$0xff] %v2272
  %v2278 = vld [vmem:[%s868] sm:$0xff]
  %v2279 = vld [vmem:[%s868 + $0x8] sm:$0xff]
  %v2280 = vld [vmem:[%s868 + $0x10] sm:$0xff]
  %v2281 = vld [vmem:[%s868 + $0x18] sm:$0xff]
  %v2282 = vld [vmem:[%s868 + $0x20] sm:$0xff]
  %v2283 = vld [vmem:[%s868 + $0x28] sm:$0xff]
  %v2284 = vld [vmem:[%s868 + $0x30] sm:$0xff]
  %v2285 = vld [vmem:[%s868 + $0x38] sm:$0xff]
  %v2286 = vld [vmem:[%s868 + $0x40] sm:$0xff]
  %v2287 = vld [vmem:[%s868 + $0x48] sm:$0xff]
  %v2288 = vld [vmem:[%s868 + $0x50] sm:$0xff]
  %v2289 = vld [vmem:[%s868 + $0x58] sm:$0xff]
  %2290 = vmatprep.subr.mxu0 0.0
  %2291 = vmatpush1.msra.mxu0 0.0
  %2292 = vmatprep.subr.mxu0 0.0
  %2293 = vmatpush1.msra.mxu0 0.0
  %2294 = vmatprep.subr.mxu0 0.0
  %2295 = vmatpush1.msra.mxu0 0.0
  %2296 = vmatprep.subr.mxu0 0.0
  %2297 = vmatpush1.msra.mxu0 0.0
  %2298 = vmatprep.subr.mxu0 0.0
  %2299 = vmatpush1.msra.mxu0 0.0
  %2300 = vmatprep.subr.mxu0 0.0
  %2301 = vmatpush1.msra.mxu0 0.0
  %2302 = vmatprep.subr.mxu0 0.0
  %2303 = vmatpush1.msra.mxu0 0.0
  %2304 = vmatprep.subr.mxu0 0.0
  %2305 = vmatpush1.msra.mxu0 0.0
  %2306 = vmatprep.subr.mxu0 0.0
  %2307 = vmatpush1.msra.mxu0 0.0
  %2308 = vmatprep.subr.mxu0 0.0
  %2309 = vmatpush1.msra.mxu0 0.0
  %2310 = vmatprep.subr.mxu0 0.0
  %2311 = vmatpush1.msra.mxu0 0.0
  %2312 = vmatprep.subr.mxu0 0.0
  %2313 = vmatpush1.msra.mxu0 0.0
  %2314 = vmatprep.subr.mxu0 0.0
  %2315 = vmatpush1.msra.mxu0 %v2272
  %2316 = vmatprep.subr.mxu0 0.0
  %2317 = vmatpush1.msra.mxu0 %v2271
  %2318 = vmatprep.subr.mxu0 0.0
  %2319 = vmatpush1.msra.mxu0 %v2270
  %2320 = vmatprep.subr.mxu0 0.0
  %2321 = vmatpush1.msra.mxu0 %v2269
  %2322 = vmatprep.subr.mxu0 0.0
  %2323 = vmatpush2.msra.mxu0 0.0
  %2324 = vmatprep.subr.mxu0 0.0
  %2325 = vmatpush2.msra.mxu0 0.0
  %2326 = vmatprep.subr.mxu0 0.0
  %2327 = vmatpush2.msra.mxu0 0.0
  %2328 = vmatprep.subr.mxu0 0.0
  %2329 = vmatpush2.msra.mxu0 0.0
  %2330 = vmatprep.subr.mxu0 0.0
  %2331 = vmatpush2.msra.mxu0 0.0
  %2332 = vmatprep.subr.mxu0 0.0
  %2333 = vmatpush2.msra.mxu0 0.0
  %2334 = vmatprep.subr.mxu0 0.0
  %2335 = vmatpush2.msra.mxu0 0.0
  %2336 = vmatprep.subr.mxu0 0.0
  %2337 = vmatpush2.msra.mxu0 0.0
  %2338 = vmatprep.subr.mxu0 0.0
  %2339 = vmatpush2.msra.mxu0 0.0
  %2340 = vmatprep.subr.mxu0 0.0
  %2341 = vmatpush2.msra.mxu0 0.0
  %2342 = vmatprep.subr.mxu0 0.0
  %2343 = vmatpush2.msra.mxu0 0.0
  %2344 = vmatprep.subr.mxu0 0.0
  %2345 = vmatpush2.msra.mxu0 0.0
  %2346 = vmatprep.subr.mxu0 0.0
  %2347 = vmatpush2.msra.mxu0 0.0
  %2348 = vmatprep.subr.mxu0 0.0
  %2349 = vmatpush2.msra.mxu0 0.0
  %2350 = vmatprep.subr.mxu0 0.0
  %2351 = vmatpush2.msra.mxu0 0.0
  %2352 = vmatprep.subr.mxu0 0.0
  %2353 = vmatpush2.msra.mxu0 0.0
  %2354 = vmatprep.mubr.f32.mxu0 0.0
  %2355 = vmatmul.mubr.f32.gmra.mxu0 %v1352
  %v2356 = vpop.f32.mrf.mxu0
  %v2357 = vadd.f32 0.0, %v2356
  %v2358 = vpop.f32.mrf.mxu0
  %2359 = vmatprep.mubr.f32.mxu0 0.0
  %2360 = vmatmul.mubr.f32.gmra.mxu0 %v1355
  %v2361 = vpop.f32.mrf.mxu0
  %v2362 = vadd.f32 0.0, %v2361
  %v2363 = vpop.f32.mrf.mxu0
  %2364 = vmatprep.mubr.f32.mxu0 0.0
  %2365 = vmatmul.mubr.f32.gmra.mxu0 %v1358
  %v2366 = vpop.f32.mrf.mxu0
  %v2367 = vadd.f32 0.0, %v2366
  %v2368 = vpop.f32.mrf.mxu0
  %2369 = vmatprep.mubr.f32.mxu0 0.0
  %2370 = vmatmul.mubr.f32.gmra.mxu0 %v1361
  %v2371 = vpop.f32.mrf.mxu0
  %v2372 = vadd.f32 0.0, %v2371
  %v2373 = vpop.f32.mrf.mxu0
  %2374 = vmatprep.mubr.f32.mxu0 0.0
  %2375 = vmatmul.mubr.f32.gmra.mxu0 %v1364
  %v2376 = vpop.f32.mrf.mxu0
  %v2377 = vadd.f32 0.0, %v2376
  %v2378 = vpop.f32.mrf.mxu0
  %2379 = vmatprep.mubr.f32.mxu0 0.0
  %2380 = vmatmul.mubr.f32.gmra.mxu0 %v1367
  %v2381 = vpop.f32.mrf.mxu0
  %v2382 = vadd.f32 0.0, %v2381
  %v2383 = vpop.f32.mrf.mxu0
  %2384 = vmatprep.mubr.f32.mxu0 0.0
  %2385 = vmatmul.mubr.f32.gmra.mxu0 %v1370
  %v2386 = vpop.f32.mrf.mxu0
  %v2387 = vadd.f32 0.0, %v2386
  %v2388 = vpop.f32.mrf.mxu0
  %2389 = vmatprep.mubr.f32.mxu0 0.0
  %2390 = vmatmul.mubr.f32.gmra.mxu0 %v1373
  %v2391 = vpop.f32.mrf.mxu0
  %v2392 = vadd.f32 0.0, %v2391
  %v2393 = vpop.f32.mrf.mxu0
  %2394 = vmatprep.mubr.f32.mxu0 0.0
  %2395 = vmatmul.mubr.f32.gmra.mxu0 %v1376
  %v2396 = vpop.f32.mrf.mxu0
  %v2397 = vadd.f32 0.0, %v2396
  %v2398 = vpop.f32.mrf.mxu0
  %2399 = vmatprep.mubr.f32.mxu0 0.0
  %2400 = vmatmul.mubr.f32.gmra.mxu0 %v1379
  %v2401 = vpop.f32.mrf.mxu0
  %v2402 = vadd.f32 0.0, %v2401
  %v2403 = vpop.f32.mrf.mxu0
  %2404 = vmatprep.mubr.f32.mxu0 0.0
  %2405 = vmatmul.mubr.f32.gmra.mxu0 %v1382
  %v2406 = vpop.f32.mrf.mxu0
  %v2407 = vadd.f32 0.0, %v2406
  %v2408 = vpop.f32.mrf.mxu0
  %2409 = vmatprep.mubr.f32.mxu0 0.0
  %2410 = vmatmul.mubr.f32.gmra.mxu0 %v1385
  %v2411 = vpop.f32.mrf.mxu0
  %v2412 = vadd.f32 0.0, %v2411
  %v2413 = vpop.f32.mrf.mxu0
  %2414 = vdwg.mxu0
  %v2415 = vadd.f32 %v2278, %v2357
  %v2416 = vadd.f32 %v2279, %v2362
  %v2417 = vadd.f32 %v2280, %v2367
  %v2418 = vadd.f32 %v2281, %v2372
  %v2419 = vadd.f32 %v2282, %v2377
  %v2420 = vadd.f32 %v2283, %v2382
  %v2421 = vadd.f32 %v2284, %v2387
  %v2422 = vadd.f32 %v2285, %v2392
  %v2423 = vxor.u32 %v2415, 2147483648
  %v2424 = vxor.u32 %v2416, 2147483648
  %v2425 = vxor.u32 %v2417, 2147483648
  %v2426 = vxor.u32 %v2418, 2147483648
  %v2427 = vxor.u32 %v2419, 2147483648
  %v2428 = vxor.u32 %v2420, 2147483648
  %v2429 = vxor.u32 %v2421, 2147483648
  %v2430 = vxor.u32 %v2422, 2147483648
  %v2431 = vmul.f32 %v2423, 1.442695
  %v2432 = vpow.pop %v2431
  %v2433 = vmul.f32 %v2424, 1.442695
  %v2434 = vpow.pop %v2433
  %v2435 = vmul.f32 %v2425, 1.442695
  %v2436 = vpow.pop %v2435
  %v2437 = vmul.f32 %v2426, 1.442695
  %v2438 = vpow.pop %v2437
  %v2439 = vmul.f32 %v2427, 1.442695
  %v2440 = vpow.pop %v2439
  %v2441 = vmul.f32 %v2428, 1.442695
  %v2442 = vpow.pop %v2441
  %v2443 = vmul.f32 %v2429, 1.442695
  %v2444 = vpow.pop %v2443
  %v2445 = vmul.f32 %v2430, 1.442695
  %v2446 = vpow.pop %v2445
  %v2447 = vadd.f32 %v2432, 1.0
  %v2448 = vadd.f32 %v2434, 1.0
  %v2449 = vadd.f32 %v2436, 1.0
  %v2450 = vadd.f32 %v2438, 1.0
  %v2451 = vadd.f32 %v2440, 1.0
  %v2452 = vadd.f32 %v2442, 1.0
  %v2453 = vadd.f32 %v2444, 1.0
  %v2454 = vadd.f32 %v2446, 1.0
  %v2455 = vrcp.pop %v2447
  %v2456 = vmul.f32 1.0, %v2455
  %v2457 = vrcp.pop %v2448
  %v2458 = vmul.f32 1.0, %v2457
  %v2459 = vrcp.pop %v2449
  %v2460 = vmul.f32 1.0, %v2459
  %v2461 = vrcp.pop %v2450
  %v2462 = vmul.f32 1.0, %v2461
  %v2463 = vrcp.pop %v2451
  %v2464 = vmul.f32 1.0, %v2463
  %v2465 = vrcp.pop %v2452
  %v2466 = vmul.f32 1.0, %v2465
  %v2467 = vrcp.pop %v2453
  %v2468 = vmul.f32 1.0, %v2467
  %v2469 = vrcp.pop %v2454
  %v2470 = vmul.f32 1.0, %v2469
  %v2471 = vadd.f32 %v2397, %v1317
  %v2472 = vadd.f32 %v2402, %v1322
  %v2473 = vadd.f32 %v2407, %v1327
  %v2474 = vadd.f32 %v2412, %v1332
  %v2475 = vmul.f32 %v2456, %v2471
  %v2476 = vmul.f32 %v2458, %v2472
  %v2477 = vmul.f32 %v2460, %v2473
  %v2478 = vmul.f32 %v2462, %v2474
  %v2479 = vadd.f32 %v2286, %v2475
  %v2480 = vadd.f32 %v2287, %v2476
  %v2481 = vadd.f32 %v2288, %v2477
  %v2482 = vadd.f32 %v2289, %v2478
  %v2483 = vtanh.pop %v2479
  %v2484 = vtanh.pop %v2480
  %v2485 = vtanh.pop %v2481
  %v2486 = vtanh.pop %v2482
  %v2487 = vsub.f32 %v2269, %v2483
  %v2488 = vsub.f32 %v2270, %v2484
  %v2489 = vsub.f32 %v2271, %v2485
  %v2490 = vsub.f32 %v2272, %v2486
  %v2491 = vmul.f32 %v2464, %v2487
  %v2492 = vmul.f32 %v2466, %v2488
  %v2493 = vmul.f32 %v2468, %v2489
  %v2494 = vmul.f32 %v2470, %v2490
  %v2495 = vadd.f32 %v2483, %v2491
  %v2496 = vadd.f32 %v2484, %v2492
  %v2497 = vadd.f32 %v2485, %v2493
  %v2498 = vadd.f32 %v2486, %v2494
  %s2499 = scalar_lea.vmem [#allocation4], 128
  %2500 = vst [vmem:[%s2499] sm:$0xff] %v2495
  %2501 = vst [vmem:[%s2499 + $0x8] sm:$0xff] %v2496
  %2502 = vst [vmem:[%s2499 + $0x10] sm:$0xff] %v2497
  %2503 = vst [vmem:[%s2499 + $0x18] sm:$0xff] %v2498
  %v2504 = vld [vmem:[%s1011] sm:$0xff]
  %v2505 = vld [vmem:[%s1011 + $0x8] sm:$0xff]
  %v2506 = vld [vmem:[%s1011 + $0x10] sm:$0xff]
  %v2507 = vld [vmem:[%s1011 + $0x18] sm:$0xff]
  %v2508 = vld [vmem:[%s1011 + $0x20] sm:$0xff]
  %v2509 = vld [vmem:[%s1011 + $0x28] sm:$0xff]
  %v2510 = vld [vmem:[%s1011 + $0x30] sm:$0xff]
  %v2511 = vld [vmem:[%s1011 + $0x38] sm:$0xff]
  %v2512 = vld [vmem:[%s1011 + $0x40] sm:$0xff]
  %v2513 = vld [vmem:[%s1011 + $0x48] sm:$0xff]
  %v2514 = vld [vmem:[%s1011 + $0x50] sm:$0xff]
  %v2515 = vld [vmem:[%s1011 + $0x58] sm:$0xff]
  %2516 = vmatprep.subr.mxu0 0.0
  %2517 = vmatpush1.msra.mxu0 0.0
  %2518 = vmatprep.subr.mxu0 0.0
  %2519 = vmatpush1.msra.mxu0 0.0
  %2520 = vmatprep.subr.mxu0 0.0
  %2521 = vmatpush1.msra.mxu0 0.0
  %2522 = vmatprep.subr.mxu0 0.0
  %2523 = vmatpush1.msra.mxu0 0.0
  %2524 = vmatprep.subr.mxu0 0.0
  %2525 = vmatpush1.msra.mxu0 0.0
  %2526 = vmatprep.subr.mxu0 0.0
  %2527 = vmatpush1.msra.mxu0 0.0
  %2528 = vmatprep.subr.mxu0 0.0
  %2529 = vmatpush1.msra.mxu0 0.0
  %2530 = vmatprep.subr.mxu0 0.0
  %2531 = vmatpush1.msra.mxu0 0.0
  %2532 = vmatprep.subr.mxu0 0.0
  %2533 = vmatpush1.msra.mxu0 0.0
  %2534 = vmatprep.subr.mxu0 0.0
  %2535 = vmatpush1.msra.mxu0 0.0
  %2536 = vmatprep.subr.mxu0 0.0
  %2537 = vmatpush1.msra.mxu0 0.0
  %2538 = vmatprep.subr.mxu0 0.0
  %2539 = vmatpush1.msra.mxu0 0.0
  %2540 = vmatprep.subr.mxu0 0.0
  %2541 = vmatpush1.msra.mxu0 %v2498
  %2542 = vmatprep.subr.mxu0 0.0
  %2543 = vmatpush1.msra.mxu0 %v2497
  %2544 = vmatprep.subr.mxu0 0.0
  %2545 = vmatpush1.msra.mxu0 %v2496
  %2546 = vmatprep.subr.mxu0 0.0
  %2547 = vmatpush1.msra.mxu0 %v2495
  %2548 = vmatprep.subr.mxu0 0.0
  %2549 = vmatpush2.msra.mxu0 0.0
  %2550 = vmatprep.subr.mxu0 0.0
  %2551 = vmatpush2.msra.mxu0 0.0
  %2552 = vmatprep.subr.mxu0 0.0
  %2553 = vmatpush2.msra.mxu0 0.0
  %2554 = vmatprep.subr.mxu0 0.0
  %2555 = vmatpush2.msra.mxu0 0.0
  %2556 = vmatprep.subr.mxu0 0.0
  %2557 = vmatpush2.msra.mxu0 0.0
  %2558 = vmatprep.subr.mxu0 0.0
  %2559 = vmatpush2.msra.mxu0 0.0
  %2560 = vmatprep.subr.mxu0 0.0
  %2561 = vmatpush2.msra.mxu0 0.0
  %2562 = vmatprep.subr.mxu0 0.0
  %2563 = vmatpush2.msra.mxu0 0.0
  %2564 = vmatprep.subr.mxu0 0.0
  %2565 = vmatpush2.msra.mxu0 0.0
  %2566 = vmatprep.subr.mxu0 0.0
  %2567 = vmatpush2.msra.mxu0 0.0
  %2568 = vmatprep.subr.mxu0 0.0
  %2569 = vmatpush2.msra.mxu0 0.0
  %2570 = vmatprep.subr.mxu0 0.0
  %2571 = vmatpush2.msra.mxu0 0.0
  %2572 = vmatprep.subr.mxu0 0.0
  %2573 = vmatpush2.msra.mxu0 0.0
  %2574 = vmatprep.subr.mxu0 0.0
  %2575 = vmatpush2.msra.mxu0 0.0
  %2576 = vmatprep.subr.mxu0 0.0
  %2577 = vmatpush2.msra.mxu0 0.0
  %2578 = vmatprep.subr.mxu0 0.0
  %2579 = vmatpush2.msra.mxu0 0.0
  %2580 = vmatprep.mubr.f32.mxu0 0.0
  %2581 = vmatmul.mubr.f32.gmra.mxu0 %v1352
  %v2582 = vpop.f32.mrf.mxu0
  %v2583 = vadd.f32 0.0, %v2582
  %v2584 = vpop.f32.mrf.mxu0
  %2585 = vmatprep.mubr.f32.mxu0 0.0
  %2586 = vmatmul.mubr.f32.gmra.mxu0 %v1355
  %v2587 = vpop.f32.mrf.mxu0
  %v2588 = vadd.f32 0.0, %v2587
  %v2589 = vpop.f32.mrf.mxu0
  %2590 = vmatprep.mubr.f32.mxu0 0.0
  %2591 = vmatmul.mubr.f32.gmra.mxu0 %v1358
  %v2592 = vpop.f32.mrf.mxu0
  %v2593 = vadd.f32 0.0, %v2592
  %v2594 = vpop.f32.mrf.mxu0
  %2595 = vmatprep.mubr.f32.mxu0 0.0
  %2596 = vmatmul.mubr.f32.gmra.mxu0 %v1361
  %v2597 = vpop.f32.mrf.mxu0
  %v2598 = vadd.f32 0.0, %v2597
  %v2599 = vpop.f32.mrf.mxu0
  %2600 = vmatprep.mubr.f32.mxu0 0.0
  %2601 = vmatmul.mubr.f32.gmra.mxu0 %v1364
  %v2602 = vpop.f32.mrf.mxu0
  %v2603 = vadd.f32 0.0, %v2602
  %v2604 = vpop.f32.mrf.mxu0
  %2605 = vmatprep.mubr.f32.mxu0 0.0
  %2606 = vmatmul.mubr.f32.gmra.mxu0 %v1367
  %v2607 = vpop.f32.mrf.mxu0
  %v2608 = vadd.f32 0.0, %v2607
  %v2609 = vpop.f32.mrf.mxu0
  %2610 = vmatprep.mubr.f32.mxu0 0.0
  %2611 = vmatmul.mubr.f32.gmra.mxu0 %v1370
  %v2612 = vpop.f32.mrf.mxu0
  %v2613 = vadd.f32 0.0, %v2612
  %v2614 = vpop.f32.mrf.mxu0
  %2615 = vmatprep.mubr.f32.mxu0 0.0
  %2616 = vmatmul.mubr.f32.gmra.mxu0 %v1373
  %v2617 = vpop.f32.mrf.mxu0
  %v2618 = vadd.f32 0.0, %v2617
  %v2619 = vpop.f32.mrf.mxu0
  %2620 = vmatprep.mubr.f32.mxu0 0.0
  %2621 = vmatmul.mubr.f32.gmra.mxu0 %v1376
  %v2622 = vpop.f32.mrf.mxu0
  %v2623 = vadd.f32 0.0, %v2622
  %v2624 = vpop.f32.mrf.mxu0
  %2625 = vmatprep.mubr.f32.mxu0 0.0
  %2626 = vmatmul.mubr.f32.gmra.mxu0 %v1379
  %v2627 = vpop.f32.mrf.mxu0
  %v2628 = vadd.f32 0.0, %v2627
  %v2629 = vpop.f32.mrf.mxu0
  %2630 = vmatprep.mubr.f32.mxu0 0.0
  %2631 = vmatmul.mubr.f32.gmra.mxu0 %v1382
  %v2632 = vpop.f32.mrf.mxu0
  %v2633 = vadd.f32 0.0, %v2632
  %v2634 = vpop.f32.mrf.mxu0
  %2635 = vmatprep.mubr.f32.mxu0 0.0
  %2636 = vmatmul.mubr.f32.gmra.mxu0 %v1385
  %v2637 = vpop.f32.mrf.mxu0
  %v2638 = vadd.f32 0.0, %v2637
  %v2639 = vpop.f32.mrf.mxu0
  %2640 = vdwg.mxu0
  %v2641 = vadd.f32 %v2504, %v2583
  %v2642 = vadd.f32 %v2505, %v2588
  %v2643 = vadd.f32 %v2506, %v2593
  %v2644 = vadd.f32 %v2507, %v2598
  %v2645 = vadd.f32 %v2508, %v2603
  %v2646 = vadd.f32 %v2509, %v2608
  %v2647 = vadd.f32 %v2510, %v2613
  %v2648 = vadd.f32 %v2511, %v2618
  %v2649 = vxor.u32 %v2641, 2147483648
  %v2650 = vxor.u32 %v2642, 2147483648
  %v2651 = vxor.u32 %v2643, 2147483648
  %v2652 = vxor.u32 %v2644, 2147483648
  %v2653 = vxor.u32 %v2645, 2147483648
  %v2654 = vxor.u32 %v2646, 2147483648
  %v2655 = vxor.u32 %v2647, 2147483648
  %v2656 = vxor.u32 %v2648, 2147483648
  %v2657 = vmul.f32 %v2649, 1.442695
  %v2658 = vpow.pop %v2657
  %v2659 = vmul.f32 %v2650, 1.442695
  %v2660 = vpow.pop %v2659
  %v2661 = vmul.f32 %v2651, 1.442695
  %v2662 = vpow.pop %v2661
  %v2663 = vmul.f32 %v2652, 1.442695
  %v2664 = vpow.pop %v2663
  %v2665 = vmul.f32 %v2653, 1.442695
  %v2666 = vpow.pop %v2665
  %v2667 = vmul.f32 %v2654, 1.442695
  %v2668 = vpow.pop %v2667
  %v2669 = vmul.f32 %v2655, 1.442695
  %v2670 = vpow.pop %v2669
  %v2671 = vmul.f32 %v2656, 1.442695
  %v2672 = vpow.pop %v2671
  %v2673 = vadd.f32 %v2658, 1.0
  %v2674 = vadd.f32 %v2660, 1.0
  %v2675 = vadd.f32 %v2662, 1.0
  %v2676 = vadd.f32 %v2664, 1.0
  %v2677 = vadd.f32 %v2666, 1.0
  %v2678 = vadd.f32 %v2668, 1.0
  %v2679 = vadd.f32 %v2670, 1.0
  %v2680 = vadd.f32 %v2672, 1.0
  %v2681 = vrcp.pop %v2673
  %v2682 = vmul.f32 1.0, %v2681
  %v2683 = vrcp.pop %v2674
  %v2684 = vmul.f32 1.0, %v2683
  %v2685 = vrcp.pop %v2675
  %v2686 = vmul.f32 1.0, %v2685
  %v2687 = vrcp.pop %v2676
  %v2688 = vmul.f32 1.0, %v2687
  %v2689 = vrcp.pop %v2677
  %v2690 = vmul.f32 1.0, %v2689
  %v2691 = vrcp.pop %v2678
  %v2692 = vmul.f32 1.0, %v2691
  %v2693 = vrcp.pop %v2679
  %v2694 = vmul.f32 1.0, %v2693
  %v2695 = vrcp.pop %v2680
  %v2696 = vmul.f32 1.0, %v2695
  %v2697 = vadd.f32 %v2623, %v1317
  %v2698 = vadd.f32 %v2628, %v1322
  %v2699 = vadd.f32 %v2633, %v1327
  %v2700 = vadd.f32 %v2638, %v1332
  %v2701 = vmul.f32 %v2682, %v2697
  %v2702 = vmul.f32 %v2684, %v2698
  %v2703 = vmul.f32 %v2686, %v2699
  %v2704 = vmul.f32 %v2688, %v2700
  %v2705 = vadd.f32 %v2512, %v2701
  %v2706 = vadd.f32 %v2513, %v2702
  %v2707 = vadd.f32 %v2514, %v2703
  %v2708 = vadd.f32 %v2515, %v2704
  %v2709 = vtanh.pop %v2705
  %v2710 = vtanh.pop %v2706
  %v2711 = vtanh.pop %v2707
  %v2712 = vtanh.pop %v2708
  %v2713 = vsub.f32 %v2495, %v2709
  %v2714 = vsub.f32 %v2496, %v2710
  %v2715 = vsub.f32 %v2497, %v2711
  %v2716 = vsub.f32 %v2498, %v2712
  %v2717 = vmul.f32 %v2690, %v2713
  %v2718 = vmul.f32 %v2692, %v2714
  %v2719 = vmul.f32 %v2694, %v2715
  %v2720 = vmul.f32 %v2696, %v2716
  %v2721 = vadd.f32 %v2709, %v2717
  %v2722 = vadd.f32 %v2710, %v2718
  %v2723 = vadd.f32 %v2711, %v2719
  %v2724 = vadd.f32 %v2712, %v2720
  %s2725 = scalar_lea.vmem [#allocation4], 160
  %2726 = vst [vmem:[%s2725] sm:$0xff] %v2721
  %2727 = vst [vmem:[%s2725 + $0x8] sm:$0xff] %v2722
  %2728 = vst [vmem:[%s2725 + $0x10] sm:$0xff] %v2723
  %2729 = vst [vmem:[%s2725 + $0x18] sm:$0xff] %v2724
  %v2730 = vld [vmem:[%s1154] sm:$0xff]
  %v2731 = vld [vmem:[%s1154 + $0x8] sm:$0xff]
  %v2732 = vld [vmem:[%s1154 + $0x10] sm:$0xff]
  %v2733 = vld [vmem:[%s1154 + $0x18] sm:$0xff]
  %v2734 = vld [vmem:[%s1154 + $0x20] sm:$0xff]
  %v2735 = vld [vmem:[%s1154 + $0x28] sm:$0xff]
  %v2736 = vld [vmem:[%s1154 + $0x30] sm:$0xff]
  %v2737 = vld [vmem:[%s1154 + $0x38] sm:$0xff]
  %v2738 = vld [vmem:[%s1154 + $0x40] sm:$0xff]
  %v2739 = vld [vmem:[%s1154 + $0x48] sm:$0xff]
  %v2740 = vld [vmem:[%s1154 + $0x50] sm:$0xff]
  %v2741 = vld [vmem:[%s1154 + $0x58] sm:$0xff]
  %2742 = vmatprep.subr.mxu0 0.0
  %2743 = vmatpush1.msra.mxu0 0.0
  %2744 = vmatprep.subr.mxu0 0.0
  %2745 = vmatpush1.msra.mxu0 0.0
  %2746 = vmatprep.subr.mxu0 0.0
  %2747 = vmatpush1.msra.mxu0 0.0
  %2748 = vmatprep.subr.mxu0 0.0
  %2749 = vmatpush1.msra.mxu0 0.0
  %2750 = vmatprep.subr.mxu0 0.0
  %2751 = vmatpush1.msra.mxu0 0.0
  %2752 = vmatprep.subr.mxu0 0.0
  %2753 = vmatpush1.msra.mxu0 0.0
  %2754 = vmatprep.subr.mxu0 0.0
  %2755 = vmatpush1.msra.mxu0 0.0
  %2756 = vmatprep.subr.mxu0 0.0
  %2757 = vmatpush1.msra.mxu0 0.0
  %2758 = vmatprep.subr.mxu0 0.0
  %2759 = vmatpush1.msra.mxu0 0.0
  %2760 = vmatprep.subr.mxu0 0.0
  %2761 = vmatpush1.msra.mxu0 0.0
  %2762 = vmatprep.subr.mxu0 0.0
  %2763 = vmatpush1.msra.mxu0 0.0
  %2764 = vmatprep.subr.mxu0 0.0
  %2765 = vmatpush1.msra.mxu0 0.0
  %2766 = vmatprep.subr.mxu0 0.0
  %2767 = vmatpush1.msra.mxu0 %v2724
  %2768 = vmatprep.subr.mxu0 0.0
  %2769 = vmatpush1.msra.mxu0 %v2723
  %2770 = vmatprep.subr.mxu0 0.0
  %2771 = vmatpush1.msra.mxu0 %v2722
  %2772 = vmatprep.subr.mxu0 0.0
  %2773 = vmatpush1.msra.mxu0 %v2721
  %2774 = vmatprep.subr.mxu0 0.0
  %2775 = vmatpush2.msra.mxu0 0.0
  %2776 = vmatprep.subr.mxu0 0.0
  %2777 = vmatpush2.msra.mxu0 0.0
  %2778 = vmatprep.subr.mxu0 0.0
  %2779 = vmatpush2.msra.mxu0 0.0
  %2780 = vmatprep.subr.mxu0 0.0
  %2781 = vmatpush2.msra.mxu0 0.0
  %2782 = vmatprep.subr.mxu0 0.0
  %2783 = vmatpush2.msra.mxu0 0.0
  %2784 = vmatprep.subr.mxu0 0.0
  %2785 = vmatpush2.msra.mxu0 0.0
  %2786 = vmatprep.subr.mxu0 0.0
  %2787 = vmatpush2.msra.mxu0 0.0
  %2788 = vmatprep.subr.mxu0 0.0
  %2789 = vmatpush2.msra.mxu0 0.0
  %2790 = vmatprep.subr.mxu0 0.0
  %2791 = vmatpush2.msra.mxu0 0.0
  %2792 = vmatprep.subr.mxu0 0.0
  %2793 = vmatpush2.msra.mxu0 0.0
  %2794 = vmatprep.subr.mxu0 0.0
  %2795 = vmatpush2.msra.mxu0 0.0
  %2796 = vmatprep.subr.mxu0 0.0
  %2797 = vmatpush2.msra.mxu0 0.0
  %2798 = vmatprep.subr.mxu0 0.0
  %2799 = vmatpush2.msra.mxu0 0.0
  %2800 = vmatprep.subr.mxu0 0.0
  %2801 = vmatpush2.msra.mxu0 0.0
  %2802 = vmatprep.subr.mxu0 0.0
  %2803 = vmatpush2.msra.mxu0 0.0
  %2804 = vmatprep.subr.mxu0 0.0
  %2805 = vmatpush2.msra.mxu0 0.0
  %2806 = vmatprep.mubr.f32.mxu0 0.0
  %2807 = vmatmul.mubr.f32.gmra.mxu0 %v1352
  %v2808 = vpop.f32.mrf.mxu0
  %v2809 = vadd.f32 0.0, %v2808
  %v2810 = vpop.f32.mrf.mxu0
  %2811 = vmatprep.mubr.f32.mxu0 0.0
  %2812 = vmatmul.mubr.f32.gmra.mxu0 %v1355
  %v2813 = vpop.f32.mrf.mxu0
  %v2814 = vadd.f32 0.0, %v2813
  %v2815 = vpop.f32.mrf.mxu0
  %2816 = vmatprep.mubr.f32.mxu0 0.0
  %2817 = vmatmul.mubr.f32.gmra.mxu0 %v1358
  %v2818 = vpop.f32.mrf.mxu0
  %v2819 = vadd.f32 0.0, %v2818
  %v2820 = vpop.f32.mrf.mxu0
  %2821 = vmatprep.mubr.f32.mxu0 0.0
  %2822 = vmatmul.mubr.f32.gmra.mxu0 %v1361
  %v2823 = vpop.f32.mrf.mxu0
  %v2824 = vadd.f32 0.0, %v2823
  %v2825 = vpop.f32.mrf.mxu0
  %2826 = vmatprep.mubr.f32.mxu0 0.0
  %2827 = vmatmul.mubr.f32.gmra.mxu0 %v1364
  %v2828 = vpop.f32.mrf.mxu0
  %v2829 = vadd.f32 0.0, %v2828
  %v2830 = vpop.f32.mrf.mxu0
  %2831 = vmatprep.mubr.f32.mxu0 0.0
  %2832 = vmatmul.mubr.f32.gmra.mxu0 %v1367
  %v2833 = vpop.f32.mrf.mxu0
  %v2834 = vadd.f32 0.0, %v2833
  %v2835 = vpop.f32.mrf.mxu0
  %2836 = vmatprep.mubr.f32.mxu0 0.0
  %2837 = vmatmul.mubr.f32.gmra.mxu0 %v1370
  %v2838 = vpop.f32.mrf.mxu0
  %v2839 = vadd.f32 0.0, %v2838
  %v2840 = vpop.f32.mrf.mxu0
  %2841 = vmatprep.mubr.f32.mxu0 0.0
  %2842 = vmatmul.mubr.f32.gmra.mxu0 %v1373
  %v2843 = vpop.f32.mrf.mxu0
  %v2844 = vadd.f32 0.0, %v2843
  %v2845 = vpop.f32.mrf.mxu0
  %2846 = vmatprep.mubr.f32.mxu0 0.0
  %2847 = vmatmul.mubr.f32.gmra.mxu0 %v1376
  %v2848 = vpop.f32.mrf.mxu0
  %v2849 = vadd.f32 0.0, %v2848
  %v2850 = vpop.f32.mrf.mxu0
  %2851 = vmatprep.mubr.f32.mxu0 0.0
  %2852 = vmatmul.mubr.f32.gmra.mxu0 %v1379
  %v2853 = vpop.f32.mrf.mxu0
  %v2854 = vadd.f32 0.0, %v2853
  %v2855 = vpop.f32.mrf.mxu0
  %2856 = vmatprep.mubr.f32.mxu0 0.0
  %2857 = vmatmul.mubr.f32.gmra.mxu0 %v1382
  %v2858 = vpop.f32.mrf.mxu0
  %v2859 = vadd.f32 0.0, %v2858
  %v2860 = vpop.f32.mrf.mxu0
  %2861 = vmatprep.mubr.f32.mxu0 0.0
  %2862 = vmatmul.mubr.f32.gmra.mxu0 %v1385
  %v2863 = vpop.f32.mrf.mxu0
  %v2864 = vadd.f32 0.0, %v2863
  %v2865 = vpop.f32.mrf.mxu0
  %2866 = vdwg.mxu0
  %v2867 = vadd.f32 %v2730, %v2809
  %v2868 = vadd.f32 %v2731, %v2814
  %v2869 = vadd.f32 %v2732, %v2819
  %v2870 = vadd.f32 %v2733, %v2824
  %v2871 = vadd.f32 %v2734, %v2829
  %v2872 = vadd.f32 %v2735, %v2834
  %v2873 = vadd.f32 %v2736, %v2839
  %v2874 = vadd.f32 %v2737, %v2844
  %v2875 = vxor.u32 %v2867, 2147483648
  %v2876 = vxor.u32 %v2868, 2147483648
  %v2877 = vxor.u32 %v2869, 2147483648
  %v2878 = vxor.u32 %v2870, 2147483648
  %v2879 = vxor.u32 %v2871, 2147483648
  %v2880 = vxor.u32 %v2872, 2147483648
  %v2881 = vxor.u32 %v2873, 2147483648
  %v2882 = vxor.u32 %v2874, 2147483648
  %v2883 = vmul.f32 %v2875, 1.442695
  %v2884 = vpow.pop %v2883
  %v2885 = vmul.f32 %v2876, 1.442695
  %v2886 = vpow.pop %v2885
  %v2887 = vmul.f32 %v2877, 1.442695
  %v2888 = vpow.pop %v2887
  %v2889 = vmul.f32 %v2878, 1.442695
  %v2890 = vpow.pop %v2889
  %v2891 = vmul.f32 %v2879, 1.442695
  %v2892 = vpow.pop %v2891
  %v2893 = vmul.f32 %v2880, 1.442695
  %v2894 = vpow.pop %v2893
  %v2895 = vmul.f32 %v2881, 1.442695
  %v2896 = vpow.pop %v2895
  %v2897 = vmul.f32 %v2882, 1.442695
  %v2898 = vpow.pop %v2897
  %v2899 = vadd.f32 %v2884, 1.0
  %v2900 = vadd.f32 %v2886, 1.0
  %v2901 = vadd.f32 %v2888, 1.0
  %v2902 = vadd.f32 %v2890, 1.0
  %v2903 = vadd.f32 %v2892, 1.0
  %v2904 = vadd.f32 %v2894, 1.0
  %v2905 = vadd.f32 %v2896, 1.0
  %v2906 = vadd.f32 %v2898, 1.0
  %v2907 = vrcp.pop %v2899
  %v2908 = vmul.f32 1.0, %v2907
  %v2909 = vrcp.pop %v2900
  %v2910 = vmul.f32 1.0, %v2909
  %v2911 = vrcp.pop %v2901
  %v2912 = vmul.f32 1.0, %v2911
  %v2913 = vrcp.pop %v2902
  %v2914 = vmul.f32 1.0, %v2913
  %v2915 = vrcp.pop %v2903
  %v2916 = vmul.f32 1.0, %v2915
  %v2917 = vrcp.pop %v2904
  %v2918 = vmul.f32 1.0, %v2917
  %v2919 = vrcp.pop %v2905
  %v2920 = vmul.f32 1.0, %v2919
  %v2921 = vrcp.pop %v2906
  %v2922 = vmul.f32 1.0, %v2921
  %v2923 = vadd.f32 %v2849, %v1317
  %v2924 = vadd.f32 %v2854, %v1322
  %v2925 = vadd.f32 %v2859, %v1327
  %v2926 = vadd.f32 %v2864, %v1332
  %v2927 = vmul.f32 %v2908, %v2923
  %v2928 = vmul.f32 %v2910, %v2924
  %v2929 = vmul.f32 %v2912, %v2925
  %v2930 = vmul.f32 %v2914, %v2926
  %v2931 = vadd.f32 %v2738, %v2927
  %v2932 = vadd.f32 %v2739, %v2928
  %v2933 = vadd.f32 %v2740, %v2929
  %v2934 = vadd.f32 %v2741, %v2930
  %v2935 = vtanh.pop %v2931
  %v2936 = vtanh.pop %v2932
  %v2937 = vtanh.pop %v2933
  %v2938 = vtanh.pop %v2934
  %v2939 = vsub.f32 %v2721, %v2935
  %v2940 = vsub.f32 %v2722, %v2936
  %v2941 = vsub.f32 %v2723, %v2937
  %v2942 = vsub.f32 %v2724, %v2938
  %v2943 = vmul.f32 %v2916, %v2939
  %v2944 = vmul.f32 %v2918, %v2940
  %v2945 = vmul.f32 %v2920, %v2941
  %v2946 = vmul.f32 %v2922, %v2942
  %v2947 = vadd.f32 %v2935, %v2943
  %v2948 = vadd.f32 %v2936, %v2944
  %v2949 = vadd.f32 %v2937, %v2945
  %v2950 = vadd.f32 %v2938, %v2946
  %s2951 = scalar_lea.vmem [#allocation4], 192
  %2952 = vst [vmem:[%s2951] sm:$0xff] %v2947
  %2953 = vst [vmem:[%s2951 + $0x8] sm:$0xff] %v2948
  %2954 = vst [vmem:[%s2951 + $0x10] sm:$0xff] %v2949
  %2955 = vst [vmem:[%s2951 + $0x18] sm:$0xff] %v2950
  %v2956 = vld [vmem:[%s1297] sm:$0xff]
  %v2957 = vld [vmem:[%s1297 + $0x8] sm:$0xff]
  %v2958 = vld [vmem:[%s1297 + $0x10] sm:$0xff]
  %v2959 = vld [vmem:[%s1297 + $0x18] sm:$0xff]
  %v2960 = vld [vmem:[%s1297 + $0x20] sm:$0xff]
  %v2961 = vld [vmem:[%s1297 + $0x28] sm:$0xff]
  %v2962 = vld [vmem:[%s1297 + $0x30] sm:$0xff]
  %v2963 = vld [vmem:[%s1297 + $0x38] sm:$0xff]
  %v2964 = vld [vmem:[%s1297 + $0x40] sm:$0xff]
  %v2965 = vld [vmem:[%s1297 + $0x48] sm:$0xff]
  %v2966 = vld [vmem:[%s1297 + $0x50] sm:$0xff]
  %v2967 = vld [vmem:[%s1297 + $0x58] sm:$0xff]
  %2968 = vmatprep.subr.mxu0 0.0
  %2969 = vmatpush1.msra.mxu0 0.0
  %2970 = vmatprep.subr.mxu0 0.0
  %2971 = vmatpush1.msra.mxu0 0.0
  %2972 = vmatprep.subr.mxu0 0.0
  %2973 = vmatpush1.msra.mxu0 0.0
  %2974 = vmatprep.subr.mxu0 0.0
  %2975 = vmatpush1.msra.mxu0 0.0
  %2976 = vmatprep.subr.mxu0 0.0
  %2977 = vmatpush1.msra.mxu0 0.0
  %2978 = vmatprep.subr.mxu0 0.0
  %2979 = vmatpush1.msra.mxu0 0.0
  %2980 = vmatprep.subr.mxu0 0.0
  %2981 = vmatpush1.msra.mxu0 0.0
  %2982 = vmatprep.subr.mxu0 0.0
  %2983 = vmatpush1.msra.mxu0 0.0
  %2984 = vmatprep.subr.mxu0 0.0
  %2985 = vmatpush1.msra.mxu0 0.0
  %2986 = vmatprep.subr.mxu0 0.0
  %2987 = vmatpush1.msra.mxu0 0.0
  %2988 = vmatprep.subr.mxu0 0.0
  %2989 = vmatpush1.msra.mxu0 0.0
  %2990 = vmatprep.subr.mxu0 0.0
  %2991 = vmatpush1.msra.mxu0 0.0
  %2992 = vmatprep.subr.mxu0 0.0
  %2993 = vmatpush1.msra.mxu0 %v2950
  %2994 = vmatprep.subr.mxu0 0.0
  %2995 = vmatpush1.msra.mxu0 %v2949
  %2996 = vmatprep.subr.mxu0 0.0
  %2997 = vmatpush1.msra.mxu0 %v2948
  %2998 = vmatprep.subr.mxu0 0.0
  %2999 = vmatpush1.msra.mxu0 %v2947
  %3000 = vmatprep.subr.mxu0 0.0
  %3001 = vmatpush2.msra.mxu0 0.0
  %3002 = vmatprep.subr.mxu0 0.0
  %3003 = vmatpush2.msra.mxu0 0.0
  %3004 = vmatprep.subr.mxu0 0.0
  %3005 = vmatpush2.msra.mxu0 0.0
  %3006 = vmatprep.subr.mxu0 0.0
  %3007 = vmatpush2.msra.mxu0 0.0
  %3008 = vmatprep.subr.mxu0 0.0
  %3009 = vmatpush2.msra.mxu0 0.0
  %3010 = vmatprep.subr.mxu0 0.0
  %3011 = vmatpush2.msra.mxu0 0.0
  %3012 = vmatprep.subr.mxu0 0.0
  %3013 = vmatpush2.msra.mxu0 0.0
  %3014 = vmatprep.subr.mxu0 0.0
  %3015 = vmatpush2.msra.mxu0 0.0
  %3016 = vmatprep.subr.mxu0 0.0
  %3017 = vmatpush2.msra.mxu0 0.0
  %3018 = vmatprep.subr.mxu0 0.0
  %3019 = vmatpush2.msra.mxu0 0.0
  %3020 = vmatprep.subr.mxu0 0.0
  %3021 = vmatpush2.msra.mxu0 0.0
  %3022 = vmatprep.subr.mxu0 0.0
  %3023 = vmatpush2.msra.mxu0 0.0
  %3024 = vmatprep.subr.mxu0 0.0
  %3025 = vmatpush2.msra.mxu0 0.0
  %3026 = vmatprep.subr.mxu0 0.0
  %3027 = vmatpush2.msra.mxu0 0.0
  %3028 = vmatprep.subr.mxu0 0.0
  %3029 = vmatpush2.msra.mxu0 0.0
  %3030 = vmatprep.subr.mxu0 0.0
  %3031 = vmatpush2.msra.mxu0 0.0
  %3032 = vmatprep.mubr.f32.mxu0 0.0
  %3033 = vmatmul.mubr.f32.gmra.mxu0 %v1352
  %v3034 = vpop.f32.mrf.mxu0
  %v3035 = vadd.f32 0.0, %v3034
  %v3036 = vpop.f32.mrf.mxu0
  %3037 = vmatprep.mubr.f32.mxu0 0.0
  %3038 = vmatmul.mubr.f32.gmra.mxu0 %v1355
  %v3039 = vpop.f32.mrf.mxu0
  %v3040 = vadd.f32 0.0, %v3039
  %v3041 = vpop.f32.mrf.mxu0
  %3042 = vmatprep.mubr.f32.mxu0 0.0
  %3043 = vmatmul.mubr.f32.gmra.mxu0 %v1358
  %v3044 = vpop.f32.mrf.mxu0
  %v3045 = vadd.f32 0.0, %v3044
  %v3046 = vpop.f32.mrf.mxu0
  %3047 = vmatprep.mubr.f32.mxu0 0.0
  %3048 = vmatmul.mubr.f32.gmra.mxu0 %v1361
  %v3049 = vpop.f32.mrf.mxu0
  %v3050 = vadd.f32 0.0, %v3049
  %v3051 = vpop.f32.mrf.mxu0
  %3052 = vmatprep.mubr.f32.mxu0 0.0
  %3053 = vmatmul.mubr.f32.gmra.mxu0 %v1364
  %v3054 = vpop.f32.mrf.mxu0
  %v3055 = vadd.f32 0.0, %v3054
  %v3056 = vpop.f32.mrf.mxu0
  %3057 = vmatprep.mubr.f32.mxu0 0.0
  %3058 = vmatmul.mubr.f32.gmra.mxu0 %v1367
  %v3059 = vpop.f32.mrf.mxu0
  %v3060 = vadd.f32 0.0, %v3059
  %v3061 = vpop.f32.mrf.mxu0
  %3062 = vmatprep.mubr.f32.mxu0 0.0
  %3063 = vmatmul.mubr.f32.gmra.mxu0 %v1370
  %v3064 = vpop.f32.mrf.mxu0
  %v3065 = vadd.f32 0.0, %v3064
  %v3066 = vpop.f32.mrf.mxu0
  %3067 = vmatprep.mubr.f32.mxu0 0.0
  %3068 = vmatmul.mubr.f32.gmra.mxu0 %v1373
  %v3069 = vpop.f32.mrf.mxu0
  %v3070 = vadd.f32 0.0, %v3069
  %v3071 = vpop.f32.mrf.mxu0
  %3072 = vmatprep.mubr.f32.mxu0 0.0
  %3073 = vmatmul.mubr.f32.gmra.mxu0 %v1376
  %v3074 = vpop.f32.mrf.mxu0
  %v3075 = vadd.f32 0.0, %v3074
  %v3076 = vpop.f32.mrf.mxu0
  %3077 = vmatprep.mubr.f32.mxu0 0.0
  %3078 = vmatmul.mubr.f32.gmra.mxu0 %v1379
  %v3079 = vpop.f32.mrf.mxu0
  %v3080 = vadd.f32 0.0, %v3079
  %v3081 = vpop.f32.mrf.mxu0
  %3082 = vmatprep.mubr.f32.mxu0 0.0
  %3083 = vmatmul.mubr.f32.gmra.mxu0 %v1382
  %v3084 = vpop.f32.mrf.mxu0
  %v3085 = vadd.f32 0.0, %v3084
  %v3086 = vpop.f32.mrf.mxu0
  %3087 = vmatprep.mubr.f32.mxu0 0.0
  %3088 = vmatmul.mubr.f32.gmra.mxu0 %v1385
  %v3089 = vpop.f32.mrf.mxu0
  %v3090 = vadd.f32 0.0, %v3089
  %v3091 = vpop.f32.mrf.mxu0
  %3092 = vdwg.mxu0
  %v3093 = vadd.f32 %v2956, %v3035
  %v3094 = vadd.f32 %v2957, %v3040
  %v3095 = vadd.f32 %v2958, %v3045
  %v3096 = vadd.f32 %v2959, %v3050
  %v3097 = vadd.f32 %v2960, %v3055
  %v3098 = vadd.f32 %v2961, %v3060
  %v3099 = vadd.f32 %v2962, %v3065
  %v3100 = vadd.f32 %v2963, %v3070
  %v3101 = vxor.u32 %v3093, 2147483648
  %v3102 = vxor.u32 %v3094, 2147483648
  %v3103 = vxor.u32 %v3095, 2147483648
  %v3104 = vxor.u32 %v3096, 2147483648
  %v3105 = vxor.u32 %v3097, 2147483648
  %v3106 = vxor.u32 %v3098, 2147483648
  %v3107 = vxor.u32 %v3099, 2147483648
  %v3108 = vxor.u32 %v3100, 2147483648
  %v3109 = vmul.f32 %v3101, 1.442695
  %v3110 = vpow.pop %v3109
  %v3111 = vmul.f32 %v3102, 1.442695
  %v3112 = vpow.pop %v3111
  %v3113 = vmul.f32 %v3103, 1.442695
  %v3114 = vpow.pop %v3113
  %v3115 = vmul.f32 %v3104, 1.442695
  %v3116 = vpow.pop %v3115
  %v3117 = vmul.f32 %v3105, 1.442695
  %v3118 = vpow.pop %v3117
  %v3119 = vmul.f32 %v3106, 1.442695
  %v3120 = vpow.pop %v3119
  %v3121 = vmul.f32 %v3107, 1.442695
  %v3122 = vpow.pop %v3121
  %v3123 = vmul.f32 %v3108, 1.442695
  %v3124 = vpow.pop %v3123
  %v3125 = vadd.f32 %v3110, 1.0
  %v3126 = vadd.f32 %v3112, 1.0
  %v3127 = vadd.f32 %v3114, 1.0
  %v3128 = vadd.f32 %v3116, 1.0
  %v3129 = vadd.f32 %v3118, 1.0
  %v3130 = vadd.f32 %v3120, 1.0
  %v3131 = vadd.f32 %v3122, 1.0
  %v3132 = vadd.f32 %v3124, 1.0
  %v3133 = vrcp.pop %v3125
  %v3134 = vmul.f32 1.0, %v3133
  %v3135 = vrcp.pop %v3126
  %v3136 = vmul.f32 1.0, %v3135
  %v3137 = vrcp.pop %v3127
  %v3138 = vmul.f32 1.0, %v3137
  %v3139 = vrcp.pop %v3128
  %v3140 = vmul.f32 1.0, %v3139
  %v3141 = vrcp.pop %v3129
  %v3142 = vmul.f32 1.0, %v3141
  %v3143 = vrcp.pop %v3130
  %v3144 = vmul.f32 1.0, %v3143
  %v3145 = vrcp.pop %v3131
  %v3146 = vmul.f32 1.0, %v3145
  %v3147 = vrcp.pop %v3132
  %v3148 = vmul.f32 1.0, %v3147
  %v3149 = vadd.f32 %v3075, %v1317
  %v3150 = vadd.f32 %v3080, %v1322
  %v3151 = vadd.f32 %v3085, %v1327
  %v3152 = vadd.f32 %v3090, %v1332
  %v3153 = vmul.f32 %v3134, %v3149
  %v3154 = vmul.f32 %v3136, %v3150
  %v3155 = vmul.f32 %v3138, %v3151
  %v3156 = vmul.f32 %v3140, %v3152
  %v3157 = vadd.f32 %v2964, %v3153
  %v3158 = vadd.f32 %v2965, %v3154
  %v3159 = vadd.f32 %v2966, %v3155
  %v3160 = vadd.f32 %v2967, %v3156
  %v3161 = vtanh.pop %v3157
  %v3162 = vtanh.pop %v3158
  %v3163 = vtanh.pop %v3159
  %v3164 = vtanh.pop %v3160
  %v3165 = vsub.f32 %v2947, %v3161
  %v3166 = vsub.f32 %v2948, %v3162
  %v3167 = vsub.f32 %v2949, %v3163
  %v3168 = vsub.f32 %v2950, %v3164
  %v3169 = vmul.f32 %v3142, %v3165
  %v3170 = vmul.f32 %v3144, %v3166
  %v3171 = vmul.f32 %v3146, %v3167
  %v3172 = vmul.f32 %v3148, %v3168
  %v3173 = vadd.f32 %v3161, %v3169
  %v3174 = vadd.f32 %v3162, %v3170
  %v3175 = vadd.f32 %v3163, %v3171
  %v3176 = vadd.f32 %v3164, %v3172
  %s3177 = scalar_lea.vmem [#allocation4], 224
  %3178 = vst [vmem:[%s3177] sm:$0xff] %v3173
  %3179 = vst [vmem:[%s3177 + $0x8] sm:$0xff] %v3174
  %3180 = vst [vmem:[%s3177 + $0x10] sm:$0xff] %v3175
  %3181 = vst [vmem:[%s3177 + $0x18] sm:$0xff] %v3176
  %3182 = vst [vmem:[#allocation2] sm:$0xff] %v3173
  %3183 = vst [vmem:[#allocation2 + $0x8] sm:$0xff] %v3174
  %3184 = vst [vmem:[#allocation2 + $0x10] sm:$0xff] %v3175
  %3185 = vst [vmem:[#allocation2 + $0x18] sm:$0xff] %v3176
  %v3186 = vld [vmem:[%s5] sm:$0xff]
  %v3187 = vld [vmem:[#allocation4] sm:$0xff]
  %v3188 = vld [vmem:[#allocation4 + $0x8] sm:$0xff]
  %v3189 = vld [vmem:[#allocation4 + $0x10] sm:$0xff]
  %v3190 = vld [vmem:[#allocation4 + $0x18] sm:$0xff]
  %v3191 = vld [vmem:[#allocation4 + $0x20] sm:$0xff]
  %v3192 = vld [vmem:[#allocation4 + $0x28] sm:$0xff]
  %v3193 = vld [vmem:[#allocation4 + $0x30] sm:$0xff]
  %v3194 = vld [vmem:[#allocation4 + $0x38] sm:$0xff]
  %v3195 = vld [vmem:[#allocation4 + $0x40] sm:$0xff]
  %v3196 = vld [vmem:[#allocation4 + $0x48] sm:$0xff]
  %v3197 = vld [vmem:[#allocation4 + $0x50] sm:$0xff]
  %v3198 = vld [vmem:[#allocation4 + $0x58] sm:$0xff]
  %v3199 = vld [vmem:[#allocation4 + $0x60] sm:$0xff]
  %v3200 = vld [vmem:[#allocation4 + $0x68] sm:$0xff]
  %v3201 = vld [vmem:[#allocation4 + $0x70] sm:$0xff]
  %v3202 = vld [vmem:[#allocation4 + $0x78] sm:$0xff]
  %v3203 = vld [vmem:[#allocation4 + $0x80] sm:$0xff]
  %v3204 = vld [vmem:[#allocation4 + $0x88] sm:$0xff]
  %v3205 = vld [vmem:[#allocation4 + $0x90] sm:$0xff]
  %v3206 = vld [vmem:[#allocation4 + $0x98] sm:$0xff]
  %v3207 = vld [vmem:[#allocation4 + $0xa0] sm:$0xff]
  %v3208 = vld [vmem:[#allocation4 + $0xa8] sm:$0xff]
  %v3209 = vld [vmem:[#allocation4 + $0xb0] sm:$0xff]
  %v3210 = vld [vmem:[#allocation4 + $0xb8] sm:$0xff]
  %v3211 = vld [vmem:[#allocation4 + $0xc0] sm:$0xff]
  %v3212 = vld [vmem:[#allocation4 + $0xc8] sm:$0xff]
  %v3213 = vld [vmem:[#allocation4 + $0xd0] sm:$0xff]
  %v3214 = vld [vmem:[#allocation4 + $0xd8] sm:$0xff]
  %v3215 = vld [vmem:[#allocation4 + $0xe0] sm:$0xff]
  %v3216 = vld [vmem:[#allocation4 + $0xe8] sm:$0xff]
  %v3217 = vld [vmem:[#allocation4 + $0xf0] sm:$0xff]
  %v3218 = vld [vmem:[#allocation4 + $0xf8] sm:$0xff]
  %v3219 = vld [vmem:[%s6] sm:$0xff]
  %3221 = vset.pattern.permute.xlu0 0
  %3222 = vperm.xlu0 %3221, %v3219
  %v3223 = vpop.permute.xlu0 %3222
  %v3226 = vsel %vm1350, %v3186, 0
  %3228 = vmatprep.subr.mxu0 0.0
  %3229 = vmatpush1.msra.mxu0 0.0
  %3230 = vmatprep.subr.mxu0 0.0
  %3231 = vmatpush1.msra.mxu0 0.0
  %3232 = vmatprep.subr.mxu0 0.0
  %3233 = vmatpush1.msra.mxu0 0.0
  %3234 = vmatprep.subr.mxu0 0.0
  %3235 = vmatpush1.msra.mxu0 0.0
  %3236 = vmatprep.subr.mxu0 0.0
  %3237 = vmatpush1.msra.mxu0 0.0
  %3238 = vmatprep.subr.mxu0 0.0
  %3239 = vmatpush1.msra.mxu0 0.0
  %3240 = vmatprep.subr.mxu0 0.0
  %3241 = vmatpush1.msra.mxu0 0.0
  %3242 = vmatprep.subr.mxu0 0.0
  %3243 = vmatpush1.msra.mxu0 0.0
  %3244 = vmatprep.subr.mxu0 0.0
  %3245 = vmatpush1.msra.mxu0 0.0
  %3246 = vmatprep.subr.mxu0 0.0
  %3247 = vmatpush1.msra.mxu0 0.0
  %3248 = vmatprep.subr.mxu0 0.0
  %3249 = vmatpush1.msra.mxu0 0.0
  %3250 = vmatprep.subr.mxu0 0.0
  %3251 = vmatpush1.msra.mxu0 0.0
  %3252 = vmatprep.subr.mxu0 0.0
  %3253 = vmatpush1.msra.mxu0 %v3190
  %3254 = vmatprep.subr.mxu0 0.0
  %3255 = vmatpush1.msra.mxu0 %v3189
  %3256 = vmatprep.subr.mxu0 0.0
  %3257 = vmatpush1.msra.mxu0 %v3188
  %3258 = vmatprep.subr.mxu0 0.0
  %3259 = vmatpush1.msra.mxu0 %v3187
  %3260 = vmatprep.subr.mxu0 0.0
  %3261 = vmatpush2.msra.mxu0 0.0
  %3262 = vmatprep.subr.mxu0 0.0
  %3263 = vmatpush2.msra.mxu0 0.0
  %3264 = vmatprep.subr.mxu0 0.0
  %3265 = vmatpush2.msra.mxu0 0.0
  %3266 = vmatprep.subr.mxu0 0.0
  %3267 = vmatpush2.msra.mxu0 0.0
  %3268 = vmatprep.subr.mxu0 0.0
  %3269 = vmatpush2.msra.mxu0 0.0
  %3270 = vmatprep.subr.mxu0 0.0
  %3271 = vmatpush2.msra.mxu0 0.0
  %3272 = vmatprep.subr.mxu0 0.0
  %3273 = vmatpush2.msra.mxu0 0.0
  %3274 = vmatprep.subr.mxu0 0.0
  %3275 = vmatpush2.msra.mxu0 0.0
  %3276 = vmatprep.subr.mxu0 0.0
  %3277 = vmatpush2.msra.mxu0 0.0
  %3278 = vmatprep.subr.mxu0 0.0
  %3279 = vmatpush2.msra.mxu0 0.0
  %3280 = vmatprep.subr.mxu0 0.0
  %3281 = vmatpush2.msra.mxu0 0.0
  %3282 = vmatprep.subr.mxu0 0.0
  %3283 = vmatpush2.msra.mxu0 0.0
  %3284 = vmatprep.subr.mxu0 0.0
  %3285 = vmatpush2.msra.mxu0 0.0
  %3286 = vmatprep.subr.mxu0 0.0
  %3287 = vmatpush2.msra.mxu0 0.0
  %3288 = vmatprep.subr.mxu0 0.0
  %3289 = vmatpush2.msra.mxu0 0.0
  %3290 = vmatprep.subr.mxu0 0.0
  %3291 = vmatpush2.msra.mxu0 0.0
  %3292 = vmatprep.mubr.f32.mxu0 0.0
  %3293 = vmatmul.mubr.f32.gmra.mxu0 %v3226
  %v3294 = vpop.f32.mrf.mxu0
  %v3295 = vadd.f32 %v3223, %v3294
  %v3296 = vpop.f32.mrf.mxu0
  %3297 = vdwg.mxu0
  %3298 = vmatprep.subr.mxu0 0.0
  %3299 = vmatpush1.msra.mxu0 0.0
  %3300 = vmatprep.subr.mxu0 0.0
  %3301 = vmatpush1.msra.mxu0 0.0
  %3302 = vmatprep.subr.mxu0 0.0
  %3303 = vmatpush1.msra.mxu0 0.0
  %3304 = vmatprep.subr.mxu0 0.0
  %3305 = vmatpush1.msra.mxu0 0.0
  %3306 = vmatprep.subr.mxu0 0.0
  %3307 = vmatpush1.msra.mxu0 0.0
  %3308 = vmatprep.subr.mxu0 0.0
  %3309 = vmatpush1.msra.mxu0 0.0
  %3310 = vmatprep.subr.mxu0 0.0
  %3311 = vmatpush1.msra.mxu0 0.0
  %3312 = vmatprep.subr.mxu0 0.0
  %3313 = vmatpush1.msra.mxu0 0.0
  %3314 = vmatprep.subr.mxu0 0.0
  %3315 = vmatpush1.msra.mxu0 0.0
  %3316 = vmatprep.subr.mxu0 0.0
  %3317 = vmatpush1.msra.mxu0 0.0
  %3318 = vmatprep.subr.mxu0 0.0
  %3319 = vmatpush1.msra.mxu0 0.0
  %3320 = vmatprep.subr.mxu0 0.0
  %3321 = vmatpush1.msra.mxu0 0.0
  %3322 = vmatprep.subr.mxu0 0.0
  %3323 = vmatpush1.msra.mxu0 %v3194
  %3324 = vmatprep.subr.mxu0 0.0
  %3325 = vmatpush1.msra.mxu0 %v3193
  %3326 = vmatprep.subr.mxu0 0.0
  %3327 = vmatpush1.msra.mxu0 %v3192
  %3328 = vmatprep.subr.mxu0 0.0
  %3329 = vmatpush1.msra.mxu0 %v3191
  %3330 = vmatprep.subr.mxu0 0.0
  %3331 = vmatpush2.msra.mxu0 0.0
  %3332 = vmatprep.subr.mxu0 0.0
  %3333 = vmatpush2.msra.mxu0 0.0
  %3334 = vmatprep.subr.mxu0 0.0
  %3335 = vmatpush2.msra.mxu0 0.0
  %3336 = vmatprep.subr.mxu0 0.0
  %3337 = vmatpush2.msra.mxu0 0.0
  %3338 = vmatprep.subr.mxu0 0.0
  %3339 = vmatpush2.msra.mxu0 0.0
  %3340 = vmatprep.subr.mxu0 0.0
  %3341 = vmatpush2.msra.mxu0 0.0
  %3342 = vmatprep.subr.mxu0 0.0
  %3343 = vmatpush2.msra.mxu0 0.0
  %3344 = vmatprep.subr.mxu0 0.0
  %3345 = vmatpush2.msra.mxu0 0.0
  %3346 = vmatprep.subr.mxu0 0.0
  %3347 = vmatpush2.msra.mxu0 0.0
  %3348 = vmatprep.subr.mxu0 0.0
  %3349 = vmatpush2.msra.mxu0 0.0
  %3350 = vmatprep.subr.mxu0 0.0
  %3351 = vmatpush2.msra.mxu0 0.0
  %3352 = vmatprep.subr.mxu0 0.0
  %3353 = vmatpush2.msra.mxu0 0.0
  %3354 = vmatprep.subr.mxu0 0.0
  %3355 = vmatpush2.msra.mxu0 0.0
  %3356 = vmatprep.subr.mxu0 0.0
  %3357 = vmatpush2.msra.mxu0 0.0
  %3358 = vmatprep.subr.mxu0 0.0
  %3359 = vmatpush2.msra.mxu0 0.0
  %3360 = vmatprep.subr.mxu0 0.0
  %3361 = vmatpush2.msra.mxu0 0.0
  %3362 = vmatprep.mubr.f32.mxu0 0.0
  %3363 = vmatmul.mubr.f32.gmra.mxu0 %v3226
  %v3364 = vpop.f32.mrf.mxu0
  %v3365 = vadd.f32 %v3223, %v3364
  %v3366 = vpop.f32.mrf.mxu0
  %3367 = vdwg.mxu0
  %3368 = vmatprep.subr.mxu0 0.0
  %3369 = vmatpush1.msra.mxu0 0.0
  %3370 = vmatprep.subr.mxu0 0.0
  %3371 = vmatpush1.msra.mxu0 0.0
  %3372 = vmatprep.subr.mxu0 0.0
  %3373 = vmatpush1.msra.mxu0 0.0
  %3374 = vmatprep.subr.mxu0 0.0
  %3375 = vmatpush1.msra.mxu0 0.0
  %3376 = vmatprep.subr.mxu0 0.0
  %3377 = vmatpush1.msra.mxu0 0.0
  %3378 = vmatprep.subr.mxu0 0.0
  %3379 = vmatpush1.msra.mxu0 0.0
  %3380 = vmatprep.subr.mxu0 0.0
  %3381 = vmatpush1.msra.mxu0 0.0
  %3382 = vmatprep.subr.mxu0 0.0
  %3383 = vmatpush1.msra.mxu0 0.0
  %3384 = vmatprep.subr.mxu0 0.0
  %3385 = vmatpush1.msra.mxu0 0.0
  %3386 = vmatprep.subr.mxu0 0.0
  %3387 = vmatpush1.msra.mxu0 0.0
  %3388 = vmatprep.subr.mxu0 0.0
  %3389 = vmatpush1.msra.mxu0 0.0
  %3390 = vmatprep.subr.mxu0 0.0
  %3391 = vmatpush1.msra.mxu0 0.0
  %3392 = vmatprep.subr.mxu0 0.0
  %3393 = vmatpush1.msra.mxu0 %v3198
  %3394 = vmatprep.subr.mxu0 0.0
  %3395 = vmatpush1.msra.mxu0 %v3197
  %3396 = vmatprep.subr.mxu0 0.0
  %3397 = vmatpush1.msra.mxu0 %v3196
  %3398 = vmatprep.subr.mxu0 0.0
  %3399 = vmatpush1.msra.mxu0 %v3195
  %3400 = vmatprep.subr.mxu0 0.0
  %3401 = vmatpush2.msra.mxu0 0.0
  %3402 = vmatprep.subr.mxu0 0.0
  %3403 = vmatpush2.msra.mxu0 0.0
  %3404 = vmatprep.subr.mxu0 0.0
  %3405 = vmatpush2.msra.mxu0 0.0
  %3406 = vmatprep.subr.mxu0 0.0
  %3407 = vmatpush2.msra.mxu0 0.0
  %3408 = vmatprep.subr.mxu0 0.0
  %3409 = vmatpush2.msra.mxu0 0.0
  %3410 = vmatprep.subr.mxu0 0.0
  %3411 = vmatpush2.msra.mxu0 0.0
  %3412 = vmatprep.subr.mxu0 0.0
  %3413 = vmatpush2.msra.mxu0 0.0
  %3414 = vmatprep.subr.mxu0 0.0
  %3415 = vmatpush2.msra.mxu0 0.0
  %3416 = vmatprep.subr.mxu0 0.0
  %3417 = vmatpush2.msra.mxu0 0.0
  %3418 = vmatprep.subr.mxu0 0.0
  %3419 = vmatpush2.msra.mxu0 0.0
  %3420 = vmatprep.subr.mxu0 0.0
  %3421 = vmatpush2.msra.mxu0 0.0
  %3422 = vmatprep.subr.mxu0 0.0
  %3423 = vmatpush2.msra.mxu0 0.0
  %3424 = vmatprep.subr.mxu0 0.0
  %3425 = vmatpush2.msra.mxu0 0.0
  %3426 = vmatprep.subr.mxu0 0.0
  %3427 = vmatpush2.msra.mxu0 0.0
  %3428 = vmatprep.subr.mxu0 0.0
  %3429 = vmatpush2.msra.mxu0 0.0
  %3430 = vmatprep.subr.mxu0 0.0
  %3431 = vmatpush2.msra.mxu0 0.0
  %3432 = vmatprep.mubr.f32.mxu0 0.0
  %3433 = vmatmul.mubr.f32.gmra.mxu0 %v3226
  %v3434 = vpop.f32.mrf.mxu0
  %v3435 = vadd.f32 %v3223, %v3434
  %v3436 = vpop.f32.mrf.mxu0
  %3437 = vdwg.mxu0
  %3438 = vmatprep.subr.mxu0 0.0
  %3439 = vmatpush1.msra.mxu0 0.0
  %3440 = vmatprep.subr.mxu0 0.0
  %3441 = vmatpush1.msra.mxu0 0.0
  %3442 = vmatprep.subr.mxu0 0.0
  %3443 = vmatpush1.msra.mxu0 0.0
  %3444 = vmatprep.subr.mxu0 0.0
  %3445 = vmatpush1.msra.mxu0 0.0
  %3446 = vmatprep.subr.mxu0 0.0
  %3447 = vmatpush1.msra.mxu0 0.0
  %3448 = vmatprep.subr.mxu0 0.0
  %3449 = vmatpush1.msra.mxu0 0.0
  %3450 = vmatprep.subr.mxu0 0.0
  %3451 = vmatpush1.msra.mxu0 0.0
  %3452 = vmatprep.subr.mxu0 0.0
  %3453 = vmatpush1.msra.mxu0 0.0
  %3454 = vmatprep.subr.mxu0 0.0
  %3455 = vmatpush1.msra.mxu0 0.0
  %3456 = vmatprep.subr.mxu0 0.0
  %3457 = vmatpush1.msra.mxu0 0.0
  %3458 = vmatprep.subr.mxu0 0.0
  %3459 = vmatpush1.msra.mxu0 0.0
  %3460 = vmatprep.subr.mxu0 0.0
  %3461 = vmatpush1.msra.mxu0 0.0
  %3462 = vmatprep.subr.mxu0 0.0
  %3463 = vmatpush1.msra.mxu0 %v3202
  %3464 = vmatprep.subr.mxu0 0.0
  %3465 = vmatpush1.msra.mxu0 %v3201
  %3466 = vmatprep.subr.mxu0 0.0
  %3467 = vmatpush1.msra.mxu0 %v3200
  %3468 = vmatprep.subr.mxu0 0.0
  %3469 = vmatpush1.msra.mxu0 %v3199
  %3470 = vmatprep.subr.mxu0 0.0
  %3471 = vmatpush2.msra.mxu0 0.0
  %3472 = vmatprep.subr.mxu0 0.0
  %3473 = vmatpush2.msra.mxu0 0.0
  %3474 = vmatprep.subr.mxu0 0.0
  %3475 = vmatpush2.msra.mxu0 0.0
  %3476 = vmatprep.subr.mxu0 0.0
  %3477 = vmatpush2.msra.mxu0 0.0
  %3478 = vmatprep.subr.mxu0 0.0
  %3479 = vmatpush2.msra.mxu0 0.0
  %3480 = vmatprep.subr.mxu0 0.0
  %3481 = vmatpush2.msra.mxu0 0.0
  %3482 = vmatprep.subr.mxu0 0.0
  %3483 = vmatpush2.msra.mxu0 0.0
  %3484 = vmatprep.subr.mxu0 0.0
  %3485 = vmatpush2.msra.mxu0 0.0
  %3486 = vmatprep.subr.mxu0 0.0
  %3487 = vmatpush2.msra.mxu0 0.0
  %3488 = vmatprep.subr.mxu0 0.0
  %3489 = vmatpush2.msra.mxu0 0.0
  %3490 = vmatprep.subr.mxu0 0.0
  %3491 = vmatpush2.msra.mxu0 0.0
  %3492 = vmatprep.subr.mxu0 0.0
  %3493 = vmatpush2.msra.mxu0 0.0
  %3494 = vmatprep.subr.mxu0 0.0
  %3495 = vmatpush2.msra.mxu0 0.0
  %3496 = vmatprep.subr.mxu0 0.0
  %3497 = vmatpush2.msra.mxu0 0.0
  %3498 = vmatprep.subr.mxu0 0.0
  %3499 = vmatpush2.msra.mxu0 0.0
  %3500 = vmatprep.subr.mxu0 0.0
  %3501 = vmatpush2.msra.mxu0 0.0
  %3502 = vmatprep.mubr.f32.mxu0 0.0
  %3503 = vmatmul.mubr.f32.gmra.mxu0 %v3226
  %v3504 = vpop.f32.mrf.mxu0
  %v3505 = vadd.f32 %v3223, %v3504
  %v3506 = vpop.f32.mrf.mxu0
  %3507 = vdwg.mxu0
  %3508 = vmatprep.subr.mxu0 0.0
  %3509 = vmatpush1.msra.mxu0 0.0
  %3510 = vmatprep.subr.mxu0 0.0
  %3511 = vmatpush1.msra.mxu0 0.0
  %3512 = vmatprep.subr.mxu0 0.0
  %3513 = vmatpush1.msra.mxu0 0.0
  %3514 = vmatprep.subr.mxu0 0.0
  %3515 = vmatpush1.msra.mxu0 0.0
  %3516 = vmatprep.subr.mxu0 0.0
  %3517 = vmatpush1.msra.mxu0 0.0
  %3518 = vmatprep.subr.mxu0 0.0
  %3519 = vmatpush1.msra.mxu0 0.0
  %3520 = vmatprep.subr.mxu0 0.0
  %3521 = vmatpush1.msra.mxu0 0.0
  %3522 = vmatprep.subr.mxu0 0.0
  %3523 = vmatpush1.msra.mxu0 0.0
  %3524 = vmatprep.subr.mxu0 0.0
  %3525 = vmatpush1.msra.mxu0 0.0
  %3526 = vmatprep.subr.mxu0 0.0
  %3527 = vmatpush1.msra.mxu0 0.0
  %3528 = vmatprep.subr.mxu0 0.0
  %3529 = vmatpush1.msra.mxu0 0.0
  %3530 = vmatprep.subr.mxu0 0.0
  %3531 = vmatpush1.msra.mxu0 0.0
  %3532 = vmatprep.subr.mxu0 0.0
  %3533 = vmatpush1.msra.mxu0 %v3206
  %3534 = vmatprep.subr.mxu0 0.0
  %3535 = vmatpush1.msra.mxu0 %v3205
  %3536 = vmatprep.subr.mxu0 0.0
  %3537 = vmatpush1.msra.mxu0 %v3204
  %3538 = vmatprep.subr.mxu0 0.0
  %3539 = vmatpush1.msra.mxu0 %v3203
  %3540 = vmatprep.subr.mxu0 0.0
  %3541 = vmatpush2.msra.mxu0 0.0
  %3542 = vmatprep.subr.mxu0 0.0
  %3543 = vmatpush2.msra.mxu0 0.0
  %3544 = vmatprep.subr.mxu0 0.0
  %3545 = vmatpush2.msra.mxu0 0.0
  %3546 = vmatprep.subr.mxu0 0.0
  %3547 = vmatpush2.msra.mxu0 0.0
  %3548 = vmatprep.subr.mxu0 0.0
  %3549 = vmatpush2.msra.mxu0 0.0
  %3550 = vmatprep.subr.mxu0 0.0
  %3551 = vmatpush2.msra.mxu0 0.0
  %3552 = vmatprep.subr.mxu0 0.0
  %3553 = vmatpush2.msra.mxu0 0.0
  %3554 = vmatprep.subr.mxu0 0.0
  %3555 = vmatpush2.msra.mxu0 0.0
  %3556 = vmatprep.subr.mxu0 0.0
  %3557 = vmatpush2.msra.mxu0 0.0
  %3558 = vmatprep.subr.mxu0 0.0
  %3559 = vmatpush2.msra.mxu0 0.0
  %3560 = vmatprep.subr.mxu0 0.0
  %3561 = vmatpush2.msra.mxu0 0.0
  %3562 = vmatprep.subr.mxu0 0.0
  %3563 = vmatpush2.msra.mxu0 0.0
  %3564 = vmatprep.subr.mxu0 0.0
  %3565 = vmatpush2.msra.mxu0 0.0
  %3566 = vmatprep.subr.mxu0 0.0
  %3567 = vmatpush2.msra.mxu0 0.0
  %3568 = vmatprep.subr.mxu0 0.0
  %3569 = vmatpush2.msra.mxu0 0.0
  %3570 = vmatprep.subr.mxu0 0.0
  %3571 = vmatpush2.msra.mxu0 0.0
  %3572 = vmatprep.mubr.f32.mxu0 0.0
  %3573 = vmatmul.mubr.f32.gmra.mxu0 %v3226
  %v3574 = vpop.f32.mrf.mxu0
  %v3575 = vadd.f32 %v3223, %v3574
  %v3576 = vpop.f32.mrf.mxu0
  %3577 = vdwg.mxu0
  %3578 = vmatprep.subr.mxu0 0.0
  %3579 = vmatpush1.msra.mxu0 0.0
  %3580 = vmatprep.subr.mxu0 0.0
  %3581 = vmatpush1.msra.mxu0 0.0
  %3582 = vmatprep.subr.mxu0 0.0
  %3583 = vmatpush1.msra.mxu0 0.0
  %3584 = vmatprep.subr.mxu0 0.0
  %3585 = vmatpush1.msra.mxu0 0.0
  %3586 = vmatprep.subr.mxu0 0.0
  %3587 = vmatpush1.msra.mxu0 0.0
  %3588 = vmatprep.subr.mxu0 0.0
  %3589 = vmatpush1.msra.mxu0 0.0
  %3590 = vmatprep.subr.mxu0 0.0
  %3591 = vmatpush1.msra.mxu0 0.0
  %3592 = vmatprep.subr.mxu0 0.0
  %3593 = vmatpush1.msra.mxu0 0.0
  %3594 = vmatprep.subr.mxu0 0.0
  %3595 = vmatpush1.msra.mxu0 0.0
  %3596 = vmatprep.subr.mxu0 0.0
  %3597 = vmatpush1.msra.mxu0 0.0
  %3598 = vmatprep.subr.mxu0 0.0
  %3599 = vmatpush1.msra.mxu0 0.0
  %3600 = vmatprep.subr.mxu0 0.0
  %3601 = vmatpush1.msra.mxu0 0.0
  %3602 = vmatprep.subr.mxu0 0.0
  %3603 = vmatpush1.msra.mxu0 %v3210
  %3604 = vmatprep.subr.mxu0 0.0
  %3605 = vmatpush1.msra.mxu0 %v3209
  %3606 = vmatprep.subr.mxu0 0.0
  %3607 = vmatpush1.msra.mxu0 %v3208
  %3608 = vmatprep.subr.mxu0 0.0
  %3609 = vmatpush1.msra.mxu0 %v3207
  %3610 = vmatprep.subr.mxu0 0.0
  %3611 = vmatpush2.msra.mxu0 0.0
  %3612 = vmatprep.subr.mxu0 0.0
  %3613 = vmatpush2.msra.mxu0 0.0
  %3614 = vmatprep.subr.mxu0 0.0
  %3615 = vmatpush2.msra.mxu0 0.0
  %3616 = vmatprep.subr.mxu0 0.0
  %3617 = vmatpush2.msra.mxu0 0.0
  %3618 = vmatprep.subr.mxu0 0.0
  %3619 = vmatpush2.msra.mxu0 0.0
  %3620 = vmatprep.subr.mxu0 0.0
  %3621 = vmatpush2.msra.mxu0 0.0
  %3622 = vmatprep.subr.mxu0 0.0
  %3623 = vmatpush2.msra.mxu0 0.0
  %3624 = vmatprep.subr.mxu0 0.0
  %3625 = vmatpush2.msra.mxu0 0.0
  %3626 = vmatprep.subr.mxu0 0.0
  %3627 = vmatpush2.msra.mxu0 0.0
  %3628 = vmatprep.subr.mxu0 0.0
  %3629 = vmatpush2.msra.mxu0 0.0
  %3630 = vmatprep.subr.mxu0 0.0
  %3631 = vmatpush2.msra.mxu0 0.0
  %3632 = vmatprep.subr.mxu0 0.0
  %3633 = vmatpush2.msra.mxu0 0.0
  %3634 = vmatprep.subr.mxu0 0.0
  %3635 = vmatpush2.msra.mxu0 0.0
  %3636 = vmatprep.subr.mxu0 0.0
  %3637 = vmatpush2.msra.mxu0 0.0
  %3638 = vmatprep.subr.mxu0 0.0
  %3639 = vmatpush2.msra.mxu0 0.0
  %3640 = vmatprep.subr.mxu0 0.0
  %3641 = vmatpush2.msra.mxu0 0.0
  %3642 = vmatprep.mubr.f32.mxu0 0.0
  %3643 = vmatmul.mubr.f32.gmra.mxu0 %v3226
  %v3644 = vpop.f32.mrf.mxu0
  %v3645 = vadd.f32 %v3223, %v3644
  %v3646 = vpop.f32.mrf.mxu0
  %3647 = vdwg.mxu0
  %3648 = vmatprep.subr.mxu0 0.0
  %3649 = vmatpush1.msra.mxu0 0.0
  %3650 = vmatprep.subr.mxu0 0.0
  %3651 = vmatpush1.msra.mxu0 0.0
  %3652 = vmatprep.subr.mxu0 0.0
  %3653 = vmatpush1.msra.mxu0 0.0
  %3654 = vmatprep.subr.mxu0 0.0
  %3655 = vmatpush1.msra.mxu0 0.0
  %3656 = vmatprep.subr.mxu0 0.0
  %3657 = vmatpush1.msra.mxu0 0.0
  %3658 = vmatprep.subr.mxu0 0.0
  %3659 = vmatpush1.msra.mxu0 0.0
  %3660 = vmatprep.subr.mxu0 0.0
  %3661 = vmatpush1.msra.mxu0 0.0
  %3662 = vmatprep.subr.mxu0 0.0
  %3663 = vmatpush1.msra.mxu0 0.0
  %3664 = vmatprep.subr.mxu0 0.0
  %3665 = vmatpush1.msra.mxu0 0.0
  %3666 = vmatprep.subr.mxu0 0.0
  %3667 = vmatpush1.msra.mxu0 0.0
  %3668 = vmatprep.subr.mxu0 0.0
  %3669 = vmatpush1.msra.mxu0 0.0
  %3670 = vmatprep.subr.mxu0 0.0
  %3671 = vmatpush1.msra.mxu0 0.0
  %3672 = vmatprep.subr.mxu0 0.0
  %3673 = vmatpush1.msra.mxu0 %v3214
  %3674 = vmatprep.subr.mxu0 0.0
  %3675 = vmatpush1.msra.mxu0 %v3213
  %3676 = vmatprep.subr.mxu0 0.0
  %3677 = vmatpush1.msra.mxu0 %v3212
  %3678 = vmatprep.subr.mxu0 0.0
  %3679 = vmatpush1.msra.mxu0 %v3211
  %3680 = vmatprep.subr.mxu0 0.0
  %3681 = vmatpush2.msra.mxu0 0.0
  %3682 = vmatprep.subr.mxu0 0.0
  %3683 = vmatpush2.msra.mxu0 0.0
  %3684 = vmatprep.subr.mxu0 0.0
  %3685 = vmatpush2.msra.mxu0 0.0
  %3686 = vmatprep.subr.mxu0 0.0
  %3687 = vmatpush2.msra.mxu0 0.0
  %3688 = vmatprep.subr.mxu0 0.0
  %3689 = vmatpush2.msra.mxu0 0.0
  %3690 = vmatprep.subr.mxu0 0.0
  %3691 = vmatpush2.msra.mxu0 0.0
  %3692 = vmatprep.subr.mxu0 0.0
  %3693 = vmatpush2.msra.mxu0 0.0
  %3694 = vmatprep.subr.mxu0 0.0
  %3695 = vmatpush2.msra.mxu0 0.0
  %3696 = vmatprep.subr.mxu0 0.0
  %3697 = vmatpush2.msra.mxu0 0.0
  %3698 = vmatprep.subr.mxu0 0.0
  %3699 = vmatpush2.msra.mxu0 0.0
  %3700 = vmatprep.subr.mxu0 0.0
  %3701 = vmatpush2.msra.mxu0 0.0
  %3702 = vmatprep.subr.mxu0 0.0
  %3703 = vmatpush2.msra.mxu0 0.0
  %3704 = vmatprep.subr.mxu0 0.0
  %3705 = vmatpush2.msra.mxu0 0.0
  %3706 = vmatprep.subr.mxu0 0.0
  %3707 = vmatpush2.msra.mxu0 0.0
  %3708 = vmatprep.subr.mxu0 0.0
  %3709 = vmatpush2.msra.mxu0 0.0
  %3710 = vmatprep.subr.mxu0 0.0
  %3711 = vmatpush2.msra.mxu0 0.0
  %3712 = vmatprep.mubr.f32.mxu0 0.0
  %3713 = vmatmul.mubr.f32.gmra.mxu0 %v3226
  %v3714 = vpop.f32.mrf.mxu0
  %v3715 = vadd.f32 %v3223, %v3714
  %v3716 = vpop.f32.mrf.mxu0
  %3717 = vdwg.mxu0
  %3718 = vmatprep.subr.mxu0 0.0
  %3719 = vmatpush1.msra.mxu0 0.0
  %3720 = vmatprep.subr.mxu0 0.0
  %3721 = vmatpush1.msra.mxu0 0.0
  %3722 = vmatprep.subr.mxu0 0.0
  %3723 = vmatpush1.msra.mxu0 0.0
  %3724 = vmatprep.subr.mxu0 0.0
  %3725 = vmatpush1.msra.mxu0 0.0
  %3726 = vmatprep.subr.mxu0 0.0
  %3727 = vmatpush1.msra.mxu0 0.0
  %3728 = vmatprep.subr.mxu0 0.0
  %3729 = vmatpush1.msra.mxu0 0.0
  %3730 = vmatprep.subr.mxu0 0.0
  %3731 = vmatpush1.msra.mxu0 0.0
  %3732 = vmatprep.subr.mxu0 0.0
  %3733 = vmatpush1.msra.mxu0 0.0
  %3734 = vmatprep.subr.mxu0 0.0
  %3735 = vmatpush1.msra.mxu0 0.0
  %3736 = vmatprep.subr.mxu0 0.0
  %3737 = vmatpush1.msra.mxu0 0.0
  %3738 = vmatprep.subr.mxu0 0.0
  %3739 = vmatpush1.msra.mxu0 0.0
  %3740 = vmatprep.subr.mxu0 0.0
  %3741 = vmatpush1.msra.mxu0 0.0
  %3742 = vmatprep.subr.mxu0 0.0
  %3743 = vmatpush1.msra.mxu0 %v3218
  %3744 = vmatprep.subr.mxu0 0.0
  %3745 = vmatpush1.msra.mxu0 %v3217
  %3746 = vmatprep.subr.mxu0 0.0
  %3747 = vmatpush1.msra.mxu0 %v3216
  %3748 = vmatprep.subr.mxu0 0.0
  %3749 = vmatpush1.msra.mxu0 %v3215
  %3750 = vmatprep.subr.mxu0 0.0
  %3751 = vmatpush2.msra.mxu0 0.0
  %3752 = vmatprep.subr.mxu0 0.0
  %3753 = vmatpush2.msra.mxu0 0.0
  %3754 = vmatprep.subr.mxu0 0.0
  %3755 = vmatpush2.msra.mxu0 0.0
  %3756 = vmatprep.subr.mxu0 0.0
  %3757 = vmatpush2.msra.mxu0 0.0
  %3758 = vmatprep.subr.mxu0 0.0
  %3759 = vmatpush2.msra.mxu0 0.0
  %3760 = vmatprep.subr.mxu0 0.0
  %3761 = vmatpush2.msra.mxu0 0.0
  %3762 = vmatprep.subr.mxu0 0.0
  %3763 = vmatpush2.msra.mxu0 0.0
  %3764 = vmatprep.subr.mxu0 0.0
  %3765 = vmatpush2.msra.mxu0 0.0
  %3766 = vmatprep.subr.mxu0 0.0
  %3767 = vmatpush2.msra.mxu0 0.0
  %3768 = vmatprep.subr.mxu0 0.0
  %3769 = vmatpush2.msra.mxu0 0.0
  %3770 = vmatprep.subr.mxu0 0.0
  %3771 = vmatpush2.msra.mxu0 0.0
  %3772 = vmatprep.subr.mxu0 0.0
  %3773 = vmatpush2.msra.mxu0 0.0
  %3774 = vmatprep.subr.mxu0 0.0
  %3775 = vmatpush2.msra.mxu0 0.0
  %3776 = vmatprep.subr.mxu0 0.0
  %3777 = vmatpush2.msra.mxu0 0.0
  %3778 = vmatprep.subr.mxu0 0.0
  %3779 = vmatpush2.msra.mxu0 0.0
  %3780 = vmatprep.subr.mxu0 0.0
  %3781 = vmatpush2.msra.mxu0 0.0
  %3782 = vmatprep.mubr.f32.mxu0 0.0
  %3783 = vmatmul.mubr.f32.gmra.mxu0 %v3226
  %v3784 = vpop.f32.mrf.mxu0
  %v3785 = vadd.f32 %v3223, %v3784
  %v3786 = vpop.f32.mrf.mxu0
  %3787 = vdwg.mxu0
  %3788 = vst [vmem:[%s7] sm:$0xff] %v3295
  %3789 = vst [vmem:[%s7 + $0x8] sm:$0xff] %v3365
  %3790 = vst [vmem:[%s7 + $0x10] sm:$0xff] %v3435
  %3791 = vst [vmem:[%s7 + $0x18] sm:$0xff] %v3505
  %3792 = vst [vmem:[%s7 + $0x20] sm:$0xff] %v3575
  %3793 = vst [vmem:[%s7 + $0x28] sm:$0xff] %v3645
  %3794 = vst [vmem:[%s7 + $0x30] sm:$0xff] %v3715
  %3795 = vst [vmem:[%s7 + $0x38] sm:$0xff] %v3785
  // Predicated region
  $region34: #{rnn_forward.1} parent=0 // pred_check
    _
  $region35: #{rnn_forward.1} parent=0 // pred_check_branch
    %3797 = sbr.rel (0) target = $region37
  $region36: #{rnn_forward.1} parent=0 // pred_region
    _
  $region37: #{rnn_forward.1} parent=0 // pred_fallthru
    _
  // Predicated region
  $region38: #{rnn_forward.1} parent=0 // pred_check
    _
  $region39: #{rnn_forward.1} parent=0 // pred_check_branch
    %3799 = sbr.rel (0) target = $region41
  $region40: #{rnn_forward.1} parent=0 // pred_region
    _
  $region41: #{rnn_forward.1} parent=0 // pred_fallthru
    _

</llo_original>
